<compile_context>
chip_gen: v7x
topology: tpu7x:2x2x1
jax: 0.10.0
libtpu: 0.0.40
codegen_flags: <defaults>
</compile_context>

<pallas_src>
import jax
import jax.numpy as jnp
from jax.experimental import pallas as pl
from jax.experimental.pallas import tpu as pltpu

NHID = 32
N_HEAD = 4
HEAD_DIM = NHID // N_HEAD
FF_DIM = 2 * NHID
N_LAYER = 2
LN_EPS = 1e-5
BN_EPS = 1e-5
SCALE = 1.0 / (HEAD_DIM ** 0.5)

# Matmul-operand dtype (accumulation is always f32 via preferred_element_type).
W_DTYPE = jnp.bfloat16


def _layer_norm(x, g, b):
    mu = jnp.mean(x, axis=-1, keepdims=True)
    var = jnp.mean((x - mu) ** 2, axis=-1, keepdims=True)
    return (x - mu) * jax.lax.rsqrt(var + LN_EPS) * g + b


# ----------------------------------------------------------------------------
# Fused kernel: per grid step (one batch element b):
#   h = x + pos; 2 x [MHA -> +res -> LN -> FFN -> +res -> LN];
#   pooled = sum_N(h); out = pooled @ out_w.T   (BatchNorm done in JAX).
# Refs (batch dim squeezed by BlockSpec):
#   x_ref, pos_ref : [N, D]        mask_ref : [1, N]
#   per-layer weights stacked with leading dim N_LAYER, pre-transposed:
#     wqkv [L, D, 3D] bf16, bqkv [L, 1, 3D], wo_t [L, D, D] bf16, bo [L, 1, D],
#     ln1g/ln1b/ln2g/ln2b [L, 1, D], w1_t [L, D, FF] bf16, b1 [L, 1, FF],
#     w2_t [L, FF, D] bf16, b2 [L, 1, D]
#   outw_t [D, D] bf16             out_ref : [1, D]
# ----------------------------------------------------------------------------
def fused_forward_kernel(x_ref, pos_ref, mask_ref,
                         wqkv_ref, bqkv_ref, wo_ref, bo_ref,
                         ln1g_ref, ln1b_ref, w1_ref, b1_ref, w2_ref, b2_ref,
                         ln2g_ref, ln2b_ref, outw_ref, out_ref):
    N, D = x_ref.shape
    n_layer = wqkv_ref.shape[0]
    dh = D // N_HEAD

    h = x_ref[...] + pos_ref[...]                                   # [N, D] f32
    key_bias = jnp.where(mask_ref[...] > 0.5, 0.0, -1e9)            # [1, N]

    for l in range(n_layer):
        # ---- multi-head self-attention: single fused QKV matmul ----
        qkv = jnp.dot(h.astype(W_DTYPE), wqkv_ref[l],
                      preferred_element_type=jnp.float32) + bqkv_ref[l]   # [N, 3D]
        q = jnp.transpose(qkv[:, 0 * D:1 * D].reshape(N, N_HEAD, dh), (1, 0, 2))
        k = jnp.transpose(qkv[:, 1 * D:2 * D].reshape(N, N_HEAD, dh), (1, 0, 2))
        v = jnp.transpose(qkv[:, 2 * D:3 * D].reshape(N, N_HEAD, dh), (1, 0, 2))

        # head-batched scores + softmax on one stacked [H, N, N] slab
        s = jnp.einsum("hqd,hkd->hqk", q, k,
                       preferred_element_type=jnp.float32) * SCALE       # [H, N, N]
        s = s + key_bias                       # key-padding mask (broadcast over q)
        s = s - jnp.max(s, axis=-1, keepdims=True)
        p = jnp.exp(s)
        p = p * pl.reciprocal(jnp.sum(p, axis=-1, keepdims=True), approx=True)
        ctx = jnp.einsum("hqk,hkd->hqd", p, v,
                         preferred_element_type=jnp.float32)              # [H, N, dh]
        attn = jnp.transpose(ctx, (1, 0, 2)).reshape(N, D)                # concat heads

        o = jnp.dot(attn.astype(W_DTYPE), wo_ref[l],
                    preferred_element_type=jnp.float32) + bo_ref[l]

        # ---- residual + LayerNorm 1 (post-LN) ----
        h1 = _layer_norm(h + o, ln1g_ref[l], ln1b_ref[l])

        # ---- feed-forward: Linear -> ReLU -> Linear ----
        f = jnp.dot(h1.astype(W_DTYPE), w1_ref[l],
                    preferred_element_type=jnp.float32) + b1_ref[l]
        f = jnp.maximum(f, 0.0)
        f = jnp.dot(f.astype(W_DTYPE), w2_ref[l],
                    preferred_element_type=jnp.float32) + b2_ref[l]

        # ---- residual + LayerNorm 2 ----
        h = _layer_norm(h1 + f, ln2g_ref[l], ln2b_ref[l])

    # ---- sum over the set dim (torch.sum dim=1) + Linear(nhid, nhid, bias=False)
    pooled = jnp.sum(h, axis=0, keepdims=True)                            # [1, D]
    out_ref[...] = jnp.dot(pooled.astype(W_DTYPE), outw_ref[...],
                           preferred_element_type=jnp.float32)


# ----------------------------------------------------------------------------
# Parameter init (PyTorch layout, deterministic synthetic) + host-side packing.
# ----------------------------------------------------------------------------
def init_params(key, nhid=NHID, nlayer=N_LAYER, ff=FF_DIM):
    def lin(k, out_f, in_f):
        bound = 1.0 / (in_f ** 0.5)
        return jax.random.uniform(k, (out_f, in_f), jnp.float32, -bound, bound)

    layers = []
    for _ in range(nlayer):
        key, *ks = jax.random.split(key, 8)
        layers.append(dict(
            wq=lin(ks[0], nhid, nhid), bq=jnp.zeros((1, nhid), jnp.float32),
            wk=lin(ks[1], nhid, nhid), bk=jnp.zeros((1, nhid), jnp.float32),
            wv=lin(ks[2], nhid, nhid), bv=jnp.zeros((1, nhid), jnp.float32),
            wo=lin(ks[3], nhid, nhid), bo=jnp.zeros((1, nhid), jnp.float32),
            ln1g=jnp.ones((1, nhid), jnp.float32), ln1b=jnp.zeros((1, nhid), jnp.float32),
            w1=lin(ks[4], ff, nhid), b1=jnp.zeros((1, ff), jnp.float32),
            w2=lin(ks[5], nhid, ff), b2=jnp.zeros((1, nhid), jnp.float32),
            ln2g=jnp.ones((1, nhid), jnp.float32), ln2b=jnp.zeros((1, nhid), jnp.float32),
        ))
    key, ko = jax.random.split(key)
    return dict(
        layers=layers,
        out_w=lin(ko, nhid, nhid),                 # nn.Linear(nhid, nhid, bias=False)
        bn_g=jnp.ones((1, nhid), jnp.float32),     # BatchNorm1d weight
        bn_b=jnp.zeros((1, nhid), jnp.float32),    # BatchNorm1d bias
    )


def pack_params(params):
    """Pre-transpose / pack weights on the host so the kernel never runs `.T`."""
    Ls = params["layers"]
    stk = lambda f: jnp.stack([f(lp) for lp in Ls])
    return dict(
        # fused QKV weight, already transposed to [D, 3D]
        wqkv=stk(lambda lp: jnp.concatenate([lp["wq"], lp["wk"], lp["wv"]], 0).T
                 ).astype(W_DTYPE),
        bqkv=stk(lambda lp: jnp.concatenate([lp["bq"], lp["bk"], lp["bv"]], 1)),
        wo=stk(lambda lp: lp["wo"].T).astype(W_DTYPE),
        bo=stk(lambda lp: lp["bo"]),
        ln1g=stk(lambda lp: lp["ln1g"]), ln1b=stk(lambda lp: lp["ln1b"]),
        w1=stk(lambda lp: lp["w1"].T).astype(W_DTYPE),
        b1=stk(lambda lp: lp["b1"]),
        w2=stk(lambda lp: lp["w2"].T).astype(W_DTYPE),
        b2=stk(lambda lp: lp["b2"]),
        ln2g=stk(lambda lp: lp["ln2g"]), ln2b=stk(lambda lp: lp["ln2b"]),
        outw=params["out_w"].T.astype(W_DTYPE),
        bn_g=params["bn_g"], bn_b=params["bn_b"],
    )


@jax.jit
def set_transformer_forward(x, pos, mask, pp):
    B, N, D = x.shape
    mask3 = mask.reshape(B, 1, N)

    weight_names = ("wqkv", "bqkv", "wo", "bo", "ln1g", "ln1b",
                    "w1", "b1", "w2", "b2", "ln2g", "ln2b", "outw")
    weights = [pp[k] for k in weight_names]

    def const_spec(a):   # full array, same block for every grid step (stays resident)
        nd = a.ndim
        return pl.BlockSpec(a.shape, lambda b, _nd=nd: (0,) * _nd)

    in_specs = ([pl.BlockSpec((None, N, D), lambda b: (b, 0, 0)),
                 pl.BlockSpec((None, N, D), lambda b: (b, 0, 0)),
                 pl.BlockSpec((None, 1, N), lambda b: (b, 0, 0))]
                + [const_spec(a) for a in weights])

    y = pl.pallas_call(
        fused_forward_kernel,
        grid=(B,),
        in_specs=in_specs,
        # NOTE: last dim of the per-step output is D=32 (<128 lanes); it is a
        # single tiny store per step so lane-density is not worth padding here.
        out_specs=pl.BlockSpec((None, 1, D), lambda b: (b, 0, 0)),
        out_shape=jax.ShapeDtypeStruct((B, 1, D), jnp.float32),
        compiler_params=pltpu.CompilerParams(dimension_semantics=("parallel",)),
    )(x, pos, mask3, *weights)[:, 0, :]                              # [B, D]

    # BatchNorm1d over the batch (training-mode batch stats, biased variance):
    # needs statistics across the parallel batch axis, so done in plain JAX.
    mu = jnp.mean(y, axis=0, keepdims=True)
    var = jnp.mean((y - mu) ** 2, axis=0, keepdims=True)
    return (y - mu) * jax.lax.rsqrt(var + BN_EPS) * pp["bn_g"] + pp["bn_b"]


if __name__ == "__main__":
    B, N, D = 2, 8, NHID
    key = jax.random.PRNGKey(0)
    k_x, k_pos, k_params = jax.random.split(key, 3)

    x = jax.random.normal(k_x, (B, N, D), jnp.float32)
    pos = jax.random.normal(k_pos, (B, N, D), jnp.float32)
    # mask: all tokens valid in batch 0; last two tokens padded in batch 1
    mask = jnp.array([[1.0] * N,
                      [1.0] * (N - 2) + [0.0, 0.0]], jnp.float32)

    params = init_params(k_params)
    packed = pack_params(params)

    out = set_transformer_forward(x, pos, mask, packed)
    jax.block_until_ready(out)
    assert out.shape == (B, D) and out.dtype == jnp.float32
    print("KERNEL_OK")
</pallas_src>

<mosaic_0001>
module attributes {stable_mosaic.version = 11 : i64} {
  func.func @fused_forward_kernel(%arg0: i32, %arg1: memref<1x8x32xf32, #tpu.memory_space<vmem>>, %arg2: memref<1x8x32xf32, #tpu.memory_space<vmem>>, %arg3: memref<1x1x8xf32, #tpu.memory_space<vmem>>, %arg4: memref<2x32x96xbf16, #tpu.memory_space<vmem>>, %arg5: memref<2x1x96xf32, #tpu.memory_space<vmem>>, %arg6: memref<2x32x32xbf16, #tpu.memory_space<vmem>>, %arg7: memref<2x1x32xf32, #tpu.memory_space<vmem>>, %arg8: memref<2x1x32xf32, #tpu.memory_space<vmem>>, %arg9: memref<2x1x32xf32, #tpu.memory_space<vmem>>, %arg10: memref<2x32x64xbf16, #tpu.memory_space<vmem>>, %arg11: memref<2x1x64xf32, #tpu.memory_space<vmem>>, %arg12: memref<2x64x32xbf16, #tpu.memory_space<vmem>>, %arg13: memref<2x1x32xf32, #tpu.memory_space<vmem>>, %arg14: memref<2x1x32xf32, #tpu.memory_space<vmem>>, %arg15: memref<2x1x32xf32, #tpu.memory_space<vmem>>, %arg16: memref<32x32xbf16, #tpu.memory_space<vmem>>, %arg17: memref<1x1x32xf32, #tpu.memory_space<vmem>>) attributes {dimension_semantics = [#tpu.dimension_semantics<parallel>], iteration_bounds = array<i64: 2>, scalar_prefetch = 0 : i64, scratch_operands = 0 : i64, tpu.core_type = #tpu.core_type<tc>, window_params = [{transform_indices = @transform_0, window_bounds = array<i64: 1, 8, 32>}, {transform_indices = @transform_1, window_bounds = array<i64: 1, 8, 32>}, {transform_indices = @transform_2, window_bounds = array<i64: 1, 1, 8>}, {pipeline_mode = #tpu.pipeline_mode<synchronous>, transform_indices = @transform_3, window_bounds = array<i64: 2, 32, 96>}, {pipeline_mode = #tpu.pipeline_mode<synchronous>, transform_indices = @transform_4, window_bounds = array<i64: 2, 1, 96>}, {pipeline_mode = #tpu.pipeline_mode<synchronous>, transform_indices = @transform_5, window_bounds = array<i64: 2, 32, 32>}, {pipeline_mode = #tpu.pipeline_mode<synchronous>, transform_indices = @transform_6, window_bounds = array<i64: 2, 1, 32>}, {pipeline_mode = #tpu.pipeline_mode<synchronous>, transform_indices = @transform_7, window_bounds = array<i64: 2, 1, 32>}, {pipeline_mode = #tpu.pipeline_mode<synchronous>, transform_indices = @transform_8, window_bounds = array<i64: 2, 1, 32>}, {pipeline_mode = #tpu.pipeline_mode<synchronous>, transform_indices = @transform_9, window_bounds = array<i64: 2, 32, 64>}, {pipeline_mode = #tpu.pipeline_mode<synchronous>, transform_indices = @transform_10, window_bounds = array<i64: 2, 1, 64>}, {pipeline_mode = #tpu.pipeline_mode<synchronous>, transform_indices = @transform_11, window_bounds = array<i64: 2, 64, 32>}, {pipeline_mode = #tpu.pipeline_mode<synchronous>, transform_indices = @transform_12, window_bounds = array<i64: 2, 1, 32>}, {pipeline_mode = #tpu.pipeline_mode<synchronous>, transform_indices = @transform_13, window_bounds = array<i64: 2, 1, 32>}, {pipeline_mode = #tpu.pipeline_mode<synchronous>, transform_indices = @transform_14, window_bounds = array<i64: 2, 1, 32>}, {pipeline_mode = #tpu.pipeline_mode<synchronous>, transform_indices = @transform_15, window_bounds = array<i64: 32, 32>}, {transform_indices = @transform_16, window_bounds = array<i64: 1, 1, 32>}]} {
    %c0 = arith.constant 0 : index
    %c0_0 = arith.constant 0 : index
    %c0_1 = arith.constant 0 : index
    %0 = vector.load %arg1[%c0, %c0_0, %c0_1] : memref<1x8x32xf32, #tpu.memory_space<vmem>>, vector<1x8x32xf32>
    %1 = vector.shape_cast %0 : vector<1x8x32xf32> to vector<8x32xf32>
    %c0_2 = arith.constant 0 : index
    %c0_3 = arith.constant 0 : index
    %c0_4 = arith.constant 0 : index
    %2 = vector.load %arg2[%c0_2, %c0_3, %c0_4] : memref<1x8x32xf32, #tpu.memory_space<vmem>>, vector<1x8x32xf32>
    %3 = vector.shape_cast %2 : vector<1x8x32xf32> to vector<8x32xf32>
    %4 = arith.addf %1, %3 : vector<8x32xf32>
    %c0_5 = arith.constant 0 : index
    %c0_6 = arith.constant 0 : index
    %c0_7 = arith.constant 0 : index
    %5 = vector.load %arg3[%c0_5, %c0_6, %c0_7] : memref<1x1x8xf32, #tpu.memory_space<vmem>>, vector<1x1x8xf32>
    %6 = vector.shape_cast %5 : vector<1x1x8xf32> to vector<1x8xf32>
    %cst = arith.constant 5.000000e-01 : f32
    %7 = vector.broadcast %cst : f32 to vector<1x8xf32>
    %8 = arith.cmpf ogt, %6, %7 : vector<1x8xf32>
    %cst_8 = arith.constant 0.000000e+00 : f32
    %cst_9 = arith.constant -1.000000e+09 : f32
    %9 = vector.broadcast %cst_8 : f32 to vector<1x8xf32>
    %10 = vector.broadcast %cst_9 : f32 to vector<1x8xf32>
    %11 = arith.select %8, %9, %10 : vector<1x8xi1>, vector<1x8xf32>
    %12 = arith.truncf %4 : vector<8x32xf32> to vector<8x32xbf16>
    %c0_10 = arith.constant 0 : index
    %c0_11 = arith.constant 0 : index
    %c0_12 = arith.constant 0 : index
    %13 = vector.load %arg4[%c0_10, %c0_11, %c0_12] : memref<2x32x96xbf16, #tpu.memory_space<vmem>>, vector<1x32x96xbf16>
    %14 = vector.shape_cast %13 : vector<1x32x96xbf16> to vector<32x96xbf16>
    %cst_13 = arith.constant dense<0.000000e+00> : vector<8x96xf32>
    %15 = tpu.matmul %12, %14, %cst_13 {dimension_numbers = #tpu.dot_dimension_numbers<[1], [0], [0], [1], [0, 0, 1, 1], [], []>} : vector<8x32xbf16>, vector<32x96xbf16>, vector<8x96xf32> -> vector<8x96xf32>
    %c0_14 = arith.constant 0 : index
    %c0_15 = arith.constant 0 : index
    %c0_16 = arith.constant 0 : index
    %16 = vector.load %arg5[%c0_14, %c0_15, %c0_16] : memref<2x1x96xf32, #tpu.memory_space<vmem>>, vector<1x1x96xf32>
    %17 = vector.shape_cast %16 : vector<1x1x96xf32> to vector<1x96xf32>
    %18 = vector.broadcast %17 : vector<1x96xf32> to vector<8x96xf32>
    %19 = arith.addf %15, %18 : vector<8x96xf32>
    %20 = vector.extract_strided_slice %19 {offsets = [0, 0], sizes = [8, 32], strides = [1, 1]} : vector<8x96xf32> to vector<8x32xf32>
    %21 = vector.shape_cast %20 : vector<8x32xf32> to vector<8x4x8xf32>
    %22 = tpu.transpose %21, [1, 0, 2] : vector<8x4x8xf32> -> vector<4x8x8xf32>
    %23 = vector.extract_strided_slice %19 {offsets = [0, 32], sizes = [8, 32], strides = [1, 1]} : vector<8x96xf32> to vector<8x32xf32>
    %24 = vector.shape_cast %23 : vector<8x32xf32> to vector<8x4x8xf32>
    %25 = tpu.transpose %24, [1, 0, 2] : vector<8x4x8xf32> -> vector<4x8x8xf32>
    %26 = vector.extract_strided_slice %19 {offsets = [0, 64], sizes = [8, 32], strides = [1, 1]} : vector<8x96xf32> to vector<8x32xf32>
    %27 = vector.shape_cast %26 : vector<8x32xf32> to vector<8x4x8xf32>
    %28 = tpu.transpose %27, [1, 0, 2] : vector<8x4x8xf32> -> vector<4x8x8xf32>
    "tpu.trace_start"() <{level = 10 : i32, message = "hqd,hkd->hqk"}> : () -> ()
    %cst_17 = arith.constant dense<0.000000e+00> : vector<4x8x8xf32>
    %29 = tpu.matmul %22, %25, %cst_17 {dimension_numbers = #tpu.dot_dimension_numbers<[2], [2], [1], [1], [0, 0, 0, 1, 1, 1], [0], [0]>} : vector<4x8x8xf32>, vector<4x8x8xf32>, vector<4x8x8xf32> -> vector<4x8x8xf32>
    "tpu.trace_stop"() : () -> ()
    %cst_18 = arith.constant 0.353553385 : f32
    %30 = vector.broadcast %cst_18 : f32 to vector<4x8x8xf32>
    %31 = arith.mulf %29, %30 : vector<4x8x8xf32>
    %32 = vector.shape_cast %11 : vector<1x8xf32> to vector<1x1x8xf32>
    %33 = vector.broadcast %32 : vector<1x1x8xf32> to vector<4x8x8xf32>
    %34 = arith.addf %31, %33 : vector<4x8x8xf32>
    %cst_19 = arith.constant dense<0xFF800000> : vector<4x8xf32>
    %35 = vector.multi_reduction <maximumf>, %34, %cst_19 [2] : vector<4x8x8xf32> to vector<4x8xf32>
    %36 = vector.shape_cast %35 : vector<4x8xf32> to vector<4x8x1xf32>
    %37 = vector.broadcast %36 : vector<4x8x1xf32> to vector<4x8x8xf32>
    %38 = arith.subf %34, %37 : vector<4x8x8xf32>
    %39 = math.exp %38 : vector<4x8x8xf32>
    %cst_20 = arith.constant dense<0.000000e+00> : vector<4x8xf32>
    %40 = vector.multi_reduction <add>, %39, %cst_20 [2] : vector<4x8x8xf32> to vector<4x8xf32>
    %41 = vector.shape_cast %40 : vector<4x8xf32> to vector<4x8x1xf32>
    %42 = tpu.reciprocal %41 {approx = true} : vector<4x8x1xf32> -> vector<4x8x1xf32>
    %43 = vector.broadcast %42 : vector<4x8x1xf32> to vector<4x8x8xf32>
    %44 = arith.mulf %39, %43 : vector<4x8x8xf32>
    "tpu.trace_start"() <{level = 10 : i32, message = "hqk,hkd->hqd"}> : () -> ()
    %cst_21 = arith.constant dense<0.000000e+00> : vector<4x8x8xf32>
    %45 = tpu.matmul %44, %28, %cst_21 {dimension_numbers = #tpu.dot_dimension_numbers<[2], [1], [1], [2], [0, 0, 0, 1, 1, 2], [0], [0]>} : vector<4x8x8xf32>, vector<4x8x8xf32>, vector<4x8x8xf32> -> vector<4x8x8xf32>
    "tpu.trace_stop"() : () -> ()
    %46 = tpu.transpose %45, [1, 0, 2] : vector<4x8x8xf32> -> vector<8x4x8xf32>
    %47 = vector.shape_cast %46 : vector<8x4x8xf32> to vector<8x32xf32>
    %48 = arith.truncf %47 : vector<8x32xf32> to vector<8x32xbf16>
    %c0_22 = arith.constant 0 : index
    %c0_23 = arith.constant 0 : index
    %c0_24 = arith.constant 0 : index
    %49 = vector.load %arg6[%c0_22, %c0_23, %c0_24] : memref<2x32x32xbf16, #tpu.memory_space<vmem>>, vector<1x32x32xbf16>
    %50 = vector.shape_cast %49 : vector<1x32x32xbf16> to vector<32x32xbf16>
    %cst_25 = arith.constant dense<0.000000e+00> : vector<8x32xf32>
    %51 = tpu.matmul %48, %50, %cst_25 {dimension_numbers = #tpu.dot_dimension_numbers<[1], [0], [0], [1], [0, 0, 1, 1], [], []>} : vector<8x32xbf16>, vector<32x32xbf16>, vector<8x32xf32> -> vector<8x32xf32>
    %c0_26 = arith.constant 0 : index
    %c0_27 = arith.constant 0 : index
    %c0_28 = arith.constant 0 : index
    %52 = vector.load %arg7[%c0_26, %c0_27, %c0_28] : memref<2x1x32xf32, #tpu.memory_space<vmem>>, vector<1x1x32xf32>
    %53 = vector.shape_cast %52 : vector<1x1x32xf32> to vector<1x32xf32>
    %54 = vector.broadcast %53 : vector<1x32xf32> to vector<8x32xf32>
    %55 = arith.addf %51, %54 : vector<8x32xf32>
    %56 = arith.addf %4, %55 : vector<8x32xf32>
    %c0_29 = arith.constant 0 : index
    %c0_30 = arith.constant 0 : index
    %c0_31 = arith.constant 0 : index
    %57 = vector.load %arg8[%c0_29, %c0_30, %c0_31] : memref<2x1x32xf32, #tpu.memory_space<vmem>>, vector<1x1x32xf32>
    %58 = vector.shape_cast %57 : vector<1x1x32xf32> to vector<1x32xf32>
    %c0_32 = arith.constant 0 : index
    %c0_33 = arith.constant 0 : index
    %c0_34 = arith.constant 0 : index
    %59 = vector.load %arg9[%c0_32, %c0_33, %c0_34] : memref<2x1x32xf32, #tpu.memory_space<vmem>>, vector<1x1x32xf32>
    %60 = vector.shape_cast %59 : vector<1x1x32xf32> to vector<1x32xf32>
    %cst_35 = arith.constant dense<0.000000e+00> : vector<8xf32>
    %61 = vector.multi_reduction <add>, %56, %cst_35 [1] : vector<8x32xf32> to vector<8xf32>
    %62 = vector.shape_cast %61 : vector<8xf32> to vector<8x1xf32>
    %cst_36 = arith.constant 3.200000e+01 : f32
    %63 = vector.broadcast %cst_36 : f32 to vector<8x1xf32>
    %64 = arith.divf %62, %63 : vector<8x1xf32>
    %65 = vector.broadcast %64 : vector<8x1xf32> to vector<8x32xf32>
    %66 = arith.subf %56, %65 : vector<8x32xf32>
    %67 = arith.mulf %66, %66 : vector<8x32xf32>
    %cst_37 = arith.constant dense<0.000000e+00> : vector<8xf32>
    %68 = vector.multi_reduction <add>, %67, %cst_37 [1] : vector<8x32xf32> to vector<8xf32>
    %69 = vector.shape_cast %68 : vector<8xf32> to vector<8x1xf32>
    %cst_38 = arith.constant 3.200000e+01 : f32
    %70 = vector.broadcast %cst_38 : f32 to vector<8x1xf32>
    %71 = arith.divf %69, %70 : vector<8x1xf32>
    %72 = vector.broadcast %64 : vector<8x1xf32> to vector<8x32xf32>
    %73 = arith.subf %56, %72 : vector<8x32xf32>
    %cst_39 = arith.constant 9.99999974E-6 : f32
    %74 = vector.broadcast %cst_39 : f32 to vector<8x1xf32>
    %75 = arith.addf %71, %74 : vector<8x1xf32>
    %76 = math.rsqrt %75 : vector<8x1xf32>
    %77 = vector.broadcast %76 : vector<8x1xf32> to vector<8x32xf32>
    %78 = arith.mulf %73, %77 : vector<8x32xf32>
    %79 = vector.broadcast %58 : vector<1x32xf32> to vector<8x32xf32>
    %80 = arith.mulf %78, %79 : vector<8x32xf32>
    %81 = vector.broadcast %60 : vector<1x32xf32> to vector<8x32xf32>
    %82 = arith.addf %80, %81 : vector<8x32xf32>
    %83 = arith.truncf %82 : vector<8x32xf32> to vector<8x32xbf16>
    %c0_40 = arith.constant 0 : index
    %c0_41 = arith.constant 0 : index
    %c0_42 = arith.constant 0 : index
    %84 = vector.load %arg10[%c0_40, %c0_41, %c0_42] : memref<2x32x64xbf16, #tpu.memory_space<vmem>>, vector<1x32x64xbf16>
    %85 = vector.shape_cast %84 : vector<1x32x64xbf16> to vector<32x64xbf16>
    %cst_43 = arith.constant dense<0.000000e+00> : vector<8x64xf32>
    %86 = tpu.matmul %83, %85, %cst_43 {dimension_numbers = #tpu.dot_dimension_numbers<[1], [0], [0], [1], [0, 0, 1, 1], [], []>} : vector<8x32xbf16>, vector<32x64xbf16>, vector<8x64xf32> -> vector<8x64xf32>
    %c0_44 = arith.constant 0 : index
    %c0_45 = arith.constant 0 : index
    %c0_46 = arith.constant 0 : index
    %87 = vector.load %arg11[%c0_44, %c0_45, %c0_46] : memref<2x1x64xf32, #tpu.memory_space<vmem>>, vector<1x1x64xf32>
    %88 = vector.shape_cast %87 : vector<1x1x64xf32> to vector<1x64xf32>
    %89 = vector.broadcast %88 : vector<1x64xf32> to vector<8x64xf32>
    %90 = arith.addf %86, %89 : vector<8x64xf32>
    %cst_47 = arith.constant 0.000000e+00 : f32
    %91 = vector.broadcast %cst_47 : f32 to vector<8x64xf32>
    %92 = arith.maximumf %90, %91 : vector<8x64xf32>
    %93 = arith.truncf %92 : vector<8x64xf32> to vector<8x64xbf16>
    %c0_48 = arith.constant 0 : index
    %c0_49 = arith.constant 0 : index
    %c0_50 = arith.constant 0 : index
    %94 = vector.load %arg12[%c0_48, %c0_49, %c0_50] : memref<2x64x32xbf16, #tpu.memory_space<vmem>>, vector<1x64x32xbf16>
    %95 = vector.shape_cast %94 : vector<1x64x32xbf16> to vector<64x32xbf16>
    %cst_51 = arith.constant dense<0.000000e+00> : vector<8x32xf32>
    %96 = tpu.matmul %93, %95, %cst_51 {dimension_numbers = #tpu.dot_dimension_numbers<[1], [0], [0], [1], [0, 0, 1, 1], [], []>} : vector<8x64xbf16>, vector<64x32xbf16>, vector<8x32xf32> -> vector<8x32xf32>
    %c0_52 = arith.constant 0 : index
    %c0_53 = arith.constant 0 : index
    %c0_54 = arith.constant 0 : index
    %97 = vector.load %arg13[%c0_52, %c0_53, %c0_54] : memref<2x1x32xf32, #tpu.memory_space<vmem>>, vector<1x1x32xf32>
    %98 = vector.shape_cast %97 : vector<1x1x32xf32> to vector<1x32xf32>
    %99 = vector.broadcast %98 : vector<1x32xf32> to vector<8x32xf32>
    %100 = arith.addf %96, %99 : vector<8x32xf32>
    %101 = arith.addf %82, %100 : vector<8x32xf32>
    %c0_55 = arith.constant 0 : index
    %c0_56 = arith.constant 0 : index
    %c0_57 = arith.constant 0 : index
    %102 = vector.load %arg14[%c0_55, %c0_56, %c0_57] : memref<2x1x32xf32, #tpu.memory_space<vmem>>, vector<1x1x32xf32>
    %103 = vector.shape_cast %102 : vector<1x1x32xf32> to vector<1x32xf32>
    %c0_58 = arith.constant 0 : index
    %c0_59 = arith.constant 0 : index
    %c0_60 = arith.constant 0 : index
    %104 = vector.load %arg15[%c0_58, %c0_59, %c0_60] : memref<2x1x32xf32, #tpu.memory_space<vmem>>, vector<1x1x32xf32>
    %105 = vector.shape_cast %104 : vector<1x1x32xf32> to vector<1x32xf32>
    %cst_61 = arith.constant dense<0.000000e+00> : vector<8xf32>
    %106 = vector.multi_reduction <add>, %101, %cst_61 [1] : vector<8x32xf32> to vector<8xf32>
    %107 = vector.shape_cast %106 : vector<8xf32> to vector<8x1xf32>
    %cst_62 = arith.constant 3.200000e+01 : f32
    %108 = vector.broadcast %cst_62 : f32 to vector<8x1xf32>
    %109 = arith.divf %107, %108 : vector<8x1xf32>
    %110 = vector.broadcast %109 : vector<8x1xf32> to vector<8x32xf32>
    %111 = arith.subf %101, %110 : vector<8x32xf32>
    %112 = arith.mulf %111, %111 : vector<8x32xf32>
    %cst_63 = arith.constant dense<0.000000e+00> : vector<8xf32>
    %113 = vector.multi_reduction <add>, %112, %cst_63 [1] : vector<8x32xf32> to vector<8xf32>
    %114 = vector.shape_cast %113 : vector<8xf32> to vector<8x1xf32>
    %cst_64 = arith.constant 3.200000e+01 : f32
    %115 = vector.broadcast %cst_64 : f32 to vector<8x1xf32>
    %116 = arith.divf %114, %115 : vector<8x1xf32>
    %117 = vector.broadcast %109 : vector<8x1xf32> to vector<8x32xf32>
    %118 = arith.subf %101, %117 : vector<8x32xf32>
    %cst_65 = arith.constant 9.99999974E-6 : f32
    %119 = vector.broadcast %cst_65 : f32 to vector<8x1xf32>
    %120 = arith.addf %116, %119 : vector<8x1xf32>
    %121 = math.rsqrt %120 : vector<8x1xf32>
    %122 = vector.broadcast %121 : vector<8x1xf32> to vector<8x32xf32>
    %123 = arith.mulf %118, %122 : vector<8x32xf32>
    %124 = vector.broadcast %103 : vector<1x32xf32> to vector<8x32xf32>
    %125 = arith.mulf %123, %124 : vector<8x32xf32>
    %126 = vector.broadcast %105 : vector<1x32xf32> to vector<8x32xf32>
    %127 = arith.addf %125, %126 : vector<8x32xf32>
    %128 = arith.truncf %127 : vector<8x32xf32> to vector<8x32xbf16>
    %c1 = arith.constant 1 : index
    %c0_66 = arith.constant 0 : index
    %c0_67 = arith.constant 0 : index
    %129 = vector.load %arg4[%c1, %c0_66, %c0_67] : memref<2x32x96xbf16, #tpu.memory_space<vmem>>, vector<1x32x96xbf16>
    %130 = vector.shape_cast %129 : vector<1x32x96xbf16> to vector<32x96xbf16>
    %cst_68 = arith.constant dense<0.000000e+00> : vector<8x96xf32>
    %131 = tpu.matmul %128, %130, %cst_68 {dimension_numbers = #tpu.dot_dimension_numbers<[1], [0], [0], [1], [0, 0, 1, 1], [], []>} : vector<8x32xbf16>, vector<32x96xbf16>, vector<8x96xf32> -> vector<8x96xf32>
    %c1_69 = arith.constant 1 : index
    %c0_70 = arith.constant 0 : index
    %c0_71 = arith.constant 0 : index
    %132 = vector.load %arg5[%c1_69, %c0_70, %c0_71] : memref<2x1x96xf32, #tpu.memory_space<vmem>>, vector<1x1x96xf32>
    %133 = vector.shape_cast %132 : vector<1x1x96xf32> to vector<1x96xf32>
    %134 = vector.broadcast %133 : vector<1x96xf32> to vector<8x96xf32>
    %135 = arith.addf %131, %134 : vector<8x96xf32>
    %136 = vector.extract_strided_slice %135 {offsets = [0, 0], sizes = [8, 32], strides = [1, 1]} : vector<8x96xf32> to vector<8x32xf32>
    %137 = vector.shape_cast %136 : vector<8x32xf32> to vector<8x4x8xf32>
    %138 = tpu.transpose %137, [1, 0, 2] : vector<8x4x8xf32> -> vector<4x8x8xf32>
    %139 = vector.extract_strided_slice %135 {offsets = [0, 32], sizes = [8, 32], strides = [1, 1]} : vector<8x96xf32> to vector<8x32xf32>
    %140 = vector.shape_cast %139 : vector<8x32xf32> to vector<8x4x8xf32>
    %141 = tpu.transpose %140, [1, 0, 2] : vector<8x4x8xf32> -> vector<4x8x8xf32>
    %142 = vector.extract_strided_slice %135 {offsets = [0, 64], sizes = [8, 32], strides = [1, 1]} : vector<8x96xf32> to vector<8x32xf32>
    %143 = vector.shape_cast %142 : vector<8x32xf32> to vector<8x4x8xf32>
    %144 = tpu.transpose %143, [1, 0, 2] : vector<8x4x8xf32> -> vector<4x8x8xf32>
    "tpu.trace_start"() <{level = 10 : i32, message = "hqd,hkd->hqk"}> : () -> ()
    %cst_72 = arith.constant dense<0.000000e+00> : vector<4x8x8xf32>
    %145 = tpu.matmul %138, %141, %cst_72 {dimension_numbers = #tpu.dot_dimension_numbers<[2], [2], [1], [1], [0, 0, 0, 1, 1, 1], [0], [0]>} : vector<4x8x8xf32>, vector<4x8x8xf32>, vector<4x8x8xf32> -> vector<4x8x8xf32>
    "tpu.trace_stop"() : () -> ()
    %cst_73 = arith.constant 0.353553385 : f32
    %146 = vector.broadcast %cst_73 : f32 to vector<4x8x8xf32>
    %147 = arith.mulf %145, %146 : vector<4x8x8xf32>
    %148 = vector.shape_cast %11 : vector<1x8xf32> to vector<1x1x8xf32>
    %149 = vector.broadcast %148 : vector<1x1x8xf32> to vector<4x8x8xf32>
    %150 = arith.addf %147, %149 : vector<4x8x8xf32>
    %cst_74 = arith.constant dense<0xFF800000> : vector<4x8xf32>
    %151 = vector.multi_reduction <maximumf>, %150, %cst_74 [2] : vector<4x8x8xf32> to vector<4x8xf32>
    %152 = vector.shape_cast %151 : vector<4x8xf32> to vector<4x8x1xf32>
    %153 = vector.broadcast %152 : vector<4x8x1xf32> to vector<4x8x8xf32>
    %154 = arith.subf %150, %153 : vector<4x8x8xf32>
    %155 = math.exp %154 : vector<4x8x8xf32>
    %cst_75 = arith.constant dense<0.000000e+00> : vector<4x8xf32>
    %156 = vector.multi_reduction <add>, %155, %cst_75 [2] : vector<4x8x8xf32> to vector<4x8xf32>
    %157 = vector.shape_cast %156 : vector<4x8xf32> to vector<4x8x1xf32>
    %158 = tpu.reciprocal %157 {approx = true} : vector<4x8x1xf32> -> vector<4x8x1xf32>
    %159 = vector.broadcast %158 : vector<4x8x1xf32> to vector<4x8x8xf32>
    %160 = arith.mulf %155, %159 : vector<4x8x8xf32>
    "tpu.trace_start"() <{level = 10 : i32, message = "hqk,hkd->hqd"}> : () -> ()
    %cst_76 = arith.constant dense<0.000000e+00> : vector<4x8x8xf32>
    %161 = tpu.matmul %160, %144, %cst_76 {dimension_numbers = #tpu.dot_dimension_numbers<[2], [1], [1], [2], [0, 0, 0, 1, 1, 2], [0], [0]>} : vector<4x8x8xf32>, vector<4x8x8xf32>, vector<4x8x8xf32> -> vector<4x8x8xf32>
    "tpu.trace_stop"() : () -> ()
    %162 = tpu.transpose %161, [1, 0, 2] : vector<4x8x8xf32> -> vector<8x4x8xf32>
    %163 = vector.shape_cast %162 : vector<8x4x8xf32> to vector<8x32xf32>
    %164 = arith.truncf %163 : vector<8x32xf32> to vector<8x32xbf16>
    %c1_77 = arith.constant 1 : index
    %c0_78 = arith.constant 0 : index
    %c0_79 = arith.constant 0 : index
    %165 = vector.load %arg6[%c1_77, %c0_78, %c0_79] : memref<2x32x32xbf16, #tpu.memory_space<vmem>>, vector<1x32x32xbf16>
    %166 = vector.shape_cast %165 : vector<1x32x32xbf16> to vector<32x32xbf16>
    %cst_80 = arith.constant dense<0.000000e+00> : vector<8x32xf32>
    %167 = tpu.matmul %164, %166, %cst_80 {dimension_numbers = #tpu.dot_dimension_numbers<[1], [0], [0], [1], [0, 0, 1, 1], [], []>} : vector<8x32xbf16>, vector<32x32xbf16>, vector<8x32xf32> -> vector<8x32xf32>
    %c1_81 = arith.constant 1 : index
    %c0_82 = arith.constant 0 : index
    %c0_83 = arith.constant 0 : index
    %168 = vector.load %arg7[%c1_81, %c0_82, %c0_83] : memref<2x1x32xf32, #tpu.memory_space<vmem>>, vector<1x1x32xf32>
    %169 = vector.shape_cast %168 : vector<1x1x32xf32> to vector<1x32xf32>
    %170 = vector.broadcast %169 : vector<1x32xf32> to vector<8x32xf32>
    %171 = arith.addf %167, %170 : vector<8x32xf32>
    %172 = arith.addf %127, %171 : vector<8x32xf32>
    %c1_84 = arith.constant 1 : index
    %c0_85 = arith.constant 0 : index
    %c0_86 = arith.constant 0 : index
    %173 = vector.load %arg8[%c1_84, %c0_85, %c0_86] : memref<2x1x32xf32, #tpu.memory_space<vmem>>, vector<1x1x32xf32>
    %174 = vector.shape_cast %173 : vector<1x1x32xf32> to vector<1x32xf32>
    %c1_87 = arith.constant 1 : index
    %c0_88 = arith.constant 0 : index
    %c0_89 = arith.constant 0 : index
    %175 = vector.load %arg9[%c1_87, %c0_88, %c0_89] : memref<2x1x32xf32, #tpu.memory_space<vmem>>, vector<1x1x32xf32>
    %176 = vector.shape_cast %175 : vector<1x1x32xf32> to vector<1x32xf32>
    %cst_90 = arith.constant dense<0.000000e+00> : vector<8xf32>
    %177 = vector.multi_reduction <add>, %172, %cst_90 [1] : vector<8x32xf32> to vector<8xf32>
    %178 = vector.shape_cast %177 : vector<8xf32> to vector<8x1xf32>
    %cst_91 = arith.constant 3.200000e+01 : f32
    %179 = vector.broadcast %cst_91 : f32 to vector<8x1xf32>
    %180 = arith.divf %178, %179 : vector<8x1xf32>
    %181 = vector.broadcast %180 : vector<8x1xf32> to vector<8x32xf32>
    %182 = arith.subf %172, %181 : vector<8x32xf32>
    %183 = arith.mulf %182, %182 : vector<8x32xf32>
    %cst_92 = arith.constant dense<0.000000e+00> : vector<8xf32>
    %184 = vector.multi_reduction <add>, %183, %cst_92 [1] : vector<8x32xf32> to vector<8xf32>
    %185 = vector.shape_cast %184 : vector<8xf32> to vector<8x1xf32>
    %cst_93 = arith.constant 3.200000e+01 : f32
    %186 = vector.broadcast %cst_93 : f32 to vector<8x1xf32>
    %187 = arith.divf %185, %186 : vector<8x1xf32>
    %188 = vector.broadcast %180 : vector<8x1xf32> to vector<8x32xf32>
    %189 = arith.subf %172, %188 : vector<8x32xf32>
    %cst_94 = arith.constant 9.99999974E-6 : f32
    %190 = vector.broadcast %cst_94 : f32 to vector<8x1xf32>
    %191 = arith.addf %187, %190 : vector<8x1xf32>
    %192 = math.rsqrt %191 : vector<8x1xf32>
    %193 = vector.broadcast %192 : vector<8x1xf32> to vector<8x32xf32>
    %194 = arith.mulf %189, %193 : vector<8x32xf32>
    %195 = vector.broadcast %174 : vector<1x32xf32> to vector<8x32xf32>
    %196 = arith.mulf %194, %195 : vector<8x32xf32>
    %197 = vector.broadcast %176 : vector<1x32xf32> to vector<8x32xf32>
    %198 = arith.addf %196, %197 : vector<8x32xf32>
    %199 = arith.truncf %198 : vector<8x32xf32> to vector<8x32xbf16>
    %c1_95 = arith.constant 1 : index
    %c0_96 = arith.constant 0 : index
    %c0_97 = arith.constant 0 : index
    %200 = vector.load %arg10[%c1_95, %c0_96, %c0_97] : memref<2x32x64xbf16, #tpu.memory_space<vmem>>, vector<1x32x64xbf16>
    %201 = vector.shape_cast %200 : vector<1x32x64xbf16> to vector<32x64xbf16>
    %cst_98 = arith.constant dense<0.000000e+00> : vector<8x64xf32>
    %202 = tpu.matmul %199, %201, %cst_98 {dimension_numbers = #tpu.dot_dimension_numbers<[1], [0], [0], [1], [0, 0, 1, 1], [], []>} : vector<8x32xbf16>, vector<32x64xbf16>, vector<8x64xf32> -> vector<8x64xf32>
    %c1_99 = arith.constant 1 : index
    %c0_100 = arith.constant 0 : index
    %c0_101 = arith.constant 0 : index
    %203 = vector.load %arg11[%c1_99, %c0_100, %c0_101] : memref<2x1x64xf32, #tpu.memory_space<vmem>>, vector<1x1x64xf32>
    %204 = vector.shape_cast %203 : vector<1x1x64xf32> to vector<1x64xf32>
    %205 = vector.broadcast %204 : vector<1x64xf32> to vector<8x64xf32>
    %206 = arith.addf %202, %205 : vector<8x64xf32>
    %cst_102 = arith.constant 0.000000e+00 : f32
    %207 = vector.broadcast %cst_102 : f32 to vector<8x64xf32>
    %208 = arith.maximumf %206, %207 : vector<8x64xf32>
    %209 = arith.truncf %208 : vector<8x64xf32> to vector<8x64xbf16>
    %c1_103 = arith.constant 1 : index
    %c0_104 = arith.constant 0 : index
    %c0_105 = arith.constant 0 : index
    %210 = vector.load %arg12[%c1_103, %c0_104, %c0_105] : memref<2x64x32xbf16, #tpu.memory_space<vmem>>, vector<1x64x32xbf16>
    %211 = vector.shape_cast %210 : vector<1x64x32xbf16> to vector<64x32xbf16>
    %cst_106 = arith.constant dense<0.000000e+00> : vector<8x32xf32>
    %212 = tpu.matmul %209, %211, %cst_106 {dimension_numbers = #tpu.dot_dimension_numbers<[1], [0], [0], [1], [0, 0, 1, 1], [], []>} : vector<8x64xbf16>, vector<64x32xbf16>, vector<8x32xf32> -> vector<8x32xf32>
    %c1_107 = arith.constant 1 : index
    %c0_108 = arith.constant 0 : index
    %c0_109 = arith.constant 0 : index
    %213 = vector.load %arg13[%c1_107, %c0_108, %c0_109] : memref<2x1x32xf32, #tpu.memory_space<vmem>>, vector<1x1x32xf32>
    %214 = vector.shape_cast %213 : vector<1x1x32xf32> to vector<1x32xf32>
    %215 = vector.broadcast %214 : vector<1x32xf32> to vector<8x32xf32>
    %216 = arith.addf %212, %215 : vector<8x32xf32>
    %217 = arith.addf %198, %216 : vector<8x32xf32>
    %c1_110 = arith.constant 1 : index
    %c0_111 = arith.constant 0 : index
    %c0_112 = arith.constant 0 : index
    %218 = vector.load %arg14[%c1_110, %c0_111, %c0_112] : memref<2x1x32xf32, #tpu.memory_space<vmem>>, vector<1x1x32xf32>
    %219 = vector.shape_cast %218 : vector<1x1x32xf32> to vector<1x32xf32>
    %c1_113 = arith.constant 1 : index
    %c0_114 = arith.constant 0 : index
    %c0_115 = arith.constant 0 : index
    %220 = vector.load %arg15[%c1_113, %c0_114, %c0_115] : memref<2x1x32xf32, #tpu.memory_space<vmem>>, vector<1x1x32xf32>
    %221 = vector.shape_cast %220 : vector<1x1x32xf32> to vector<1x32xf32>
    %cst_116 = arith.constant dense<0.000000e+00> : vector<8xf32>
    %222 = vector.multi_reduction <add>, %217, %cst_116 [1] : vector<8x32xf32> to vector<8xf32>
    %223 = vector.shape_cast %222 : vector<8xf32> to vector<8x1xf32>
    %cst_117 = arith.constant 3.200000e+01 : f32
    %224 = vector.broadcast %cst_117 : f32 to vector<8x1xf32>
    %225 = arith.divf %223, %224 : vector<8x1xf32>
    %226 = vector.broadcast %225 : vector<8x1xf32> to vector<8x32xf32>
    %227 = arith.subf %217, %226 : vector<8x32xf32>
    %228 = arith.mulf %227, %227 : vector<8x32xf32>
    %cst_118 = arith.constant dense<0.000000e+00> : vector<8xf32>
    %229 = vector.multi_reduction <add>, %228, %cst_118 [1] : vector<8x32xf32> to vector<8xf32>
    %230 = vector.shape_cast %229 : vector<8xf32> to vector<8x1xf32>
    %cst_119 = arith.constant 3.200000e+01 : f32
    %231 = vector.broadcast %cst_119 : f32 to vector<8x1xf32>
    %232 = arith.divf %230, %231 : vector<8x1xf32>
    %233 = vector.broadcast %225 : vector<8x1xf32> to vector<8x32xf32>
    %234 = arith.subf %217, %233 : vector<8x32xf32>
    %cst_120 = arith.constant 9.99999974E-6 : f32
    %235 = vector.broadcast %cst_120 : f32 to vector<8x1xf32>
    %236 = arith.addf %232, %235 : vector<8x1xf32>
    %237 = math.rsqrt %236 : vector<8x1xf32>
    %238 = vector.broadcast %237 : vector<8x1xf32> to vector<8x32xf32>
    %239 = arith.mulf %234, %238 : vector<8x32xf32>
    %240 = vector.broadcast %219 : vector<1x32xf32> to vector<8x32xf32>
    %241 = arith.mulf %239, %240 : vector<8x32xf32>
    %242 = vector.broadcast %221 : vector<1x32xf32> to vector<8x32xf32>
    %243 = arith.addf %241, %242 : vector<8x32xf32>
    %cst_121 = arith.constant dense<0.000000e+00> : vector<32xf32>
    %244 = vector.multi_reduction <add>, %243, %cst_121 [0] : vector<8x32xf32> to vector<32xf32>
    %245 = vector.shape_cast %244 : vector<32xf32> to vector<1x32xf32>
    %246 = arith.truncf %245 : vector<1x32xf32> to vector<1x32xbf16>
    %c0_122 = arith.constant 0 : index
    %c0_123 = arith.constant 0 : index
    %247 = vector.load %arg16[%c0_122, %c0_123] : memref<32x32xbf16, #tpu.memory_space<vmem>>, vector<32x32xbf16>
    %cst_124 = arith.constant dense<0.000000e+00> : vector<1x32xf32>
    %248 = tpu.matmul %246, %247, %cst_124 {dimension_numbers = #tpu.dot_dimension_numbers<[1], [0], [0], [1], [0, 0, 1, 1], [], []>} : vector<1x32xbf16>, vector<32x32xbf16>, vector<1x32xf32> -> vector<1x32xf32>
    %c0_125 = arith.constant 0 : index
    %c0_126 = arith.constant 0 : index
    %c0_127 = arith.constant 0 : index
    %249 = vector.load %arg17[%c0_125, %c0_126, %c0_127] : memref<1x1x32xf32, #tpu.memory_space<vmem>>, vector<1x1x32xf32>
    %250 = vector.shape_cast %249 : vector<1x1x32xf32> to vector<1x32xf32>
    %251 = vector.shape_cast %248 : vector<1x32xf32> to vector<1x1x32xf32>
    tpu.vector_store %arg17[%c0_125, %c0_126, %c0_127], %251 {strides = array<i32>} : memref<1x1x32xf32, #tpu.memory_space<vmem>>, vector<1x1x32xf32>,
    return
  }
  func.func @transform_0(%arg0: i32) -> (i32, i32, i32) {
    %c0_i32 = arith.constant 0 : i32
    %c0_i32_0 = arith.constant 0 : i32
    %c0_i32_1 = arith.constant 0 : i32
    return %arg0, %c0_i32, %c0_i32_0 : i32, i32, i32
  }
  func.func @transform_1(%arg0: i32) -> (i32, i32, i32) {
    %c0_i32 = arith.constant 0 : i32
    %c0_i32_0 = arith.constant 0 : i32
    %c0_i32_1 = arith.constant 0 : i32
    return %arg0, %c0_i32, %c0_i32_0 : i32, i32, i32
  }
  func.func @transform_2(%arg0: i32) -> (i32, i32, i32) {
    %c0_i32 = arith.constant 0 : i32
    %c0_i32_0 = arith.constant 0 : i32
    %c0_i32_1 = arith.constant 0 : i32
    return %arg0, %c0_i32, %c0_i32_0 : i32, i32, i32
  }
  func.func @transform_3(%arg0: i32) -> (i32, i32, i32) {
    %c0_i32 = arith.constant 0 : i32
    %c0_i32_0 = arith.constant 0 : i32
    %c0_i32_1 = arith.constant 0 : i32
    %c0_i32_2 = arith.constant 0 : i32
    return %c0_i32, %c0_i32_0, %c0_i32_1 : i32, i32, i32
  }
  func.func @transform_4(%arg0: i32) -> (i32, i32, i32) {
    %c0_i32 = arith.constant 0 : i32
    %c0_i32_0 = arith.constant 0 : i32
    %c0_i32_1 = arith.constant 0 : i32
    %c0_i32_2 = arith.constant 0 : i32
    return %c0_i32, %c0_i32_0, %c0_i32_1 : i32, i32, i32
  }
  func.func @transform_5(%arg0: i32) -> (i32, i32, i32) {
    %c0_i32 = arith.constant 0 : i32
    %c0_i32_0 = arith.constant 0 : i32
    %c0_i32_1 = arith.constant 0 : i32
    %c0_i32_2 = arith.constant 0 : i32
    return %c0_i32, %c0_i32_0, %c0_i32_1 : i32, i32, i32
  }
  func.func @transform_6(%arg0: i32) -> (i32, i32, i32) {
    %c0_i32 = arith.constant 0 : i32
    %c0_i32_0 = arith.constant 0 : i32
    %c0_i32_1 = arith.constant 0 : i32
    %c0_i32_2 = arith.constant 0 : i32
    return %c0_i32, %c0_i32_0, %c0_i32_1 : i32, i32, i32
  }
  func.func @transform_7(%arg0: i32) -> (i32, i32, i32) {
    %c0_i32 = arith.constant 0 : i32
    %c0_i32_0 = arith.constant 0 : i32
    %c0_i32_1 = arith.constant 0 : i32
    %c0_i32_2 = arith.constant 0 : i32
    return %c0_i32, %c0_i32_0, %c0_i32_1 : i32, i32, i32
  }
  func.func @transform_8(%arg0: i32) -> (i32, i32, i32) {
    %c0_i32 = arith.constant 0 : i32
    %c0_i32_0 = arith.constant 0 : i32
    %c0_i32_1 = arith.constant 0 : i32
    %c0_i32_2 = arith.constant 0 : i32
    return %c0_i32, %c0_i32_0, %c0_i32_1 : i32, i32, i32
  }
  func.func @transform_9(%arg0: i32) -> (i32, i32, i32) {
    %c0_i32 = arith.constant 0 : i32
    %c0_i32_0 = arith.constant 0 : i32
    %c0_i32_1 = arith.constant 0 : i32
    %c0_i32_2 = arith.constant 0 : i32
    return %c0_i32, %c0_i32_0, %c0_i32_1 : i32, i32, i32
  }
  func.func @transform_10(%arg0: i32) -> (i32, i32, i32) {
    %c0_i32 = arith.constant 0 : i32
    %c0_i32_0 = arith.constant 0 : i32
    %c0_i32_1 = arith.constant 0 : i32
    %c0_i32_2 = arith.constant 0 : i32
    return %c0_i32, %c0_i32_0, %c0_i32_1 : i32, i32, i32
  }
  func.func @transform_11(%arg0: i32) -> (i32, i32, i32) {
    %c0_i32 = arith.constant 0 : i32
    %c0_i32_0 = arith.constant 0 : i32
    %c0_i32_1 = arith.constant 0 : i32
    %c0_i32_2 = arith.constant 0 : i32
    return %c0_i32, %c0_i32_0, %c0_i32_1 : i32, i32, i32
  }
  func.func @transform_12(%arg0: i32) -> (i32, i32, i32) {
    %c0_i32 = arith.constant 0 : i32
    %c0_i32_0 = arith.constant 0 : i32
    %c0_i32_1 = arith.constant 0 : i32
    %c0_i32_2 = arith.constant 0 : i32
    return %c0_i32, %c0_i32_0, %c0_i32_1 : i32, i32, i32
  }
  func.func @transform_13(%arg0: i32) -> (i32, i32, i32) {
    %c0_i32 = arith.constant 0 : i32
    %c0_i32_0 = arith.constant 0 : i32
    %c0_i32_1 = arith.constant 0 : i32
    %c0_i32_2 = arith.constant 0 : i32
    return %c0_i32, %c0_i32_0, %c0_i32_1 : i32, i32, i32
  }
  func.func @transform_14(%arg0: i32) -> (i32, i32, i32) {
    %c0_i32 = arith.constant 0 : i32
    %c0_i32_0 = arith.constant 0 : i32
    %c0_i32_1 = arith.constant 0 : i32
    %c0_i32_2 = arith.constant 0 : i32
    return %c0_i32, %c0_i32_0, %c0_i32_1 : i32, i32, i32
  }
  func.func @transform_15(%arg0: i32) -> (i32, i32) {
    %c0_i32 = arith.constant 0 : i32
    %c0_i32_0 = arith.constant 0 : i32
    %c0_i32_1 = arith.constant 0 : i32
    return %c0_i32, %c0_i32_0 : i32, i32
  }
  func.func @transform_16(%arg0: i32) -> (i32, i32, i32) {
    %c0_i32 = arith.constant 0 : i32
    %c0_i32_0 = arith.constant 0 : i32
    %c0_i32_1 = arith.constant 0 : i32
    return %arg0, %c0_i32, %c0_i32_0 : i32, i32, i32
  }
}

</mosaic_0001>

<llo_original>
// kernel: set_transformer_forward.1
$region0: #{set_transformer_forward.1}
  #allocation0 [shape = 'u32[]', space=smem, size = 0x4, offset = 0x4, fixed_abs, tag = 'smem constant byte address 0x4 - core index']
  #allocation1 [shape = 'u32[144,128]{1,0:T(1,128)}', space=vmem, size = 0x12000, scoped, tag = 'internal scratch']
  %s0 = inlined_call_operand.hbm [shape: f32[2,8,32], index: 0, kind: input, shape index: {}]
  %s1 = inlined_call_operand.hbm [shape: f32[2,8,32], index: 1, kind: input, shape index: {}]
  %s2 = inlined_call_operand.vmem [shape: f32[2,1,8], index: 2, kind: input, shape index: {}]
  %s3 = inlined_call_operand.vmem [shape: bf16[2,32,96], index: 3, kind: input, shape index: {}]
  %s4 = inlined_call_operand.vmem [shape: f32[2,1,96], index: 4, kind: input, shape index: {}]
  %s5 = inlined_call_operand.vmem [shape: bf16[2,32,32], index: 5, kind: input, shape index: {}]
  %s6 = inlined_call_operand.vmem [shape: f32[2,1,32], index: 6, kind: input, shape index: {}]
  %s7 = inlined_call_operand.vmem [shape: f32[2,1,32], index: 7, kind: input, shape index: {}]
  %s8 = inlined_call_operand.vmem [shape: f32[2,1,32], index: 8, kind: input, shape index: {}]
  %s9 = inlined_call_operand.vmem [shape: bf16[2,32,64], index: 9, kind: input, shape index: {}]
  %s10 = inlined_call_operand.hbm [shape: f32[2,1,64], index: 10, kind: input, shape index: {}]
  %s11 = inlined_call_operand.vmem [shape: bf16[2,64,32], index: 11, kind: input, shape index: {}]
  %s12 = inlined_call_operand.hbm [shape: f32[2,1,32], index: 12, kind: input, shape index: {}]
  %s13 = inlined_call_operand.vmem [shape: f32[2,1,32], index: 13, kind: input, shape index: {}]
  %s14 = inlined_call_operand.vmem [shape: f32[2,1,32], index: 14, kind: input, shape index: {}]
  %s15 = inlined_call_operand.vmem [shape: bf16[32,32], index: 15, kind: input, shape index: {}]
  %s16 = inlined_call_operand.vmem [shape: f32[2,1,32], index: 16, kind: output, shape index: {}]
  %s17 = sld [smem:[#allocation0]]
  $region113: #{set_transformer_forward.1} parent=0
    _
  %s19 = ssub.s32 1, %s17
  %s20 = scalar_select 0, %s19, %s17
  $region1: #{set_transformer_forward.1} parent=0
    #allocation2 [shape = 'u8[8192]{0}', space=vmem, size = 0x2000, scoped, tag = 'input window, operand 0']
    #allocation3 [shape = 's32[2]{0}', space=sflag, size = 0x8, scoped, tag = 'scoped memory for set_transformer_forward.1']
    #allocation4 [shape = 'u8[8192]{0}', space=vmem, size = 0x2000, scoped, tag = 'input window, operand 1']
    #allocation5 [shape = 's32[2]{0}', space=sflag, size = 0x8, scoped, tag = 'scoped memory for set_transformer_forward.1']
    #allocation6 [shape = 'u8[1024]{0}', space=vmem, size = 0x400, scoped, tag = 'input window, operand 10, single buffered']
    #allocation7 [shape = 'u8[1024]{0}', space=vmem, size = 0x400, scoped, tag = 'input window, operand 12, single buffered']
    #allocation8 [shape = 's32[1]{0}', space=sflag, size = 0x4, scoped, tag = 'scoped memory for set_transformer_forward.1']
    %21 = vsyncpa [#allocation3], 0
    %s22 = scalar_lea.sflag [#allocation3], 1
    %23 = vsyncpa %s22, 0
    %24 = vsyncpa [#allocation5], 0
    %s25 = scalar_lea.sflag [#allocation5], 1
    %26 = vsyncpa %s25, 0
    %27 = vsyncpa [#allocation8], 0
    loop: start=0, step=1, limit=4
    $region2: #{set_transformer_forward.1} parent=1 // loop_pre_header
      _
    $region3: #{set_transformer_forward.1} parent=1 // loop_header
      %s29 = sphi 0, %s33
      %p30 = scmp.ge.s32.totalorder %s29, 4
      %s39 = sphi 0, %s41
      %s42 = sphi 0, %s39
      %s43 = sphi 0, %s42
      %s59 = sphi 0, %s43
      %s65 = sphi 0, %s67
      %s68 = sphi 0, %s65
      %s69 = sphi 0, %s68
      %s85 = sphi 0, %s69
      %s91 = sphi 0, %s93
      %s94 = sphi 0, %s91
      %s95 = sphi 0, %s94
      %s111 = sphi 0, %s95
      %s115 = sphi 0, %s115
      %s117 = sphi 0, %s115
      %s118 = sphi 0, %s117
      %s132 = sphi 0, %s118
      %s136 = sphi 0, %s136
      %s138 = sphi 0, %s136
      %s139 = sphi 0, %s138
      %s153 = sphi 0, %s139
      %s157 = sphi 0, %s157
      %s159 = sphi 0, %s157
      %s160 = sphi 0, %s159
      %s174 = sphi 0, %s160
      %s178 = sphi 0, %s178
      %s180 = sphi 0, %s178
      %s181 = sphi 0, %s180
      %s195 = sphi 0, %s181
      %s199 = sphi 0, %s199
      %s201 = sphi 0, %s199
      %s202 = sphi 0, %s201
      %s216 = sphi 0, %s202
      %s220 = sphi 0, %s220
      %s222 = sphi 0, %s220
      %s223 = sphi 0, %s222
      %s237 = sphi 0, %s223
      %s241 = sphi 0, %s241
      %s243 = sphi 0, %s241
      %s244 = sphi 0, %s243
      %s258 = sphi 0, %s244
      %s262 = sphi 0, %s262
      %s264 = sphi 0, %s262
      %s265 = sphi 0, %s264
      %s279 = sphi 0, %s265
      %s283 = sphi 0, %s283
      %s285 = sphi 0, %s283
      %s286 = sphi 0, %s285
      %s300 = sphi 0, %s286
      %s304 = sphi 0, %s304
      %s306 = sphi 0, %s304
      %s307 = sphi 0, %s306
      %s321 = sphi 0, %s307
      %s325 = sphi 0, %s325
      %s327 = sphi 0, %s325
      %s328 = sphi 0, %s327
      %s342 = sphi 0, %s328
      %s346 = sphi 0, %s346
      %s348 = sphi 0, %s346
      %s349 = sphi 0, %s348
      %s363 = sphi 0, %s349
      %s367 = sphi 0, %s367
      %s369 = sphi 0, %s367
      %s370 = sphi 0, %s369
      %s384 = sphi 0, %s370
      %s390 = sphi 0, %s392
      %s393 = sphi 0, %s390
      %s394 = sphi 0, %s393
      %s410 = sphi 0, %s394
    $region4: #{set_transformer_forward.1} parent=1 // loop_header_branch
      %32 = sbr.rel (%p30) target = $region8
    $region5: #{set_transformer_forward.1} parent=1 // loop_body
      %s34 = ssub.s32 %s29, 1
      %s35 = ssub.s32 %s29, 2
      %s36 = sadd.s32 %s29, 1
      %s37 = ssub.s32 %s29, %s36
      %p38 = scmp.eq.s32.totalorder %s37, 0
      %s40 = sadd.s32 %s39, 1
      %s41 = scalar_select %p38, %s39, %s40
      %p44 = pneg %p38
      %p45 = scmp.eq.s32.totalorder %s29, 1
      %p46 = por %p44, %p45
      %p47 = scmp.ne.s32.totalorder %s39, %s42
      %p48 = scmp.eq.s32.totalorder %s29, 0
      %p49 = por %p47, %p48
      %p50 = scmp.ne.s32.totalorder %s39, %s42
      %p51 = scmp.eq.s32.totalorder %s34, 1
      %p52 = por %p50, %p51
      %p53 = scmp.ne.s32.totalorder %s42, %s43
      %p54 = scmp.eq.s32.totalorder %s34, 0
      %p55 = por %p53, %p54
      %p56 = scmp.ne.s32.totalorder %s42, %s43
      %p57 = scmp.eq.s32.totalorder %s35, 1
      %p58 = por %p56, %p57
      %p60 = scmp.ne.s32.totalorder %s43, %s59
      %p61 = scmp.eq.s32.totalorder %s35, 0
      %p62 = por %p60, %p61
      %s63 = ssub.s32 %s29, %s36
      %p64 = scmp.eq.s32.totalorder %s63, 0
      %s66 = sadd.s32 %s65, 1
      %s67 = scalar_select %p64, %s65, %s66
      %p70 = pneg %p64
      %p71 = scmp.eq.s32.totalorder %s29, 1
      %p72 = por %p70, %p71
      %p73 = scmp.ne.s32.totalorder %s65, %s68
      %p74 = scmp.eq.s32.totalorder %s29, 0
      %p75 = por %p73, %p74
      %p76 = scmp.ne.s32.totalorder %s65, %s68
      %p77 = scmp.eq.s32.totalorder %s34, 1
      %p78 = por %p76, %p77
      %p79 = scmp.ne.s32.totalorder %s68, %s69
      %p80 = scmp.eq.s32.totalorder %s34, 0
      %p81 = por %p79, %p80
      %p82 = scmp.ne.s32.totalorder %s68, %s69
      %p83 = scmp.eq.s32.totalorder %s35, 1
      %p84 = por %p82, %p83
      %p86 = scmp.ne.s32.totalorder %s69, %s85
      %p87 = scmp.eq.s32.totalorder %s35, 0
      %p88 = por %p86, %p87
      %s89 = ssub.s32 %s29, %s36
      %p90 = scmp.eq.s32.totalorder %s89, 0
      %s92 = sadd.s32 %s91, 1
      %s93 = scalar_select %p90, %s91, %s92
      %p96 = pneg %p90
      %p97 = scmp.eq.s32.totalorder %s29, 1
      %p98 = por %p96, %p97
      %p99 = scmp.ne.s32.totalorder %s91, %s94
      %p100 = scmp.eq.s32.totalorder %s29, 0
      %p101 = por %p99, %p100
      %p102 = scmp.ne.s32.totalorder %s91, %s94
      %p103 = scmp.eq.s32.totalorder %s34, 1
      %p104 = por %p102, %p103
      %p105 = scmp.ne.s32.totalorder %s94, %s95
      %p106 = scmp.eq.s32.totalorder %s34, 0
      %p107 = por %p105, %p106
      %p108 = scmp.ne.s32.totalorder %s94, %s95
      %p109 = scmp.eq.s32.totalorder %s35, 1
      %p110 = por %p108, %p109
      %p112 = scmp.ne.s32.totalorder %s95, %s111
      %p113 = scmp.eq.s32.totalorder %s35, 0
      %p114 = por %p112, %p113
      %s116 = sadd.s32 %s115, 1
      %p119 = scmp.eq.s32.totalorder %s29, 1
      %p120 = scmp.ne.s32.totalorder %s115, %s117
      %p121 = scmp.eq.s32.totalorder %s29, 0
      %p122 = por %p120, %p121
      %p123 = scmp.ne.s32.totalorder %s115, %s117
      %p124 = scmp.eq.s32.totalorder %s34, 1
      %p125 = por %p123, %p124
      %p126 = scmp.ne.s32.totalorder %s117, %s118
      %p127 = scmp.eq.s32.totalorder %s34, 0
      %p128 = por %p126, %p127
      %p129 = scmp.ne.s32.totalorder %s117, %s118
      %p130 = scmp.eq.s32.totalorder %s35, 1
      %p131 = por %p129, %p130
      %p133 = scmp.ne.s32.totalorder %s118, %s132
      %p134 = scmp.eq.s32.totalorder %s35, 0
      %p135 = por %p133, %p134
      %s137 = sadd.s32 %s136, 1
      %p140 = scmp.eq.s32.totalorder %s29, 1
      %p141 = scmp.ne.s32.totalorder %s136, %s138
      %p142 = scmp.eq.s32.totalorder %s29, 0
      %p143 = por %p141, %p142
      %p144 = scmp.ne.s32.totalorder %s136, %s138
      %p145 = scmp.eq.s32.totalorder %s34, 1
      %p146 = por %p144, %p145
      %p147 = scmp.ne.s32.totalorder %s138, %s139
      %p148 = scmp.eq.s32.totalorder %s34, 0
      %p149 = por %p147, %p148
      %p150 = scmp.ne.s32.totalorder %s138, %s139
      %p151 = scmp.eq.s32.totalorder %s35, 1
      %p152 = por %p150, %p151
      %p154 = scmp.ne.s32.totalorder %s139, %s153
      %p155 = scmp.eq.s32.totalorder %s35, 0
      %p156 = por %p154, %p155
      %s158 = sadd.s32 %s157, 1
      %p161 = scmp.eq.s32.totalorder %s29, 1
      %p162 = scmp.ne.s32.totalorder %s157, %s159
      %p163 = scmp.eq.s32.totalorder %s29, 0
      %p164 = por %p162, %p163
      %p165 = scmp.ne.s32.totalorder %s157, %s159
      %p166 = scmp.eq.s32.totalorder %s34, 1
      %p167 = por %p165, %p166
      %p168 = scmp.ne.s32.totalorder %s159, %s160
      %p169 = scmp.eq.s32.totalorder %s34, 0
      %p170 = por %p168, %p169
      %p171 = scmp.ne.s32.totalorder %s159, %s160
      %p172 = scmp.eq.s32.totalorder %s35, 1
      %p173 = por %p171, %p172
      %p175 = scmp.ne.s32.totalorder %s160, %s174
      %p176 = scmp.eq.s32.totalorder %s35, 0
      %p177 = por %p175, %p176
      %s179 = sadd.s32 %s178, 1
      %p182 = scmp.eq.s32.totalorder %s29, 1
      %p183 = scmp.ne.s32.totalorder %s178, %s180
      %p184 = scmp.eq.s32.totalorder %s29, 0
      %p185 = por %p183, %p184
      %p186 = scmp.ne.s32.totalorder %s178, %s180
      %p187 = scmp.eq.s32.totalorder %s34, 1
      %p188 = por %p186, %p187
      %p189 = scmp.ne.s32.totalorder %s180, %s181
      %p190 = scmp.eq.s32.totalorder %s34, 0
      %p191 = por %p189, %p190
      %p192 = scmp.ne.s32.totalorder %s180, %s181
      %p193 = scmp.eq.s32.totalorder %s35, 1
      %p194 = por %p192, %p193
      %p196 = scmp.ne.s32.totalorder %s181, %s195
      %p197 = scmp.eq.s32.totalorder %s35, 0
      %p198 = por %p196, %p197
      %s200 = sadd.s32 %s199, 1
      %p203 = scmp.eq.s32.totalorder %s29, 1
      %p204 = scmp.ne.s32.totalorder %s199, %s201
      %p205 = scmp.eq.s32.totalorder %s29, 0
      %p206 = por %p204, %p205
      %p207 = scmp.ne.s32.totalorder %s199, %s201
      %p208 = scmp.eq.s32.totalorder %s34, 1
      %p209 = por %p207, %p208
      %p210 = scmp.ne.s32.totalorder %s201, %s202
      %p211 = scmp.eq.s32.totalorder %s34, 0
      %p212 = por %p210, %p211
      %p213 = scmp.ne.s32.totalorder %s201, %s202
      %p214 = scmp.eq.s32.totalorder %s35, 1
      %p215 = por %p213, %p214
      %p217 = scmp.ne.s32.totalorder %s202, %s216
      %p218 = scmp.eq.s32.totalorder %s35, 0
      %p219 = por %p217, %p218
      %s221 = sadd.s32 %s220, 1
      %p224 = scmp.eq.s32.totalorder %s29, 1
      %p225 = scmp.ne.s32.totalorder %s220, %s222
      %p226 = scmp.eq.s32.totalorder %s29, 0
      %p227 = por %p225, %p226
      %p228 = scmp.ne.s32.totalorder %s220, %s222
      %p229 = scmp.eq.s32.totalorder %s34, 1
      %p230 = por %p228, %p229
      %p231 = scmp.ne.s32.totalorder %s222, %s223
      %p232 = scmp.eq.s32.totalorder %s34, 0
      %p233 = por %p231, %p232
      %p234 = scmp.ne.s32.totalorder %s222, %s223
      %p235 = scmp.eq.s32.totalorder %s35, 1
      %p236 = por %p234, %p235
      %p238 = scmp.ne.s32.totalorder %s223, %s237
      %p239 = scmp.eq.s32.totalorder %s35, 0
      %p240 = por %p238, %p239
      %s242 = sadd.s32 %s241, 1
      %p245 = scmp.eq.s32.totalorder %s29, 1
      %p246 = scmp.ne.s32.totalorder %s241, %s243
      %p247 = scmp.eq.s32.totalorder %s29, 0
      %p248 = por %p246, %p247
      %p249 = scmp.ne.s32.totalorder %s241, %s243
      %p250 = scmp.eq.s32.totalorder %s34, 1
      %p251 = por %p249, %p250
      %p252 = scmp.ne.s32.totalorder %s243, %s244
      %p253 = scmp.eq.s32.totalorder %s34, 0
      %p254 = por %p252, %p253
      %p255 = scmp.ne.s32.totalorder %s243, %s244
      %p256 = scmp.eq.s32.totalorder %s35, 1
      %p257 = por %p255, %p256
      %p259 = scmp.ne.s32.totalorder %s244, %s258
      %p260 = scmp.eq.s32.totalorder %s35, 0
      %p261 = por %p259, %p260
      %s263 = sadd.s32 %s262, 1
      %p266 = scmp.eq.s32.totalorder %s29, 1
      %p267 = scmp.ne.s32.totalorder %s262, %s264
      %p268 = scmp.eq.s32.totalorder %s29, 0
      %p269 = por %p267, %p268
      %p270 = scmp.ne.s32.totalorder %s262, %s264
      %p271 = scmp.eq.s32.totalorder %s34, 1
      %p272 = por %p270, %p271
      %p273 = scmp.ne.s32.totalorder %s264, %s265
      %p274 = scmp.eq.s32.totalorder %s34, 0
      %p275 = por %p273, %p274
      %p276 = scmp.ne.s32.totalorder %s264, %s265
      %p277 = scmp.eq.s32.totalorder %s35, 1
      %p278 = por %p276, %p277
      %p280 = scmp.ne.s32.totalorder %s265, %s279
      %p281 = scmp.eq.s32.totalorder %s35, 0
      %p282 = por %p280, %p281
      %s284 = sadd.s32 %s283, 1
      %p287 = scmp.eq.s32.totalorder %s29, 1
      %p288 = scmp.ne.s32.totalorder %s283, %s285
      %p289 = scmp.eq.s32.totalorder %s29, 0
      %p290 = por %p288, %p289
      %p291 = scmp.ne.s32.totalorder %s283, %s285
      %p292 = scmp.eq.s32.totalorder %s34, 1
      %p293 = por %p291, %p292
      %p294 = scmp.ne.s32.totalorder %s285, %s286
      %p295 = scmp.eq.s32.totalorder %s34, 0
      %p296 = por %p294, %p295
      %p297 = scmp.ne.s32.totalorder %s285, %s286
      %p298 = scmp.eq.s32.totalorder %s35, 1
      %p299 = por %p297, %p298
      %p301 = scmp.ne.s32.totalorder %s286, %s300
      %p302 = scmp.eq.s32.totalorder %s35, 0
      %p303 = por %p301, %p302
      %s305 = sadd.s32 %s304, 1
      %p308 = scmp.eq.s32.totalorder %s29, 1
      %p309 = scmp.ne.s32.totalorder %s304, %s306
      %p310 = scmp.eq.s32.totalorder %s29, 0
      %p311 = por %p309, %p310
      %p312 = scmp.ne.s32.totalorder %s304, %s306
      %p313 = scmp.eq.s32.totalorder %s34, 1
      %p314 = por %p312, %p313
      %p315 = scmp.ne.s32.totalorder %s306, %s307
      %p316 = scmp.eq.s32.totalorder %s34, 0
      %p317 = por %p315, %p316
      %p318 = scmp.ne.s32.totalorder %s306, %s307
      %p319 = scmp.eq.s32.totalorder %s35, 1
      %p320 = por %p318, %p319
      %p322 = scmp.ne.s32.totalorder %s307, %s321
      %p323 = scmp.eq.s32.totalorder %s35, 0
      %p324 = por %p322, %p323
      %s326 = sadd.s32 %s325, 1
      %p329 = scmp.eq.s32.totalorder %s29, 1
      %p330 = scmp.ne.s32.totalorder %s325, %s327
      %p331 = scmp.eq.s32.totalorder %s29, 0
      %p332 = por %p330, %p331
      %p333 = scmp.ne.s32.totalorder %s325, %s327
      %p334 = scmp.eq.s32.totalorder %s34, 1
      %p335 = por %p333, %p334
      %p336 = scmp.ne.s32.totalorder %s327, %s328
      %p337 = scmp.eq.s32.totalorder %s34, 0
      %p338 = por %p336, %p337
      %p339 = scmp.ne.s32.totalorder %s327, %s328
      %p340 = scmp.eq.s32.totalorder %s35, 1
      %p341 = por %p339, %p340
      %p343 = scmp.ne.s32.totalorder %s328, %s342
      %p344 = scmp.eq.s32.totalorder %s35, 0
      %p345 = por %p343, %p344
      %s347 = sadd.s32 %s346, 1
      %p350 = scmp.eq.s32.totalorder %s29, 1
      %p351 = scmp.ne.s32.totalorder %s346, %s348
      %p352 = scmp.eq.s32.totalorder %s29, 0
      %p353 = por %p351, %p352
      %p354 = scmp.ne.s32.totalorder %s346, %s348
      %p355 = scmp.eq.s32.totalorder %s34, 1
      %p356 = por %p354, %p355
      %p357 = scmp.ne.s32.totalorder %s348, %s349
      %p358 = scmp.eq.s32.totalorder %s34, 0
      %p359 = por %p357, %p358
      %p360 = scmp.ne.s32.totalorder %s348, %s349
      %p361 = scmp.eq.s32.totalorder %s35, 1
      %p362 = por %p360, %p361
      %p364 = scmp.ne.s32.totalorder %s349, %s363
      %p365 = scmp.eq.s32.totalorder %s35, 0
      %p366 = por %p364, %p365
      %s368 = sadd.s32 %s367, 1
      %p371 = scmp.eq.s32.totalorder %s29, 1
      %p372 = scmp.ne.s32.totalorder %s367, %s369
      %p373 = scmp.eq.s32.totalorder %s29, 0
      %p374 = por %p372, %p373
      %p375 = scmp.ne.s32.totalorder %s367, %s369
      %p376 = scmp.eq.s32.totalorder %s34, 1
      %p377 = por %p375, %p376
      %p378 = scmp.ne.s32.totalorder %s369, %s370
      %p379 = scmp.eq.s32.totalorder %s34, 0
      %p380 = por %p378, %p379
      %p381 = scmp.ne.s32.totalorder %s369, %s370
      %p382 = scmp.eq.s32.totalorder %s35, 1
      %p383 = por %p381, %p382
      %p385 = scmp.ne.s32.totalorder %s370, %s384
      %p386 = scmp.eq.s32.totalorder %s35, 0
      %p387 = por %p385, %p386
      %s388 = ssub.s32 %s29, %s36
      %p389 = scmp.eq.s32.totalorder %s388, 0
      %s391 = sadd.s32 %s390, 1
      %s392 = scalar_select %p389, %s390, %s391
      %p395 = pneg %p389
      %p396 = scmp.eq.s32.totalorder %s29, 1
      %p397 = por %p395, %p396
      %p398 = scmp.ne.s32.totalorder %s390, %s393
      %p399 = scmp.eq.s32.totalorder %s29, 0
      %p400 = por %p398, %p399
      %p401 = scmp.ne.s32.totalorder %s390, %s393
      %p402 = scmp.eq.s32.totalorder %s34, 1
      %p403 = por %p401, %p402
      %p404 = scmp.ne.s32.totalorder %s393, %s394
      %p405 = scmp.eq.s32.totalorder %s34, 0
      %p406 = por %p404, %p405
      %p407 = scmp.ne.s32.totalorder %s393, %s394
      %p408 = scmp.eq.s32.totalorder %s35, 1
      %p409 = por %p407, %p408
      %p411 = scmp.ne.s32.totalorder %s394, %s410
      %p412 = scmp.eq.s32.totalorder %s35, 0
      %p413 = por %p411, %p412
      %p414 = scmp.le.s32.totalorder 1, %s29
      %p415 = scmp.lt.s32.totalorder %s29, 3
      %p416 = pnand %p414, %p415
      %p417 = pneg %p416
      // Predicated region
      $region9: #{set_transformer_forward.1} parent=5 // pred_check
        _
      $region10: #{set_transformer_forward.1} parent=5 // pred_check_branch
        %419 = sbr.rel (%p416) target = $region12
      $region11: #{set_transformer_forward.1} parent=5 // pred_region
        %s420 = ssub.s32 %s29, 1
        // Predicated region
        $region13: #{set_transformer_forward.1} parent=11 // pred_check
          %p421 = pneg %p128
        $region14: #{set_transformer_forward.1} parent=11 // pred_check_branch
          %423 = sbr.rel (%p421) target = $region16
        $region15: #{set_transformer_forward.1} parent=11 // pred_region
          _
        $region16: #{set_transformer_forward.1} parent=11 // pred_fallthru
          _
        // Predicated region
        $region17: #{set_transformer_forward.1} parent=11 // pred_check
          %p424 = pneg %p149
        $region18: #{set_transformer_forward.1} parent=11 // pred_check_branch
          %426 = sbr.rel (%p424) target = $region20
        $region19: #{set_transformer_forward.1} parent=11 // pred_region
          _
        $region20: #{set_transformer_forward.1} parent=11 // pred_fallthru
          _
        // Predicated region
        $region21: #{set_transformer_forward.1} parent=11 // pred_check
          %p427 = pneg %p170
        $region22: #{set_transformer_forward.1} parent=11 // pred_check_branch
          %429 = sbr.rel (%p427) target = $region24
        $region23: #{set_transformer_forward.1} parent=11 // pred_region
          _
        $region24: #{set_transformer_forward.1} parent=11 // pred_fallthru
          _
        // Predicated region
        $region25: #{set_transformer_forward.1} parent=11 // pred_check
          %p430 = pneg %p191
        $region26: #{set_transformer_forward.1} parent=11 // pred_check_branch
          %432 = sbr.rel (%p430) target = $region28
        $region27: #{set_transformer_forward.1} parent=11 // pred_region
          _
        $region28: #{set_transformer_forward.1} parent=11 // pred_fallthru
          _
        // Predicated region
        $region29: #{set_transformer_forward.1} parent=11 // pred_check
          %p433 = pneg %p212
        $region30: #{set_transformer_forward.1} parent=11 // pred_check_branch
          %435 = sbr.rel (%p433) target = $region32
        $region31: #{set_transformer_forward.1} parent=11 // pred_region
          _
        $region32: #{set_transformer_forward.1} parent=11 // pred_fallthru
          _
        // Predicated region
        $region33: #{set_transformer_forward.1} parent=11 // pred_check
          %p436 = pneg %p233
        $region34: #{set_transformer_forward.1} parent=11 // pred_check_branch
          %438 = sbr.rel (%p436) target = $region36
        $region35: #{set_transformer_forward.1} parent=11 // pred_region
          _
        $region36: #{set_transformer_forward.1} parent=11 // pred_fallthru
          _
        // Predicated region
        $region37: #{set_transformer_forward.1} parent=11 // pred_check
          %p439 = pneg %p254
        $region38: #{set_transformer_forward.1} parent=11 // pred_check_branch
          %441 = sbr.rel (%p439) target = $region40
        $region39: #{set_transformer_forward.1} parent=11 // pred_region
          _
        $region40: #{set_transformer_forward.1} parent=11 // pred_fallthru
          _
        // Predicated region
        $region41: #{set_transformer_forward.1} parent=11 // pred_check
          %p442 = pneg %p275
        $region42: #{set_transformer_forward.1} parent=11 // pred_check_branch
          %444 = sbr.rel (%p442) target = $region44
        $region43: #{set_transformer_forward.1} parent=11 // pred_region
          %s446 = ssub.s32 32, 32
          %447 = vsyncadd [#allocation5], %s446
          %s448 = sshll.u32 [#allocation6], 4
          %s449 = int_to_ptr.vmem [resolvable:$true] %s448
          %454 = dma.hbm_to_vmem [thread:$0]  %s10, 32, %s449, [#allocation5], 16, 16, 1
        $region44: #{set_transformer_forward.1} parent=11 // pred_fallthru
          _
        // Predicated region
        $region45: #{set_transformer_forward.1} parent=11 // pred_check
          %p455 = pneg %p296
        $region46: #{set_transformer_forward.1} parent=11 // pred_check_branch
          %457 = sbr.rel (%p455) target = $region48
        $region47: #{set_transformer_forward.1} parent=11 // pred_region
          _
        $region48: #{set_transformer_forward.1} parent=11 // pred_fallthru
          _
        // Predicated region
        $region49: #{set_transformer_forward.1} parent=11 // pred_check
          %p458 = pneg %p317
        $region50: #{set_transformer_forward.1} parent=11 // pred_check_branch
          %460 = sbr.rel (%p458) target = $region52
        $region51: #{set_transformer_forward.1} parent=11 // pred_region
          %s462 = ssub.s32 32, 32
          %463 = vsyncadd [#allocation8], %s462
          %s464 = sshll.u32 [#allocation7], 4
          %s465 = int_to_ptr.vmem [resolvable:$true] %s464
          %470 = dma.hbm_to_vmem [thread:$0]  %s12, 32, %s465, [#allocation8], 16, 16, 1
        $region52: #{set_transformer_forward.1} parent=11 // pred_fallthru
          _
        // Predicated region
        $region53: #{set_transformer_forward.1} parent=11 // pred_check
          %p471 = pneg %p338
        $region54: #{set_transformer_forward.1} parent=11 // pred_check_branch
          %473 = sbr.rel (%p471) target = $region56
        $region55: #{set_transformer_forward.1} parent=11 // pred_region
          _
        $region56: #{set_transformer_forward.1} parent=11 // pred_fallthru
          _
        // Predicated region
        $region57: #{set_transformer_forward.1} parent=11 // pred_check
          %p474 = pneg %p359
        $region58: #{set_transformer_forward.1} parent=11 // pred_check_branch
          %476 = sbr.rel (%p474) target = $region60
        $region59: #{set_transformer_forward.1} parent=11 // pred_region
          _
        $region60: #{set_transformer_forward.1} parent=11 // pred_fallthru
          _
        // Predicated region
        $region61: #{set_transformer_forward.1} parent=11 // pred_check
          %p477 = pneg %p380
        $region62: #{set_transformer_forward.1} parent=11 // pred_check_branch
          %479 = sbr.rel (%p477) target = $region64
        $region63: #{set_transformer_forward.1} parent=11 // pred_region
          _
        $region64: #{set_transformer_forward.1} parent=11 // pred_fallthru
          _
      $region12: #{set_transformer_forward.1} parent=5 // pred_fallthru
        _
      %p480 = scmp.lt.s32.totalorder %s29, 2
      // Predicated region
      $region65: #{set_transformer_forward.1} parent=5 // pred_check
        %p481 = pneg %p480
      $region66: #{set_transformer_forward.1} parent=5 // pred_check_branch
        %483 = sbr.rel (%p481) target = $region68
      $region67: #{set_transformer_forward.1} parent=5 // pred_region
        // Predicated region
        $region69: #{set_transformer_forward.1} parent=67 // pred_check
          %p484 = pneg %p49
        $region70: #{set_transformer_forward.1} parent=67 // pred_check_branch
          %486 = sbr.rel (%p484) target = $region72
        $region71: #{set_transformer_forward.1} parent=67 // pred_region
          %s487 = sand.u32 %s39, 1
          %s488 = scalar_lea.sflag [#allocation3], %s487
          %s489 = sand.u32 %s39, 1
          %s490 = smul.addr %s489, 8
          %s491 = scalar_lea.vmem [#allocation2], %s490
          %s493 = ssub.s32 128, 128
          %494 = vsyncadd %s488, %s493
          %s495 = smul.addr %s29, 128
          %s496 = scalar_lea.hbm %s0, %s495
          %s498 = sshll.u32 %s491, 4
          %s499 = int_to_ptr.vmem [resolvable:$true] %s498
          %501 = dma.hbm_to_vmem [thread:$0]  %s496, 128, %s499, %s488
        $region72: #{set_transformer_forward.1} parent=67 // pred_fallthru
          _
        // Predicated region
        $region73: #{set_transformer_forward.1} parent=67 // pred_check
          %p502 = pneg %p75
        $region74: #{set_transformer_forward.1} parent=67 // pred_check_branch
          %504 = sbr.rel (%p502) target = $region76
        $region75: #{set_transformer_forward.1} parent=67 // pred_region
          %s505 = sand.u32 %s29, 1
          %s506 = scalar_lea.sflag [#allocation5], %s505
          %s507 = sand.u32 %s65, 1
          %s508 = smul.addr %s507, 8
          %s509 = scalar_lea.vmem [#allocation4], %s508
          %s511 = ssub.s32 128, 128
          %512 = vsyncadd %s506, %s511
          %s513 = smul.addr %s29, 128
          %s514 = scalar_lea.hbm %s1, %s513
          %s516 = sshll.u32 %s509, 4
          %s517 = int_to_ptr.vmem [resolvable:$true] %s516
          %519 = dma.hbm_to_vmem [thread:$0]  %s514, 128, %s517, %s506
        $region76: #{set_transformer_forward.1} parent=67 // pred_fallthru
          _
        // Predicated region
        $region77: #{set_transformer_forward.1} parent=67 // pred_check
          %p520 = pneg %p101
        $region78: #{set_transformer_forward.1} parent=67 // pred_check_branch
          %522 = sbr.rel (%p520) target = $region80
        $region79: #{set_transformer_forward.1} parent=67 // pred_region
          %p523 = scmp.lt.s32.totalorder %s29, 1
          %s524 = scalar_select %p523, %s29, 1
          %s525 = scalar_lea.vmem %s2, %s524
        $region80: #{set_transformer_forward.1} parent=67 // pred_fallthru
          _
      $region68: #{set_transformer_forward.1} parent=5 // pred_fallthru
        _
      %p526 = scmp.le.s32.totalorder 1, %s29
      %p527 = scmp.lt.s32.totalorder %s29, 3
      %p528 = pnand %p526, %p527
      %p529 = pneg %p528
      // Predicated region
      $region81: #{set_transformer_forward.1} parent=5 // pred_check
        _
      $region82: #{set_transformer_forward.1} parent=5 // pred_check_branch
        %531 = sbr.rel (%p528) target = $region84
      $region83: #{set_transformer_forward.1} parent=5 // pred_region
        %s532 = ssub.s32 %s29, 1
        %s533 = sand.u32 %s42, 1
        %s534 = scalar_lea.sflag [#allocation3], %s533
        %s535 = sand.u32 %s42, 1
        %s536 = smul.addr %s535, 8
        %s537 = scalar_lea.vmem [#allocation2], %s536
        // Predicated region
        $region85: #{set_transformer_forward.1} parent=83 // pred_check
          %p538 = pneg %p55
        $region86: #{set_transformer_forward.1} parent=83 // pred_check_branch
          %540 = sbr.rel (%p538) target = $region88
        $region87: #{set_transformer_forward.1} parent=83 // pred_region
          %541 = dma.done %s534, 128
        $region88: #{set_transformer_forward.1} parent=83 // pred_fallthru
          _
        %s542 = sand.u32 %s34, 1
        %s543 = scalar_lea.sflag [#allocation5], %s542
        %s544 = sand.u32 %s68, 1
        %s545 = smul.addr %s544, 8
        %s546 = scalar_lea.vmem [#allocation4], %s545
        // Predicated region
        $region89: #{set_transformer_forward.1} parent=83 // pred_check
          %p547 = pneg %p81
        $region90: #{set_transformer_forward.1} parent=83 // pred_check_branch
          %549 = sbr.rel (%p547) target = $region92
        $region91: #{set_transformer_forward.1} parent=83 // pred_region
          %550 = dma.done %s543, 128
        $region92: #{set_transformer_forward.1} parent=83 // pred_fallthru
          _
        // Predicated region
        $region93: #{set_transformer_forward.1} parent=83 // pred_check
          %p551 = pneg %p275
        $region94: #{set_transformer_forward.1} parent=83 // pred_check_branch
          %553 = sbr.rel (%p551) target = $region96
        $region95: #{set_transformer_forward.1} parent=83 // pred_region
          %554 = dma.done [#allocation5], 32
        $region96: #{set_transformer_forward.1} parent=83 // pred_fallthru
          _
        // Predicated region
        $region97: #{set_transformer_forward.1} parent=83 // pred_check
          %p555 = pneg %p317
        $region98: #{set_transformer_forward.1} parent=83 // pred_check_branch
          %557 = sbr.rel (%p555) target = $region100
        $region99: #{set_transformer_forward.1} parent=83 // pred_region
          %558 = dma.done [#allocation8], 32
        $region100: #{set_transformer_forward.1} parent=83 // pred_fallthru
          _
        %s559 = sand.u32 %s42, 1
        %s560 = scalar_lea.sflag [#allocation3], %s559
        %s561 = sand.u32 %s42, 1
        %s562 = smul.addr %s561, 8
        %s563 = scalar_lea.vmem [#allocation2], %s562
        %p564 = pneg %p55
        %p565 = pneg %p52
        %s566 = sand.u32 %s34, 1
        %s567 = scalar_lea.sflag [#allocation5], %s566
        %s568 = sand.u32 %s68, 1
        %s569 = smul.addr %s568, 8
        %s570 = scalar_lea.vmem [#allocation4], %s569
        %p571 = pneg %p81
        %p572 = pneg %p78
        %p573 = scmp.lt.s32.totalorder %s34, 1
        %s574 = scalar_select %p573, %s34, 1
        %s575 = scalar_lea.vmem %s2, %s574
        %p576 = pneg %p107
        %p577 = pneg %p104
        %p578 = pneg %p128
        %p579 = pneg %p125
        %p580 = pneg %p149
        %p581 = pneg %p146
        %p582 = pneg %p170
        %p583 = pneg %p167
        %p584 = pneg %p191
        %p585 = pneg %p188
        %p586 = pneg %p212
        %p587 = pneg %p209
        %p588 = pneg %p233
        %p589 = pneg %p230
        %p590 = pneg %p254
        %p591 = pneg %p251
        %p592 = pneg %p275
        %p593 = pneg %p272
        %p594 = pneg %p296
        %p595 = pneg %p293
        %p596 = pneg %p317
        %p597 = pneg %p314
        %p598 = pneg %p338
        %p599 = pneg %p335
        %p600 = pneg %p359
        %p601 = pneg %p356
        %p602 = pneg %p380
        %p603 = pneg %p377
        %p604 = pneg %p406
        %p605 = pneg %p403
        %p606 = scmp.lt.s32.totalorder %s34, 1
        %s607 = scalar_select %p606, %s34, 1
        %s608 = scalar_lea.vmem %s16, %s607
        %p609 = scmp.lt.s32.totalorder %s34, 1
        %s610 = scalar_select %p609, %s34, 1
        %s611 = scalar_lea.vmem %s2, %s610
        %p612 = scmp.lt.s32.totalorder %s34, 1
        %s613 = scalar_select %p612, %s34, 1
        %s614 = scalar_lea.vmem %s16, %s613
        %v616 = vld [vmem:[%s537] sm:$0xff]
        %v617 = vld [vmem:[%s546] sm:$0xff]
        %v618 = vadd.f32 %v616, %v617
        %v619 = vld [vmem:[%s611] sm:$0x1]
        %vm620 = vcmp.gt.f32.partialorder %v619, 0.5
        %v621 = vsel %vm620, 0.0, -1e+09
        %v622 = vpack.c.bf16 %v618, %v618
        %v623 = vld [vmem:[%s3] sm:$0xf]
        %v624 = vld [vmem:[%s3 + $0x4] sm:$0xf]
        %v625 = vld [vmem:[%s3 + $0x8] sm:$0xf]
        %v626 = vld [vmem:[%s3 + $0xc] sm:$0xf]
        %v627 = vld [vmem:[%s4] sm:$0x1]
        %v629 = vlaneseq
        %v630 = vshrl.u32 %v629, 7
        %v631 = vsub.s32 0, %v630
        %v632 = vrot.slane %v627, %v631
        %v638 = vunpack.c.l.b16 %v623
        %v639 = vunpack.c.l.b16 %v624
        %v640 = vunpack.c.l.b16 %v625
        %v641 = vunpack.c.l.b16 %v626
        %v642 = vpack.c.b16 %v639, %v638
        %v643 = vpack.c.b16 %v641, %v640
        %vm646 = vcmask 261120
        %v648 = vsel %vm646, %v622, 0
        %650 = vmatprep.subr.bf16.mxu0 0
        %651 = vmatpush1.bf16.msra.mxu0 %v642
        %652 = vmatprep.subr.bf16.mxu0 0
        %653 = vmatpush1.bf16.msra.mxu0 %v643
        %654 = vmatprep.subr.bf16.mxu0 0
        %655 = vmatpush1.bf16.msra.mxu0 0
        %656 = vmatprep.subr.bf16.mxu0 0
        %657 = vmatpush1.bf16.msra.mxu0 0
        %658 = vmatprep.subr.bf16.mxu0 0
        %659 = vmatpush1.bf16.msra.mxu0 0
        %660 = vmatprep.subr.bf16.mxu0 0
        %661 = vmatpush1.bf16.msra.mxu0 0
        %662 = vmatprep.subr.bf16.mxu0 0
        %663 = vmatpush1.bf16.msra.mxu0 0
        %664 = vmatprep.subr.bf16.mxu0 0
        %665 = vmatpush1.bf16.msra.mxu0 0
        %666 = vmatprep.subr.bf16.mxu0 0
        %667 = vmatpush1.bf16.msra.mxu0 0
        %668 = vmatprep.subr.bf16.mxu0 0
        %669 = vmatpush1.bf16.msra.mxu0 0
        %670 = vmatprep.subr.bf16.mxu0 0
        %671 = vmatpush1.bf16.msra.mxu0 0
        %672 = vmatprep.subr.bf16.mxu0 0
        %673 = vmatpush1.bf16.msra.mxu0 0
        %674 = vmatprep.subr.bf16.mxu0 0
        %675 = vmatpush1.bf16.msra.mxu0 0
        %676 = vmatprep.subr.bf16.mxu0 0
        %677 = vmatpush1.bf16.msra.mxu0 0
        %678 = vmatprep.subr.bf16.mxu0 0
        %679 = vmatpush1.bf16.msra.mxu0 0
        %680 = vmatprep.subr.bf16.mxu0 0
        %681 = vmatpush1.bf16.msra.mxu0 0
        %682 = vmatprep.mubr.bf16.mxu0 0
        %683 = vmatmul.mubr.bf16.gmra.mrb[0].mxu0 %v648
        %v684 = vpop.f32.mrb[0].mxu0
        %v685 = vadd.f32 %v632, %v684
        %v686 = vpop.f32.mrb[0].mxu0
        %v687 = vpop.f32.mrb[0].mxu0
        %v688 = vpop.f32.mrb[0].mxu0
        %689 = vdwg.mxu0
        %691 = vrot.lane.b32.xlu0 %v685, 120
        %v692 = vpop.permute.xlu0 %691
        %694 = vrot.lane.b32.xlu0 %v685, 112
        %v695 = vpop.permute.xlu0 %694
        %697 = vrot.lane.b32.xlu0 %v685, 104
        %v698 = vpop.permute.xlu0 %697
        %v700 = vcombine.low %v685, %v695
        %v701 = vcombine.high %v685, %v695
        %v703 = vunpack.c.l.s4 1983009808
        %v704 = vunpack.c.0.s8 %v703
        %v705 = vlaneseq
        %v706 = vshrl.u32 %v705, 7
        %v707 = vsub.s32 %v704, %v706
        %v708 = vrot.slane %v700, %v707
        %v710 = vunpack.c.l.s4 1983009808
        %v711 = vunpack.c.0.s8 %v710
        %v712 = vlaneseq
        %v713 = vshrl.u32 %v712, 7
        %v714 = vsub.s32 %v711, %v713
        %v715 = vrot.slane %v701, %v714
        %v716 = vcombine.low %v692, %v698
        %v717 = vcombine.high %v692, %v698
        %v719 = vunpack.c.l.s4 1983009808
        %v720 = vunpack.c.0.s8 %v719
        %v721 = vlaneseq
        %v722 = vshrl.u32 %v721, 7
        %v723 = vsub.s32 %v720, %v722
        %v724 = vrot.slane %v716, %v723
        %v726 = vunpack.c.l.s4 1983009808
        %v727 = vunpack.c.0.s8 %v726
        %v728 = vlaneseq
        %v729 = vshrl.u32 %v728, 7
        %v730 = vsub.s32 %v727, %v729
        %v731 = vrot.slane %v717, %v730
        %v732 = vcombine.low %v708, %v724
        %v733 = vcombine.high %v708, %v724
        %v735 = vunpack.c.l.s4 1934713408
        %v736 = vunpack.c.0.s8 %v735
        %v737 = vlaneseq
        %v738 = vshrl.u32 %v737, 7
        %v739 = vsub.s32 %v736, %v738
        %v740 = vrot.slane %v732, %v739
        %v742 = vunpack.c.l.s4 1934713408
        %v743 = vunpack.c.0.s8 %v742
        %v744 = vlaneseq
        %v745 = vshrl.u32 %v744, 7
        %v746 = vsub.s32 %v743, %v745
        %v747 = vrot.slane %v733, %v746
        %v748 = vcombine.low %v715, %v731
        %v749 = vcombine.high %v715, %v731
        %v751 = vunpack.c.l.s4 1934713408
        %v752 = vunpack.c.0.s8 %v751
        %v753 = vlaneseq
        %v754 = vshrl.u32 %v753, 7
        %v755 = vsub.s32 %v752, %v754
        %v756 = vrot.slane %v748, %v755
        %v758 = vunpack.c.l.s4 1934713408
        %v759 = vunpack.c.0.s8 %v758
        %v760 = vlaneseq
        %v761 = vshrl.u32 %v760, 7
        %v762 = vsub.s32 %v759, %v761
        %v763 = vrot.slane %v749, %v762
        %v764 = vcombine.high %v740, 0.0
        %v765 = vcombine.high %v747, 0.0
        %v766 = vcombine.high %v756, 0.0
        %v767 = vcombine.high %v763, 0.0
        %v768 = vcombine.low %v740, %v747
        %v770 = vunpack.c.l.s4 1983009808
        %v771 = vunpack.c.0.s8 %v770
        %v772 = vlaneseq
        %v773 = vshrl.u32 %v772, 7
        %v774 = vsub.s32 %v771, %v773
        %v775 = vrot.slane %v768, %v774
        %v776 = vcombine.low %v764, %v765
        %v778 = vunpack.c.l.s4 1983009808
        %v779 = vunpack.c.0.s8 %v778
        %v780 = vlaneseq
        %v781 = vshrl.u32 %v780, 7
        %v782 = vsub.s32 %v779, %v781
        %v783 = vrot.slane %v776, %v782
        %v784 = vcombine.low %v756, %v763
        %v786 = vunpack.c.l.s4 1983009808
        %v787 = vunpack.c.0.s8 %v786
        %v788 = vlaneseq
        %v789 = vshrl.u32 %v788, 7
        %v790 = vsub.s32 %v787, %v789
        %v791 = vrot.slane %v784, %v790
        %v792 = vcombine.low %v766, %v767
        %v794 = vunpack.c.l.s4 1983009808
        %v795 = vunpack.c.0.s8 %v794
        %v796 = vlaneseq
        %v797 = vshrl.u32 %v796, 7
        %v798 = vsub.s32 %v795, %v797
        %v799 = vrot.slane %v792, %v798
        %v800 = vcombine.low %v775, %v783
        %v801 = vcombine.high %v775, %v783
        %v803 = vunpack.c.l.s4 1934713408
        %v804 = vunpack.c.0.s8 %v803
        %v805 = vlaneseq
        %v806 = vshrl.u32 %v805, 7
        %v807 = vsub.s32 %v804, %v806
        %v808 = vrot.slane %v800, %v807
        %v810 = vunpack.c.l.s4 1934713408
        %v811 = vunpack.c.0.s8 %v810
        %v812 = vlaneseq
        %v813 = vshrl.u32 %v812, 7
        %v814 = vsub.s32 %v811, %v813
        %v815 = vrot.slane %v801, %v814
        %v816 = vcombine.low %v791, %v799
        %v817 = vcombine.high %v791, %v799
        %v819 = vunpack.c.l.s4 1934713408
        %v820 = vunpack.c.0.s8 %v819
        %v821 = vlaneseq
        %v822 = vshrl.u32 %v821, 7
        %v823 = vsub.s32 %v820, %v822
        %v824 = vrot.slane %v816, %v823
        %v826 = vunpack.c.l.s4 1934713408
        %v827 = vunpack.c.0.s8 %v826
        %v828 = vlaneseq
        %v829 = vshrl.u32 %v828, 7
        %v830 = vsub.s32 %v827, %v829
        %v831 = vrot.slane %v817, %v830
        %v832 = vcombine.low %v808, %v824
        %v833 = vcombine.high %v808, %v824
        %v834 = vcombine.low %v815, %v831
        %v835 = vcombine.high %v815, %v831
        %836 = vrot.lane.b32.xlu0 %v685, 96
        %v837 = vpop.permute.xlu0 %836
        %838 = vrot.lane.b32.xlu0 %v692, 96
        %v839 = vpop.permute.xlu0 %838
        %840 = vrot.lane.b32.xlu0 %v695, 96
        %v841 = vpop.permute.xlu0 %840
        %842 = vrot.lane.b32.xlu0 %v698, 96
        %v843 = vpop.permute.xlu0 %842
        %v848 = vcombine.low %v837, %v841
        %v849 = vcombine.high %v837, %v841
        %v851 = vunpack.c.l.s4 1983009808
        %v852 = vunpack.c.0.s8 %v851
        %v853 = vlaneseq
        %v854 = vshrl.u32 %v853, 7
        %v855 = vsub.s32 %v852, %v854
        %v856 = vrot.slane %v848, %v855
        %v858 = vunpack.c.l.s4 1983009808
        %v859 = vunpack.c.0.s8 %v858
        %v860 = vlaneseq
        %v861 = vshrl.u32 %v860, 7
        %v862 = vsub.s32 %v859, %v861
        %v863 = vrot.slane %v849, %v862
        %v864 = vcombine.low %v839, %v843
        %v865 = vcombine.high %v839, %v843
        %v867 = vunpack.c.l.s4 1983009808
        %v868 = vunpack.c.0.s8 %v867
        %v869 = vlaneseq
        %v870 = vshrl.u32 %v869, 7
        %v871 = vsub.s32 %v868, %v870
        %v872 = vrot.slane %v864, %v871
        %v874 = vunpack.c.l.s4 1983009808
        %v875 = vunpack.c.0.s8 %v874
        %v876 = vlaneseq
        %v877 = vshrl.u32 %v876, 7
        %v878 = vsub.s32 %v875, %v877
        %v879 = vrot.slane %v865, %v878
        %v880 = vcombine.low %v856, %v872
        %v881 = vcombine.high %v856, %v872
        %v883 = vunpack.c.l.s4 1934713408
        %v884 = vunpack.c.0.s8 %v883
        %v885 = vlaneseq
        %v886 = vshrl.u32 %v885, 7
        %v887 = vsub.s32 %v884, %v886
        %v888 = vrot.slane %v880, %v887
        %v890 = vunpack.c.l.s4 1934713408
        %v891 = vunpack.c.0.s8 %v890
        %v892 = vlaneseq
        %v893 = vshrl.u32 %v892, 7
        %v894 = vsub.s32 %v891, %v893
        %v895 = vrot.slane %v881, %v894
        %v896 = vcombine.low %v863, %v879
        %v897 = vcombine.high %v863, %v879
        %v899 = vunpack.c.l.s4 1934713408
        %v900 = vunpack.c.0.s8 %v899
        %v901 = vlaneseq
        %v902 = vshrl.u32 %v901, 7
        %v903 = vsub.s32 %v900, %v902
        %v904 = vrot.slane %v896, %v903
        %v906 = vunpack.c.l.s4 1934713408
        %v907 = vunpack.c.0.s8 %v906
        %v908 = vlaneseq
        %v909 = vshrl.u32 %v908, 7
        %v910 = vsub.s32 %v907, %v909
        %v911 = vrot.slane %v897, %v910
        %v912 = vcombine.high %v888, 0.0
        %v913 = vcombine.high %v895, 0.0
        %v914 = vcombine.high %v904, 0.0
        %v915 = vcombine.high %v911, 0.0
        %v916 = vcombine.low %v888, %v895
        %v918 = vunpack.c.l.s4 1983009808
        %v919 = vunpack.c.0.s8 %v918
        %v920 = vlaneseq
        %v921 = vshrl.u32 %v920, 7
        %v922 = vsub.s32 %v919, %v921
        %v923 = vrot.slane %v916, %v922
        %v924 = vcombine.low %v912, %v913
        %v926 = vunpack.c.l.s4 1983009808
        %v927 = vunpack.c.0.s8 %v926
        %v928 = vlaneseq
        %v929 = vshrl.u32 %v928, 7
        %v930 = vsub.s32 %v927, %v929
        %v931 = vrot.slane %v924, %v930
        %v932 = vcombine.low %v904, %v911
        %v934 = vunpack.c.l.s4 1983009808
        %v935 = vunpack.c.0.s8 %v934
        %v936 = vlaneseq
        %v937 = vshrl.u32 %v936, 7
        %v938 = vsub.s32 %v935, %v937
        %v939 = vrot.slane %v932, %v938
        %v940 = vcombine.low %v914, %v915
        %v942 = vunpack.c.l.s4 1983009808
        %v943 = vunpack.c.0.s8 %v942
        %v944 = vlaneseq
        %v945 = vshrl.u32 %v944, 7
        %v946 = vsub.s32 %v943, %v945
        %v947 = vrot.slane %v940, %v946
        %v948 = vcombine.low %v923, %v931
        %v949 = vcombine.high %v923, %v931
        %v951 = vunpack.c.l.s4 1934713408
        %v952 = vunpack.c.0.s8 %v951
        %v953 = vlaneseq
        %v954 = vshrl.u32 %v953, 7
        %v955 = vsub.s32 %v952, %v954
        %v956 = vrot.slane %v948, %v955
        %v958 = vunpack.c.l.s4 1934713408
        %v959 = vunpack.c.0.s8 %v958
        %v960 = vlaneseq
        %v961 = vshrl.u32 %v960, 7
        %v962 = vsub.s32 %v959, %v961
        %v963 = vrot.slane %v949, %v962
        %v964 = vcombine.low %v939, %v947
        %v965 = vcombine.high %v939, %v947
        %v967 = vunpack.c.l.s4 1934713408
        %v968 = vunpack.c.0.s8 %v967
        %v969 = vlaneseq
        %v970 = vshrl.u32 %v969, 7
        %v971 = vsub.s32 %v968, %v970
        %v972 = vrot.slane %v964, %v971
        %v974 = vunpack.c.l.s4 1934713408
        %v975 = vunpack.c.0.s8 %v974
        %v976 = vlaneseq
        %v977 = vshrl.u32 %v976, 7
        %v978 = vsub.s32 %v975, %v977
        %v979 = vrot.slane %v965, %v978
        %v980 = vcombine.low %v956, %v972
        %v981 = vcombine.high %v956, %v972
        %v982 = vcombine.low %v963, %v979
        %v983 = vcombine.high %v963, %v979
        %984 = vrot.lane.b32.xlu0 %v685, 64
        %v985 = vpop.permute.xlu0 %984
        %986 = vrot.lane.b32.xlu0 %v692, 64
        %v987 = vpop.permute.xlu0 %986
        %988 = vrot.lane.b32.xlu0 %v695, 64
        %v989 = vpop.permute.xlu0 %988
        %990 = vrot.lane.b32.xlu0 %v698, 64
        %v991 = vpop.permute.xlu0 %990
        %v996 = vcombine.low %v985, %v989
        %v997 = vcombine.high %v985, %v989
        %v999 = vunpack.c.l.s4 1983009808
        %v1000 = vunpack.c.0.s8 %v999
        %v1001 = vlaneseq
        %v1002 = vshrl.u32 %v1001, 7
        %v1003 = vsub.s32 %v1000, %v1002
        %v1004 = vrot.slane %v996, %v1003
        %v1006 = vunpack.c.l.s4 1983009808
        %v1007 = vunpack.c.0.s8 %v1006
        %v1008 = vlaneseq
        %v1009 = vshrl.u32 %v1008, 7
        %v1010 = vsub.s32 %v1007, %v1009
        %v1011 = vrot.slane %v997, %v1010
        %v1012 = vcombine.low %v987, %v991
        %v1013 = vcombine.high %v987, %v991
        %v1015 = vunpack.c.l.s4 1983009808
        %v1016 = vunpack.c.0.s8 %v1015
        %v1017 = vlaneseq
        %v1018 = vshrl.u32 %v1017, 7
        %v1019 = vsub.s32 %v1016, %v1018
        %v1020 = vrot.slane %v1012, %v1019
        %v1022 = vunpack.c.l.s4 1983009808
        %v1023 = vunpack.c.0.s8 %v1022
        %v1024 = vlaneseq
        %v1025 = vshrl.u32 %v1024, 7
        %v1026 = vsub.s32 %v1023, %v1025
        %v1027 = vrot.slane %v1013, %v1026
        %v1028 = vcombine.low %v1004, %v1020
        %v1029 = vcombine.high %v1004, %v1020
        %v1031 = vunpack.c.l.s4 1934713408
        %v1032 = vunpack.c.0.s8 %v1031
        %v1033 = vlaneseq
        %v1034 = vshrl.u32 %v1033, 7
        %v1035 = vsub.s32 %v1032, %v1034
        %v1036 = vrot.slane %v1028, %v1035
        %v1038 = vunpack.c.l.s4 1934713408
        %v1039 = vunpack.c.0.s8 %v1038
        %v1040 = vlaneseq
        %v1041 = vshrl.u32 %v1040, 7
        %v1042 = vsub.s32 %v1039, %v1041
        %v1043 = vrot.slane %v1029, %v1042
        %v1044 = vcombine.low %v1011, %v1027
        %v1045 = vcombine.high %v1011, %v1027
        %v1047 = vunpack.c.l.s4 1934713408
        %v1048 = vunpack.c.0.s8 %v1047
        %v1049 = vlaneseq
        %v1050 = vshrl.u32 %v1049, 7
        %v1051 = vsub.s32 %v1048, %v1050
        %v1052 = vrot.slane %v1044, %v1051
        %v1054 = vunpack.c.l.s4 1934713408
        %v1055 = vunpack.c.0.s8 %v1054
        %v1056 = vlaneseq
        %v1057 = vshrl.u32 %v1056, 7
        %v1058 = vsub.s32 %v1055, %v1057
        %v1059 = vrot.slane %v1045, %v1058
        %v1060 = vcombine.high %v1036, 0.0
        %v1061 = vcombine.high %v1043, 0.0
        %v1062 = vcombine.high %v1052, 0.0
        %v1063 = vcombine.high %v1059, 0.0
        %v1064 = vcombine.low %v1036, %v1043
        %v1066 = vunpack.c.l.s4 1983009808
        %v1067 = vunpack.c.0.s8 %v1066
        %v1068 = vlaneseq
        %v1069 = vshrl.u32 %v1068, 7
        %v1070 = vsub.s32 %v1067, %v1069
        %v1071 = vrot.slane %v1064, %v1070
        %v1072 = vcombine.low %v1060, %v1061
        %v1074 = vunpack.c.l.s4 1983009808
        %v1075 = vunpack.c.0.s8 %v1074
        %v1076 = vlaneseq
        %v1077 = vshrl.u32 %v1076, 7
        %v1078 = vsub.s32 %v1075, %v1077
        %v1079 = vrot.slane %v1072, %v1078
        %v1080 = vcombine.low %v1052, %v1059
        %v1082 = vunpack.c.l.s4 1983009808
        %v1083 = vunpack.c.0.s8 %v1082
        %v1084 = vlaneseq
        %v1085 = vshrl.u32 %v1084, 7
        %v1086 = vsub.s32 %v1083, %v1085
        %v1087 = vrot.slane %v1080, %v1086
        %v1088 = vcombine.low %v1062, %v1063
        %v1090 = vunpack.c.l.s4 1983009808
        %v1091 = vunpack.c.0.s8 %v1090
        %v1092 = vlaneseq
        %v1093 = vshrl.u32 %v1092, 7
        %v1094 = vsub.s32 %v1091, %v1093
        %v1095 = vrot.slane %v1088, %v1094
        %v1096 = vcombine.low %v1071, %v1079
        %v1097 = vcombine.high %v1071, %v1079
        %v1099 = vunpack.c.l.s4 1934713408
        %v1100 = vunpack.c.0.s8 %v1099
        %v1101 = vlaneseq
        %v1102 = vshrl.u32 %v1101, 7
        %v1103 = vsub.s32 %v1100, %v1102
        %v1104 = vrot.slane %v1096, %v1103
        %v1106 = vunpack.c.l.s4 1934713408
        %v1107 = vunpack.c.0.s8 %v1106
        %v1108 = vlaneseq
        %v1109 = vshrl.u32 %v1108, 7
        %v1110 = vsub.s32 %v1107, %v1109
        %v1111 = vrot.slane %v1097, %v1110
        %v1112 = vcombine.low %v1087, %v1095
        %v1113 = vcombine.high %v1087, %v1095
        %v1115 = vunpack.c.l.s4 1934713408
        %v1116 = vunpack.c.0.s8 %v1115
        %v1117 = vlaneseq
        %v1118 = vshrl.u32 %v1117, 7
        %v1119 = vsub.s32 %v1116, %v1118
        %v1120 = vrot.slane %v1112, %v1119
        %v1122 = vunpack.c.l.s4 1934713408
        %v1123 = vunpack.c.0.s8 %v1122
        %v1124 = vlaneseq
        %v1125 = vshrl.u32 %v1124, 7
        %v1126 = vsub.s32 %v1123, %v1125
        %v1127 = vrot.slane %v1113, %v1126
        %v1128 = vcombine.low %v1104, %v1120
        %v1129 = vcombine.high %v1104, %v1120
        %v1130 = vcombine.low %v1111, %v1127
        %v1131 = vcombine.high %v1111, %v1127
        %vm1132 = vcmask 64512
        %v1134 = vsel %vm1132, %v832, 0
        %v1137 = vsel %vm1132, %v980, 0
        %1139 = vmatprep.subr.mxu0 0.0
        %1140 = vmatpush1.xpose.msra.mxu0 %v1137
        %1141 = vmatprep.subr.mxu0 0.0
        %1142 = vmatpush1.xpose.msra.mxu0 0.0
        %1143 = vmatprep.subr.mxu0 0.0
        %1144 = vmatpush1.xpose.msra.mxu0 0.0
        %1145 = vmatprep.subr.mxu0 0.0
        %1146 = vmatpush1.xpose.msra.mxu0 0.0
        %1147 = vmatprep.subr.mxu0 0.0
        %1148 = vmatpush1.xpose.msra.mxu0 0.0
        %1149 = vmatprep.subr.mxu0 0.0
        %1150 = vmatpush1.xpose.msra.mxu0 0.0
        %1151 = vmatprep.subr.mxu0 0.0
        %1152 = vmatpush1.xpose.msra.mxu0 0.0
        %1153 = vmatprep.subr.mxu0 0.0
        %1154 = vmatpush1.xpose.msra.mxu0 0.0
        %1155 = vmatprep.subr.mxu0 0.0
        %1156 = vmatpush1.xpose.msra.mxu0 0.0
        %1157 = vmatprep.subr.mxu0 0.0
        %1158 = vmatpush1.xpose.msra.mxu0 0.0
        %1159 = vmatprep.subr.mxu0 0.0
        %1160 = vmatpush1.xpose.msra.mxu0 0.0
        %1161 = vmatprep.subr.mxu0 0.0
        %1162 = vmatpush1.xpose.msra.mxu0 0.0
        %1163 = vmatprep.subr.mxu0 0.0
        %1164 = vmatpush1.xpose.msra.mxu0 0.0
        %1165 = vmatprep.subr.mxu0 0.0
        %1166 = vmatpush1.xpose.msra.mxu0 0.0
        %1167 = vmatprep.subr.mxu0 0.0
        %1168 = vmatpush1.xpose.msra.mxu0 0.0
        %1169 = vmatprep.subr.mxu0 0.0
        %1170 = vmatpush1.xpose.msra.mxu0 0.0
        %1171 = vmatprep.subr.mxu0 0.0
        %1172 = vmatpush1.xpose.msra.mxu0 0.0
        %1173 = vmatprep.subr.mxu0 0.0
        %1174 = vmatpush1.xpose.msra.mxu0 0.0
        %1175 = vmatprep.subr.mxu0 0.0
        %1176 = vmatpush1.xpose.msra.mxu0 0.0
        %1177 = vmatprep.subr.mxu0 0.0
        %1178 = vmatpush1.xpose.msra.mxu0 0.0
        %1179 = vmatprep.subr.mxu0 0.0
        %1180 = vmatpush1.xpose.msra.mxu0 0.0
        %1181 = vmatprep.subr.mxu0 0.0
        %1182 = vmatpush1.xpose.msra.mxu0 0.0
        %1183 = vmatprep.subr.mxu0 0.0
        %1184 = vmatpush1.xpose.msra.mxu0 0.0
        %1185 = vmatprep.subr.mxu0 0.0
        %1186 = vmatpush1.xpose.msra.mxu0 0.0
        %1187 = vmatprep.subr.mxu0 0.0
        %1188 = vmatpush1.xpose.msra.mxu0 0.0
        %1189 = vmatprep.subr.mxu0 0.0
        %1190 = vmatpush1.xpose.msra.mxu0 0.0
        %1191 = vmatprep.subr.mxu0 0.0
        %1192 = vmatpush1.xpose.msra.mxu0 0.0
        %1193 = vmatprep.subr.mxu0 0.0
        %1194 = vmatpush1.xpose.msra.mxu0 0.0
        %1195 = vmatprep.subr.mxu0 0.0
        %1196 = vmatpush1.xpose.msra.mxu0 0.0
        %1197 = vmatprep.subr.mxu0 0.0
        %1198 = vmatpush1.xpose.msra.mxu0 0.0
        %1199 = vmatprep.subr.mxu0 0.0
        %1200 = vmatpush1.xpose.msra.mxu0 0.0
        %1201 = vmatprep.subr.mxu0 0.0
        %1202 = vmatpush1.xpose.msra.mxu0 0.0
        %1203 = vmatprep.mubr.f32.mxu0 0.0
        %1204 = vmatmul.mubr.f32.gmra.mrb[0].mxu0 %v1134
        %v1205 = vpop.f32.mrb[0].mxu0
        %v1206 = vadd.f32 0.0, %v1205
        %v1207 = vpop.f32.mrb[0].mxu0
        %1208 = vdwg.mxu0
        %v1210 = vsel %vm1132, %v833, 0
        %v1213 = vsel %vm1132, %v981, 0
        %1215 = vmatprep.subr.mxu0 0.0
        %1216 = vmatpush1.xpose.msra.mxu0 %v1213
        %1217 = vmatprep.subr.mxu0 0.0
        %1218 = vmatpush1.xpose.msra.mxu0 0.0
        %1219 = vmatprep.subr.mxu0 0.0
        %1220 = vmatpush1.xpose.msra.mxu0 0.0
        %1221 = vmatprep.subr.mxu0 0.0
        %1222 = vmatpush1.xpose.msra.mxu0 0.0
        %1223 = vmatprep.subr.mxu0 0.0
        %1224 = vmatpush1.xpose.msra.mxu0 0.0
        %1225 = vmatprep.subr.mxu0 0.0
        %1226 = vmatpush1.xpose.msra.mxu0 0.0
        %1227 = vmatprep.subr.mxu0 0.0
        %1228 = vmatpush1.xpose.msra.mxu0 0.0
        %1229 = vmatprep.subr.mxu0 0.0
        %1230 = vmatpush1.xpose.msra.mxu0 0.0
        %1231 = vmatprep.subr.mxu0 0.0
        %1232 = vmatpush1.xpose.msra.mxu0 0.0
        %1233 = vmatprep.subr.mxu0 0.0
        %1234 = vmatpush1.xpose.msra.mxu0 0.0
        %1235 = vmatprep.subr.mxu0 0.0
        %1236 = vmatpush1.xpose.msra.mxu0 0.0
        %1237 = vmatprep.subr.mxu0 0.0
        %1238 = vmatpush1.xpose.msra.mxu0 0.0
        %1239 = vmatprep.subr.mxu0 0.0
        %1240 = vmatpush1.xpose.msra.mxu0 0.0
        %1241 = vmatprep.subr.mxu0 0.0
        %1242 = vmatpush1.xpose.msra.mxu0 0.0
        %1243 = vmatprep.subr.mxu0 0.0
        %1244 = vmatpush1.xpose.msra.mxu0 0.0
        %1245 = vmatprep.subr.mxu0 0.0
        %1246 = vmatpush1.xpose.msra.mxu0 0.0
        %1247 = vmatprep.subr.mxu0 0.0
        %1248 = vmatpush1.xpose.msra.mxu0 0.0
        %1249 = vmatprep.subr.mxu0 0.0
        %1250 = vmatpush1.xpose.msra.mxu0 0.0
        %1251 = vmatprep.subr.mxu0 0.0
        %1252 = vmatpush1.xpose.msra.mxu0 0.0
        %1253 = vmatprep.subr.mxu0 0.0
        %1254 = vmatpush1.xpose.msra.mxu0 0.0
        %1255 = vmatprep.subr.mxu0 0.0
        %1256 = vmatpush1.xpose.msra.mxu0 0.0
        %1257 = vmatprep.subr.mxu0 0.0
        %1258 = vmatpush1.xpose.msra.mxu0 0.0
        %1259 = vmatprep.subr.mxu0 0.0
        %1260 = vmatpush1.xpose.msra.mxu0 0.0
        %1261 = vmatprep.subr.mxu0 0.0
        %1262 = vmatpush1.xpose.msra.mxu0 0.0
        %1263 = vmatprep.subr.mxu0 0.0
        %1264 = vmatpush1.xpose.msra.mxu0 0.0
        %1265 = vmatprep.subr.mxu0 0.0
        %1266 = vmatpush1.xpose.msra.mxu0 0.0
        %1267 = vmatprep.subr.mxu0 0.0
        %1268 = vmatpush1.xpose.msra.mxu0 0.0
        %1269 = vmatprep.subr.mxu0 0.0
        %1270 = vmatpush1.xpose.msra.mxu0 0.0
        %1271 = vmatprep.subr.mxu0 0.0
        %1272 = vmatpush1.xpose.msra.mxu0 0.0
        %1273 = vmatprep.subr.mxu0 0.0
        %1274 = vmatpush1.xpose.msra.mxu0 0.0
        %1275 = vmatprep.subr.mxu0 0.0
        %1276 = vmatpush1.xpose.msra.mxu0 0.0
        %1277 = vmatprep.subr.mxu0 0.0
        %1278 = vmatpush1.xpose.msra.mxu0 0.0
        %1279 = vmatprep.mubr.f32.mxu0 0.0
        %1280 = vmatmul.mubr.f32.gmra.mrb[0].mxu0 %v1210
        %v1281 = vpop.f32.mrb[0].mxu0
        %v1282 = vadd.f32 0.0, %v1281
        %v1283 = vpop.f32.mrb[0].mxu0
        %1284 = vdwg.mxu0
        %v1286 = vsel %vm1132, %v834, 0
        %v1289 = vsel %vm1132, %v982, 0
        %1291 = vmatprep.subr.mxu0 0.0
        %1292 = vmatpush1.xpose.msra.mxu0 %v1289
        %1293 = vmatprep.subr.mxu0 0.0
        %1294 = vmatpush1.xpose.msra.mxu0 0.0
        %1295 = vmatprep.subr.mxu0 0.0
        %1296 = vmatpush1.xpose.msra.mxu0 0.0
        %1297 = vmatprep.subr.mxu0 0.0
        %1298 = vmatpush1.xpose.msra.mxu0 0.0
        %1299 = vmatprep.subr.mxu0 0.0
        %1300 = vmatpush1.xpose.msra.mxu0 0.0
        %1301 = vmatprep.subr.mxu0 0.0
        %1302 = vmatpush1.xpose.msra.mxu0 0.0
        %1303 = vmatprep.subr.mxu0 0.0
        %1304 = vmatpush1.xpose.msra.mxu0 0.0
        %1305 = vmatprep.subr.mxu0 0.0
        %1306 = vmatpush1.xpose.msra.mxu0 0.0
        %1307 = vmatprep.subr.mxu0 0.0
        %1308 = vmatpush1.xpose.msra.mxu0 0.0
        %1309 = vmatprep.subr.mxu0 0.0
        %1310 = vmatpush1.xpose.msra.mxu0 0.0
        %1311 = vmatprep.subr.mxu0 0.0
        %1312 = vmatpush1.xpose.msra.mxu0 0.0
        %1313 = vmatprep.subr.mxu0 0.0
        %1314 = vmatpush1.xpose.msra.mxu0 0.0
        %1315 = vmatprep.subr.mxu0 0.0
        %1316 = vmatpush1.xpose.msra.mxu0 0.0
        %1317 = vmatprep.subr.mxu0 0.0
        %1318 = vmatpush1.xpose.msra.mxu0 0.0
        %1319 = vmatprep.subr.mxu0 0.0
        %1320 = vmatpush1.xpose.msra.mxu0 0.0
        %1321 = vmatprep.subr.mxu0 0.0
        %1322 = vmatpush1.xpose.msra.mxu0 0.0
        %1323 = vmatprep.subr.mxu0 0.0
        %1324 = vmatpush1.xpose.msra.mxu0 0.0
        %1325 = vmatprep.subr.mxu0 0.0
        %1326 = vmatpush1.xpose.msra.mxu0 0.0
        %1327 = vmatprep.subr.mxu0 0.0
        %1328 = vmatpush1.xpose.msra.mxu0 0.0
        %1329 = vmatprep.subr.mxu0 0.0
        %1330 = vmatpush1.xpose.msra.mxu0 0.0
        %1331 = vmatprep.subr.mxu0 0.0
        %1332 = vmatpush1.xpose.msra.mxu0 0.0
        %1333 = vmatprep.subr.mxu0 0.0
        %1334 = vmatpush1.xpose.msra.mxu0 0.0
        %1335 = vmatprep.subr.mxu0 0.0
        %1336 = vmatpush1.xpose.msra.mxu0 0.0
        %1337 = vmatprep.subr.mxu0 0.0
        %1338 = vmatpush1.xpose.msra.mxu0 0.0
        %1339 = vmatprep.subr.mxu0 0.0
        %1340 = vmatpush1.xpose.msra.mxu0 0.0
        %1341 = vmatprep.subr.mxu0 0.0
        %1342 = vmatpush1.xpose.msra.mxu0 0.0
        %1343 = vmatprep.subr.mxu0 0.0
        %1344 = vmatpush1.xpose.msra.mxu0 0.0
        %1345 = vmatprep.subr.mxu0 0.0
        %1346 = vmatpush1.xpose.msra.mxu0 0.0
        %1347 = vmatprep.subr.mxu0 0.0
        %1348 = vmatpush1.xpose.msra.mxu0 0.0
        %1349 = vmatprep.subr.mxu0 0.0
        %1350 = vmatpush1.xpose.msra.mxu0 0.0
        %1351 = vmatprep.subr.mxu0 0.0
        %1352 = vmatpush1.xpose.msra.mxu0 0.0
        %1353 = vmatprep.subr.mxu0 0.0
        %1354 = vmatpush1.xpose.msra.mxu0 0.0
        %1355 = vmatprep.mubr.f32.mxu0 0.0
        %1356 = vmatmul.mubr.f32.gmra.mrb[0].mxu0 %v1286
        %v1357 = vpop.f32.mrb[0].mxu0
        %v1358 = vadd.f32 0.0, %v1357
        %v1359 = vpop.f32.mrb[0].mxu0
        %1360 = vdwg.mxu0
        %v1362 = vsel %vm1132, %v835, 0
        %v1365 = vsel %vm1132, %v983, 0
        %1367 = vmatprep.subr.mxu0 0.0
        %1368 = vmatpush1.xpose.msra.mxu0 %v1365
        %1369 = vmatprep.subr.mxu0 0.0
        %1370 = vmatpush1.xpose.msra.mxu0 0.0
        %1371 = vmatprep.subr.mxu0 0.0
        %1372 = vmatpush1.xpose.msra.mxu0 0.0
        %1373 = vmatprep.subr.mxu0 0.0
        %1374 = vmatpush1.xpose.msra.mxu0 0.0
        %1375 = vmatprep.subr.mxu0 0.0
        %1376 = vmatpush1.xpose.msra.mxu0 0.0
        %1377 = vmatprep.subr.mxu0 0.0
        %1378 = vmatpush1.xpose.msra.mxu0 0.0
        %1379 = vmatprep.subr.mxu0 0.0
        %1380 = vmatpush1.xpose.msra.mxu0 0.0
        %1381 = vmatprep.subr.mxu0 0.0
        %1382 = vmatpush1.xpose.msra.mxu0 0.0
        %1383 = vmatprep.subr.mxu0 0.0
        %1384 = vmatpush1.xpose.msra.mxu0 0.0
        %1385 = vmatprep.subr.mxu0 0.0
        %1386 = vmatpush1.xpose.msra.mxu0 0.0
        %1387 = vmatprep.subr.mxu0 0.0
        %1388 = vmatpush1.xpose.msra.mxu0 0.0
        %1389 = vmatprep.subr.mxu0 0.0
        %1390 = vmatpush1.xpose.msra.mxu0 0.0
        %1391 = vmatprep.subr.mxu0 0.0
        %1392 = vmatpush1.xpose.msra.mxu0 0.0
        %1393 = vmatprep.subr.mxu0 0.0
        %1394 = vmatpush1.xpose.msra.mxu0 0.0
        %1395 = vmatprep.subr.mxu0 0.0
        %1396 = vmatpush1.xpose.msra.mxu0 0.0
        %1397 = vmatprep.subr.mxu0 0.0
        %1398 = vmatpush1.xpose.msra.mxu0 0.0
        %1399 = vmatprep.subr.mxu0 0.0
        %1400 = vmatpush1.xpose.msra.mxu0 0.0
        %1401 = vmatprep.subr.mxu0 0.0
        %1402 = vmatpush1.xpose.msra.mxu0 0.0
        %1403 = vmatprep.subr.mxu0 0.0
        %1404 = vmatpush1.xpose.msra.mxu0 0.0
        %1405 = vmatprep.subr.mxu0 0.0
        %1406 = vmatpush1.xpose.msra.mxu0 0.0
        %1407 = vmatprep.subr.mxu0 0.0
        %1408 = vmatpush1.xpose.msra.mxu0 0.0
        %1409 = vmatprep.subr.mxu0 0.0
        %1410 = vmatpush1.xpose.msra.mxu0 0.0
        %1411 = vmatprep.subr.mxu0 0.0
        %1412 = vmatpush1.xpose.msra.mxu0 0.0
        %1413 = vmatprep.subr.mxu0 0.0
        %1414 = vmatpush1.xpose.msra.mxu0 0.0
        %1415 = vmatprep.subr.mxu0 0.0
        %1416 = vmatpush1.xpose.msra.mxu0 0.0
        %1417 = vmatprep.subr.mxu0 0.0
        %1418 = vmatpush1.xpose.msra.mxu0 0.0
        %1419 = vmatprep.subr.mxu0 0.0
        %1420 = vmatpush1.xpose.msra.mxu0 0.0
        %1421 = vmatprep.subr.mxu0 0.0
        %1422 = vmatpush1.xpose.msra.mxu0 0.0
        %1423 = vmatprep.subr.mxu0 0.0
        %1424 = vmatpush1.xpose.msra.mxu0 0.0
        %1425 = vmatprep.subr.mxu0 0.0
        %1426 = vmatpush1.xpose.msra.mxu0 0.0
        %1427 = vmatprep.subr.mxu0 0.0
        %1428 = vmatpush1.xpose.msra.mxu0 0.0
        %1429 = vmatprep.subr.mxu0 0.0
        %1430 = vmatpush1.xpose.msra.mxu0 0.0
        %1431 = vmatprep.mubr.f32.mxu0 0.0
        %1432 = vmatmul.mubr.f32.gmra.mrb[0].mxu0 %v1362
        %v1433 = vpop.f32.mrb[0].mxu0
        %v1434 = vadd.f32 0.0, %v1433
        %v1435 = vpop.f32.mrb[0].mxu0
        %1436 = vdwg.mxu0
        %v1437 = vmul.f32 %v1206, 0.35355338
        %v1438 = vmul.f32 %v1282, 0.35355338
        %v1439 = vmul.f32 %v1358, 0.35355338
        %v1440 = vmul.f32 %v1434, 0.35355338
        %v1442 = vlaneseq
        %v1443 = vshrl.u32 %v1442, 7
        %v1444 = vsub.s32 0, %v1443
        %v1445 = vrot.slane %v621, %v1444
        %v1447 = vadd.f32 %v1437, %v1445
        %v1448 = vadd.f32 %v1438, %v1445
        %v1449 = vadd.f32 %v1439, %v1445
        %v1450 = vadd.f32 %v1440, %v1445
        %v1451 = vsel %vm1132, %v1447, -inf
        %1452 = vmax.xlane.f32.xlu0 %v1451
        %v1453 = vpop.xlane.xlu0 %1452
        %v1454 = vsel %vm1132, %v1448, -inf
        %1455 = vmax.xlane.f32.xlu0 %v1454
        %v1456 = vpop.xlane.xlu0 %1455
        %v1457 = vsel %vm1132, %v1449, -inf
        %1458 = vmax.xlane.f32.xlu0 %v1457
        %v1459 = vpop.xlane.xlu0 %1458
        %v1460 = vsel %vm1132, %v1450, -inf
        %1461 = vmax.xlane.f32.xlu0 %v1460
        %v1462 = vpop.xlane.xlu0 %1461
        %v1463 = vsub.f32 %v1447, %v1453
        %v1464 = vsub.f32 %v1448, %v1456
        %v1465 = vsub.f32 %v1449, %v1459
        %v1466 = vsub.f32 %v1450, %v1462
        %v1467 = vmul.f32 %v1463, 1.442695
        %v1468 = vpow.pop %v1467
        %v1469 = vmul.f32 %v1464, 1.442695
        %v1470 = vpow.pop %v1469
        %v1471 = vmul.f32 %v1465, 1.442695
        %v1472 = vpow.pop %v1471
        %v1473 = vmul.f32 %v1466, 1.442695
        %v1474 = vpow.pop %v1473
        %v1475 = vsel %vm1132, %v1468, 0.0
        %1476 = vadd.xlane.f32.xlu0 %v1475
        %v1477 = vpop.xlane.xlu0 %1476
        %v1478 = vsel %vm1132, %v1470, 0.0
        %1479 = vadd.xlane.f32.xlu0 %v1478
        %v1480 = vpop.xlane.xlu0 %1479
        %v1481 = vsel %vm1132, %v1472, 0.0
        %1482 = vadd.xlane.f32.xlu0 %v1481
        %v1483 = vpop.xlane.xlu0 %1482
        %v1484 = vsel %vm1132, %v1474, 0.0
        %1485 = vadd.xlane.f32.xlu0 %v1484
        %v1486 = vpop.xlane.xlu0 %1485
        %v1487 = vrcp.pop %v1477
        %v1488 = vrcp.pop %v1480
        %v1489 = vrcp.pop %v1483
        %v1490 = vrcp.pop %v1486
        %v1491 = vmul.f32 %v1468, %v1487
        %v1492 = vmul.f32 %v1470, %v1488
        %v1493 = vmul.f32 %v1472, %v1489
        %v1494 = vmul.f32 %v1474, %v1490
        %v1496 = vsel %vm1132, %v1491, 0
        %1498 = vmatprep.subr.mxu0 0.0
        %1499 = vmatpush1.msra.mxu0 %v1128
        %1500 = vmatprep.subr.mxu0 0.0
        %1501 = vmatpush1.msra.mxu0 0.0
        %1502 = vmatprep.subr.mxu0 0.0
        %1503 = vmatpush1.msra.mxu0 0.0
        %1504 = vmatprep.subr.mxu0 0.0
        %1505 = vmatpush1.msra.mxu0 0.0
        %1506 = vmatprep.subr.mxu0 0.0
        %1507 = vmatpush1.msra.mxu0 0.0
        %1508 = vmatprep.subr.mxu0 0.0
        %1509 = vmatpush1.msra.mxu0 0.0
        %1510 = vmatprep.subr.mxu0 0.0
        %1511 = vmatpush1.msra.mxu0 0.0
        %1512 = vmatprep.subr.mxu0 0.0
        %1513 = vmatpush1.msra.mxu0 0.0
        %1514 = vmatprep.subr.mxu0 0.0
        %1515 = vmatpush1.msra.mxu0 0.0
        %1516 = vmatprep.subr.mxu0 0.0
        %1517 = vmatpush1.msra.mxu0 0.0
        %1518 = vmatprep.subr.mxu0 0.0
        %1519 = vmatpush1.msra.mxu0 0.0
        %1520 = vmatprep.subr.mxu0 0.0
        %1521 = vmatpush1.msra.mxu0 0.0
        %1522 = vmatprep.subr.mxu0 0.0
        %1523 = vmatpush1.msra.mxu0 0.0
        %1524 = vmatprep.subr.mxu0 0.0
        %1525 = vmatpush1.msra.mxu0 0.0
        %1526 = vmatprep.subr.mxu0 0.0
        %1527 = vmatpush1.msra.mxu0 0.0
        %1528 = vmatprep.subr.mxu0 0.0
        %1529 = vmatpush1.msra.mxu0 0.0
        %1530 = vmatprep.subr.mxu0 0.0
        %1531 = vmatpush1.msra.mxu0 0.0
        %1532 = vmatprep.subr.mxu0 0.0
        %1533 = vmatpush1.msra.mxu0 0.0
        %1534 = vmatprep.subr.mxu0 0.0
        %1535 = vmatpush1.msra.mxu0 0.0
        %1536 = vmatprep.subr.mxu0 0.0
        %1537 = vmatpush1.msra.mxu0 0.0
        %1538 = vmatprep.subr.mxu0 0.0
        %1539 = vmatpush1.msra.mxu0 0.0
        %1540 = vmatprep.subr.mxu0 0.0
        %1541 = vmatpush1.msra.mxu0 0.0
        %1542 = vmatprep.subr.mxu0 0.0
        %1543 = vmatpush1.msra.mxu0 0.0
        %1544 = vmatprep.subr.mxu0 0.0
        %1545 = vmatpush1.msra.mxu0 0.0
        %1546 = vmatprep.subr.mxu0 0.0
        %1547 = vmatpush1.msra.mxu0 0.0
        %1548 = vmatprep.subr.mxu0 0.0
        %1549 = vmatpush1.msra.mxu0 0.0
        %1550 = vmatprep.subr.mxu0 0.0
        %1551 = vmatpush1.msra.mxu0 0.0
        %1552 = vmatprep.subr.mxu0 0.0
        %1553 = vmatpush1.msra.mxu0 0.0
        %1554 = vmatprep.subr.mxu0 0.0
        %1555 = vmatpush1.msra.mxu0 0.0
        %1556 = vmatprep.subr.mxu0 0.0
        %1557 = vmatpush1.msra.mxu0 0.0
        %1558 = vmatprep.subr.mxu0 0.0
        %1559 = vmatpush1.msra.mxu0 0.0
        %1560 = vmatprep.subr.mxu0 0.0
        %1561 = vmatpush1.msra.mxu0 0.0
        %1562 = vmatprep.mubr.f32.mxu0 0.0
        %1563 = vmatmul.mubr.f32.gmra.mrb[0].mxu0 %v1496
        %v1564 = vpop.f32.mrb[0].mxu0
        %v1565 = vadd.f32 0.0, %v1564
        %v1566 = vpop.f32.mrb[0].mxu0
        %1567 = vdwg.mxu0
        %v1569 = vsel %vm1132, %v1492, 0
        %1571 = vmatprep.subr.mxu0 0.0
        %1572 = vmatpush1.msra.mxu0 %v1129
        %1573 = vmatprep.subr.mxu0 0.0
        %1574 = vmatpush1.msra.mxu0 0.0
        %1575 = vmatprep.subr.mxu0 0.0
        %1576 = vmatpush1.msra.mxu0 0.0
        %1577 = vmatprep.subr.mxu0 0.0
        %1578 = vmatpush1.msra.mxu0 0.0
        %1579 = vmatprep.subr.mxu0 0.0
        %1580 = vmatpush1.msra.mxu0 0.0
        %1581 = vmatprep.subr.mxu0 0.0
        %1582 = vmatpush1.msra.mxu0 0.0
        %1583 = vmatprep.subr.mxu0 0.0
        %1584 = vmatpush1.msra.mxu0 0.0
        %1585 = vmatprep.subr.mxu0 0.0
        %1586 = vmatpush1.msra.mxu0 0.0
        %1587 = vmatprep.subr.mxu0 0.0
        %1588 = vmatpush1.msra.mxu0 0.0
        %1589 = vmatprep.subr.mxu0 0.0
        %1590 = vmatpush1.msra.mxu0 0.0
        %1591 = vmatprep.subr.mxu0 0.0
        %1592 = vmatpush1.msra.mxu0 0.0
        %1593 = vmatprep.subr.mxu0 0.0
        %1594 = vmatpush1.msra.mxu0 0.0
        %1595 = vmatprep.subr.mxu0 0.0
        %1596 = vmatpush1.msra.mxu0 0.0
        %1597 = vmatprep.subr.mxu0 0.0
        %1598 = vmatpush1.msra.mxu0 0.0
        %1599 = vmatprep.subr.mxu0 0.0
        %1600 = vmatpush1.msra.mxu0 0.0
        %1601 = vmatprep.subr.mxu0 0.0
        %1602 = vmatpush1.msra.mxu0 0.0
        %1603 = vmatprep.subr.mxu0 0.0
        %1604 = vmatpush1.msra.mxu0 0.0
        %1605 = vmatprep.subr.mxu0 0.0
        %1606 = vmatpush1.msra.mxu0 0.0
        %1607 = vmatprep.subr.mxu0 0.0
        %1608 = vmatpush1.msra.mxu0 0.0
        %1609 = vmatprep.subr.mxu0 0.0
        %1610 = vmatpush1.msra.mxu0 0.0
        %1611 = vmatprep.subr.mxu0 0.0
        %1612 = vmatpush1.msra.mxu0 0.0
        %1613 = vmatprep.subr.mxu0 0.0
        %1614 = vmatpush1.msra.mxu0 0.0
        %1615 = vmatprep.subr.mxu0 0.0
        %1616 = vmatpush1.msra.mxu0 0.0
        %1617 = vmatprep.subr.mxu0 0.0
        %1618 = vmatpush1.msra.mxu0 0.0
        %1619 = vmatprep.subr.mxu0 0.0
        %1620 = vmatpush1.msra.mxu0 0.0
        %1621 = vmatprep.subr.mxu0 0.0
        %1622 = vmatpush1.msra.mxu0 0.0
        %1623 = vmatprep.subr.mxu0 0.0
        %1624 = vmatpush1.msra.mxu0 0.0
        %1625 = vmatprep.subr.mxu0 0.0
        %1626 = vmatpush1.msra.mxu0 0.0
        %1627 = vmatprep.subr.mxu0 0.0
        %1628 = vmatpush1.msra.mxu0 0.0
        %1629 = vmatprep.subr.mxu0 0.0
        %1630 = vmatpush1.msra.mxu0 0.0
        %1631 = vmatprep.subr.mxu0 0.0
        %1632 = vmatpush1.msra.mxu0 0.0
        %1633 = vmatprep.subr.mxu0 0.0
        %1634 = vmatpush1.msra.mxu0 0.0
        %1635 = vmatprep.mubr.f32.mxu0 0.0
        %1636 = vmatmul.mubr.f32.gmra.mrb[0].mxu0 %v1569
        %v1637 = vpop.f32.mrb[0].mxu0
        %v1638 = vadd.f32 0.0, %v1637
        %v1639 = vpop.f32.mrb[0].mxu0
        %1640 = vdwg.mxu0
        %v1642 = vsel %vm1132, %v1493, 0
        %1644 = vmatprep.subr.mxu0 0.0
        %1645 = vmatpush1.msra.mxu0 %v1130
        %1646 = vmatprep.subr.mxu0 0.0
        %1647 = vmatpush1.msra.mxu0 0.0
        %1648 = vmatprep.subr.mxu0 0.0
        %1649 = vmatpush1.msra.mxu0 0.0
        %1650 = vmatprep.subr.mxu0 0.0
        %1651 = vmatpush1.msra.mxu0 0.0
        %1652 = vmatprep.subr.mxu0 0.0
        %1653 = vmatpush1.msra.mxu0 0.0
        %1654 = vmatprep.subr.mxu0 0.0
        %1655 = vmatpush1.msra.mxu0 0.0
        %1656 = vmatprep.subr.mxu0 0.0
        %1657 = vmatpush1.msra.mxu0 0.0
        %1658 = vmatprep.subr.mxu0 0.0
        %1659 = vmatpush1.msra.mxu0 0.0
        %1660 = vmatprep.subr.mxu0 0.0
        %1661 = vmatpush1.msra.mxu0 0.0
        %1662 = vmatprep.subr.mxu0 0.0
        %1663 = vmatpush1.msra.mxu0 0.0
        %1664 = vmatprep.subr.mxu0 0.0
        %1665 = vmatpush1.msra.mxu0 0.0
        %1666 = vmatprep.subr.mxu0 0.0
        %1667 = vmatpush1.msra.mxu0 0.0
        %1668 = vmatprep.subr.mxu0 0.0
        %1669 = vmatpush1.msra.mxu0 0.0
        %1670 = vmatprep.subr.mxu0 0.0
        %1671 = vmatpush1.msra.mxu0 0.0
        %1672 = vmatprep.subr.mxu0 0.0
        %1673 = vmatpush1.msra.mxu0 0.0
        %1674 = vmatprep.subr.mxu0 0.0
        %1675 = vmatpush1.msra.mxu0 0.0
        %1676 = vmatprep.subr.mxu0 0.0
        %1677 = vmatpush1.msra.mxu0 0.0
        %1678 = vmatprep.subr.mxu0 0.0
        %1679 = vmatpush1.msra.mxu0 0.0
        %1680 = vmatprep.subr.mxu0 0.0
        %1681 = vmatpush1.msra.mxu0 0.0
        %1682 = vmatprep.subr.mxu0 0.0
        %1683 = vmatpush1.msra.mxu0 0.0
        %1684 = vmatprep.subr.mxu0 0.0
        %1685 = vmatpush1.msra.mxu0 0.0
        %1686 = vmatprep.subr.mxu0 0.0
        %1687 = vmatpush1.msra.mxu0 0.0
        %1688 = vmatprep.subr.mxu0 0.0
        %1689 = vmatpush1.msra.mxu0 0.0
        %1690 = vmatprep.subr.mxu0 0.0
        %1691 = vmatpush1.msra.mxu0 0.0
        %1692 = vmatprep.subr.mxu0 0.0
        %1693 = vmatpush1.msra.mxu0 0.0
        %1694 = vmatprep.subr.mxu0 0.0
        %1695 = vmatpush1.msra.mxu0 0.0
        %1696 = vmatprep.subr.mxu0 0.0
        %1697 = vmatpush1.msra.mxu0 0.0
        %1698 = vmatprep.subr.mxu0 0.0
        %1699 = vmatpush1.msra.mxu0 0.0
        %1700 = vmatprep.subr.mxu0 0.0
        %1701 = vmatpush1.msra.mxu0 0.0
        %1702 = vmatprep.subr.mxu0 0.0
        %1703 = vmatpush1.msra.mxu0 0.0
        %1704 = vmatprep.subr.mxu0 0.0
        %1705 = vmatpush1.msra.mxu0 0.0
        %1706 = vmatprep.subr.mxu0 0.0
        %1707 = vmatpush1.msra.mxu0 0.0
        %1708 = vmatprep.mubr.f32.mxu0 0.0
        %1709 = vmatmul.mubr.f32.gmra.mrb[0].mxu0 %v1642
        %v1710 = vpop.f32.mrb[0].mxu0
        %v1711 = vadd.f32 0.0, %v1710
        %v1712 = vpop.f32.mrb[0].mxu0
        %1713 = vdwg.mxu0
        %v1715 = vsel %vm1132, %v1494, 0
        %1717 = vmatprep.subr.mxu0 0.0
        %1718 = vmatpush1.msra.mxu0 %v1131
        %1719 = vmatprep.subr.mxu0 0.0
        %1720 = vmatpush1.msra.mxu0 0.0
        %1721 = vmatprep.subr.mxu0 0.0
        %1722 = vmatpush1.msra.mxu0 0.0
        %1723 = vmatprep.subr.mxu0 0.0
        %1724 = vmatpush1.msra.mxu0 0.0
        %1725 = vmatprep.subr.mxu0 0.0
        %1726 = vmatpush1.msra.mxu0 0.0
        %1727 = vmatprep.subr.mxu0 0.0
        %1728 = vmatpush1.msra.mxu0 0.0
        %1729 = vmatprep.subr.mxu0 0.0
        %1730 = vmatpush1.msra.mxu0 0.0
        %1731 = vmatprep.subr.mxu0 0.0
        %1732 = vmatpush1.msra.mxu0 0.0
        %1733 = vmatprep.subr.mxu0 0.0
        %1734 = vmatpush1.msra.mxu0 0.0
        %1735 = vmatprep.subr.mxu0 0.0
        %1736 = vmatpush1.msra.mxu0 0.0
        %1737 = vmatprep.subr.mxu0 0.0
        %1738 = vmatpush1.msra.mxu0 0.0
        %1739 = vmatprep.subr.mxu0 0.0
        %1740 = vmatpush1.msra.mxu0 0.0
        %1741 = vmatprep.subr.mxu0 0.0
        %1742 = vmatpush1.msra.mxu0 0.0
        %1743 = vmatprep.subr.mxu0 0.0
        %1744 = vmatpush1.msra.mxu0 0.0
        %1745 = vmatprep.subr.mxu0 0.0
        %1746 = vmatpush1.msra.mxu0 0.0
        %1747 = vmatprep.subr.mxu0 0.0
        %1748 = vmatpush1.msra.mxu0 0.0
        %1749 = vmatprep.subr.mxu0 0.0
        %1750 = vmatpush1.msra.mxu0 0.0
        %1751 = vmatprep.subr.mxu0 0.0
        %1752 = vmatpush1.msra.mxu0 0.0
        %1753 = vmatprep.subr.mxu0 0.0
        %1754 = vmatpush1.msra.mxu0 0.0
        %1755 = vmatprep.subr.mxu0 0.0
        %1756 = vmatpush1.msra.mxu0 0.0
        %1757 = vmatprep.subr.mxu0 0.0
        %1758 = vmatpush1.msra.mxu0 0.0
        %1759 = vmatprep.subr.mxu0 0.0
        %1760 = vmatpush1.msra.mxu0 0.0
        %1761 = vmatprep.subr.mxu0 0.0
        %1762 = vmatpush1.msra.mxu0 0.0
        %1763 = vmatprep.subr.mxu0 0.0
        %1764 = vmatpush1.msra.mxu0 0.0
        %1765 = vmatprep.subr.mxu0 0.0
        %1766 = vmatpush1.msra.mxu0 0.0
        %1767 = vmatprep.subr.mxu0 0.0
        %1768 = vmatpush1.msra.mxu0 0.0
        %1769 = vmatprep.subr.mxu0 0.0
        %1770 = vmatpush1.msra.mxu0 0.0
        %1771 = vmatprep.subr.mxu0 0.0
        %1772 = vmatpush1.msra.mxu0 0.0
        %1773 = vmatprep.subr.mxu0 0.0
        %1774 = vmatpush1.msra.mxu0 0.0
        %1775 = vmatprep.subr.mxu0 0.0
        %1776 = vmatpush1.msra.mxu0 0.0
        %1777 = vmatprep.subr.mxu0 0.0
        %1778 = vmatpush1.msra.mxu0 0.0
        %1779 = vmatprep.subr.mxu0 0.0
        %1780 = vmatpush1.msra.mxu0 0.0
        %1781 = vmatprep.mubr.f32.mxu0 0.0
        %1782 = vmatmul.mubr.f32.gmra.mrb[0].mxu0 %v1715
        %v1783 = vpop.f32.mrb[0].mxu0
        %v1784 = vadd.f32 0.0, %v1783
        %v1785 = vpop.f32.mrb[0].mxu0
        %1786 = vdwg.mxu0
        %v1787 = vcombine.low %v1565, %v1711
        %v1788 = vcombine.high %v1565, %v1711
        %v1790 = vunpack.c.l.s4 1983009808
        %v1791 = vunpack.c.0.s8 %v1790
        %v1792 = vlaneseq
        %v1793 = vshrl.u32 %v1792, 7
        %v1794 = vsub.s32 %v1791, %v1793
        %v1795 = vrot.slane %v1787, %v1794
        %v1797 = vunpack.c.l.s4 1983009808
        %v1798 = vunpack.c.0.s8 %v1797
        %v1799 = vlaneseq
        %v1800 = vshrl.u32 %v1799, 7
        %v1801 = vsub.s32 %v1798, %v1800
        %v1802 = vrot.slane %v1788, %v1801
        %v1803 = vcombine.low %v1638, %v1784
        %v1804 = vcombine.high %v1638, %v1784
        %v1806 = vunpack.c.l.s4 1983009808
        %v1807 = vunpack.c.0.s8 %v1806
        %v1808 = vlaneseq
        %v1809 = vshrl.u32 %v1808, 7
        %v1810 = vsub.s32 %v1807, %v1809
        %v1811 = vrot.slane %v1803, %v1810
        %v1813 = vunpack.c.l.s4 1983009808
        %v1814 = vunpack.c.0.s8 %v1813
        %v1815 = vlaneseq
        %v1816 = vshrl.u32 %v1815, 7
        %v1817 = vsub.s32 %v1814, %v1816
        %v1818 = vrot.slane %v1804, %v1817
        %v1819 = vcombine.low %v1795, %v1811
        %v1820 = vcombine.high %v1795, %v1811
        %v1822 = vunpack.c.l.s4 1934713408
        %v1823 = vunpack.c.0.s8 %v1822
        %v1824 = vlaneseq
        %v1825 = vshrl.u32 %v1824, 7
        %v1826 = vsub.s32 %v1823, %v1825
        %v1827 = vrot.slane %v1819, %v1826
        %v1829 = vunpack.c.l.s4 1934713408
        %v1830 = vunpack.c.0.s8 %v1829
        %v1831 = vlaneseq
        %v1832 = vshrl.u32 %v1831, 7
        %v1833 = vsub.s32 %v1830, %v1832
        %v1834 = vrot.slane %v1820, %v1833
        %v1835 = vcombine.low %v1802, %v1818
        %v1836 = vcombine.high %v1802, %v1818
        %v1838 = vunpack.c.l.s4 1934713408
        %v1839 = vunpack.c.0.s8 %v1838
        %v1840 = vlaneseq
        %v1841 = vshrl.u32 %v1840, 7
        %v1842 = vsub.s32 %v1839, %v1841
        %v1843 = vrot.slane %v1835, %v1842
        %v1845 = vunpack.c.l.s4 1934713408
        %v1846 = vunpack.c.0.s8 %v1845
        %v1847 = vlaneseq
        %v1848 = vshrl.u32 %v1847, 7
        %v1849 = vsub.s32 %v1846, %v1848
        %v1850 = vrot.slane %v1836, %v1849
        %v1851 = vcombine.high %v1827, 0.0
        %v1852 = vcombine.high %v1834, 0.0
        %v1853 = vcombine.high %v1843, 0.0
        %v1854 = vcombine.high %v1850, 0.0
        %v1855 = vcombine.low %v1827, %v1834
        %v1857 = vunpack.c.l.s4 1983009808
        %v1858 = vunpack.c.0.s8 %v1857
        %v1859 = vlaneseq
        %v1860 = vshrl.u32 %v1859, 7
        %v1861 = vsub.s32 %v1858, %v1860
        %v1862 = vrot.slane %v1855, %v1861
        %v1863 = vcombine.low %v1851, %v1852
        %v1865 = vunpack.c.l.s4 1983009808
        %v1866 = vunpack.c.0.s8 %v1865
        %v1867 = vlaneseq
        %v1868 = vshrl.u32 %v1867, 7
        %v1869 = vsub.s32 %v1866, %v1868
        %v1870 = vrot.slane %v1863, %v1869
        %v1871 = vcombine.low %v1843, %v1850
        %v1873 = vunpack.c.l.s4 1983009808
        %v1874 = vunpack.c.0.s8 %v1873
        %v1875 = vlaneseq
        %v1876 = vshrl.u32 %v1875, 7
        %v1877 = vsub.s32 %v1874, %v1876
        %v1878 = vrot.slane %v1871, %v1877
        %v1879 = vcombine.low %v1853, %v1854
        %v1881 = vunpack.c.l.s4 1983009808
        %v1882 = vunpack.c.0.s8 %v1881
        %v1883 = vlaneseq
        %v1884 = vshrl.u32 %v1883, 7
        %v1885 = vsub.s32 %v1882, %v1884
        %v1886 = vrot.slane %v1879, %v1885
        %v1887 = vcombine.low %v1862, %v1870
        %v1888 = vcombine.high %v1862, %v1870
        %v1890 = vunpack.c.l.s4 1934713408
        %v1891 = vunpack.c.0.s8 %v1890
        %v1892 = vlaneseq
        %v1893 = vshrl.u32 %v1892, 7
        %v1894 = vsub.s32 %v1891, %v1893
        %v1895 = vrot.slane %v1887, %v1894
        %v1897 = vunpack.c.l.s4 1934713408
        %v1898 = vunpack.c.0.s8 %v1897
        %v1899 = vlaneseq
        %v1900 = vshrl.u32 %v1899, 7
        %v1901 = vsub.s32 %v1898, %v1900
        %v1902 = vrot.slane %v1888, %v1901
        %v1903 = vcombine.low %v1878, %v1886
        %v1904 = vcombine.high %v1878, %v1886
        %v1906 = vunpack.c.l.s4 1934713408
        %v1907 = vunpack.c.0.s8 %v1906
        %v1908 = vlaneseq
        %v1909 = vshrl.u32 %v1908, 7
        %v1910 = vsub.s32 %v1907, %v1909
        %v1911 = vrot.slane %v1903, %v1910
        %v1913 = vunpack.c.l.s4 1934713408
        %v1914 = vunpack.c.0.s8 %v1913
        %v1915 = vlaneseq
        %v1916 = vshrl.u32 %v1915, 7
        %v1917 = vsub.s32 %v1914, %v1916
        %v1918 = vrot.slane %v1904, %v1917
        %v1919 = vcombine.low %v1895, %v1911
        %v1920 = vcombine.high %v1895, %v1911
        %v1921 = vcombine.low %v1902, %v1918
        %v1922 = vcombine.high %v1902, %v1918
        %1924 = vrot.lane.b32.xlu0 %v1920, 8
        %v1925 = vpop.permute.xlu0 %1924
        %1928 = vrot.lane.b32.xlu0 %v1921, 16
        %v1929 = vpop.permute.xlu0 %1928
        %1932 = vrot.lane.b32.xlu0 %v1922, 24
        %v1933 = vpop.permute.xlu0 %1932
        %v1935 = vsel %vm1132, %v1919, %v1925
        %vm1936 = vcmask 130048
        %v1937 = vsel %vm1936, %v1935, %v1929
        %vm1938 = vcmask 195584
        %v1939 = vsel %vm1938, %v1937, %v1933
        %v1940 = vpack.c.bf16 %v1939, %v1939
        %v1941 = vld [vmem:[%s5] sm:$0xf]
        %v1942 = vld [vmem:[%s5 + $0x4] sm:$0xf]
        %v1943 = vld [vmem:[%s5 + $0x8] sm:$0xf]
        %v1944 = vld [vmem:[%s5 + $0xc] sm:$0xf]
        %v1945 = vld [vmem:[%s6] sm:$0x1]
        %v1947 = vlaneseq
        %v1948 = vshrl.u32 %v1947, 7
        %v1949 = vsub.s32 0, %v1948
        %v1950 = vrot.slane %v1945, %v1949
        %v1956 = vunpack.c.l.b16 %v1941
        %v1957 = vunpack.c.l.b16 %v1942
        %v1958 = vunpack.c.l.b16 %v1943
        %v1959 = vunpack.c.l.b16 %v1944
        %v1960 = vpack.c.b16 %v1957, %v1956
        %v1961 = vpack.c.b16 %v1959, %v1958
        %v1965 = vsel %vm646, %v1940, 0
        %1967 = vmatprep.subr.bf16.mxu0 0
        %1968 = vmatpush1.bf16.msra.mxu0 %v1960
        %1969 = vmatprep.subr.bf16.mxu0 0
        %1970 = vmatpush1.bf16.msra.mxu0 %v1961
        %1971 = vmatprep.subr.bf16.mxu0 0
        %1972 = vmatpush1.bf16.msra.mxu0 0
        %1973 = vmatprep.subr.bf16.mxu0 0
        %1974 = vmatpush1.bf16.msra.mxu0 0
        %1975 = vmatprep.subr.bf16.mxu0 0
        %1976 = vmatpush1.bf16.msra.mxu0 0
        %1977 = vmatprep.subr.bf16.mxu0 0
        %1978 = vmatpush1.bf16.msra.mxu0 0
        %1979 = vmatprep.subr.bf16.mxu0 0
        %1980 = vmatpush1.bf16.msra.mxu0 0
        %1981 = vmatprep.subr.bf16.mxu0 0
        %1982 = vmatpush1.bf16.msra.mxu0 0
        %1983 = vmatprep.subr.bf16.mxu0 0
        %1984 = vmatpush1.bf16.msra.mxu0 0
        %1985 = vmatprep.subr.bf16.mxu0 0
        %1986 = vmatpush1.bf16.msra.mxu0 0
        %1987 = vmatprep.subr.bf16.mxu0 0
        %1988 = vmatpush1.bf16.msra.mxu0 0
        %1989 = vmatprep.subr.bf16.mxu0 0
        %1990 = vmatpush1.bf16.msra.mxu0 0
        %1991 = vmatprep.subr.bf16.mxu0 0
        %1992 = vmatpush1.bf16.msra.mxu0 0
        %1993 = vmatprep.subr.bf16.mxu0 0
        %1994 = vmatpush1.bf16.msra.mxu0 0
        %1995 = vmatprep.subr.bf16.mxu0 0
        %1996 = vmatpush1.bf16.msra.mxu0 0
        %1997 = vmatprep.subr.bf16.mxu0 0
        %1998 = vmatpush1.bf16.msra.mxu0 0
        %1999 = vmatprep.mubr.bf16.mxu0 0
        %2000 = vmatmul.mubr.bf16.gmra.mrb[0].mxu0 %v1965
        %v2001 = vpop.f32.mrb[0].mxu0
        %v2002 = vadd.f32 %v1950, %v2001
        %v2003 = vpop.f32.mrb[0].mxu0
        %v2004 = vpop.f32.mrb[0].mxu0
        %v2005 = vpop.f32.mrb[0].mxu0
        %2006 = vdwg.mxu0
        %v2007 = vadd.f32 %v618, %v2002
        %v2008 = vld [vmem:[%s7] sm:$0x1]
        %v2009 = vld [vmem:[%s8] sm:$0x1]
        %v2010 = vsel %vm646, %v2007, 0.0
        %2011 = vadd.xlane.f32.xlu0 %v2010
        %v2012 = vpop.xlane.xlu0 %2011
        %v2013 = vrcp.pop 32.0
        %v2014 = vmul.f32 %v2012, %v2013
        %v2015 = vsub.f32 %v2007, %v2014
        %v2016 = vmul.f32 %v2015, %v2015
        %v2017 = vsel %vm646, %v2016, 0.0
        %2018 = vadd.xlane.f32.xlu0 %v2017
        %v2019 = vpop.xlane.xlu0 %2018
        %v2020 = vmul.f32 %v2019, %v2013
        %v2021 = vadd.f32 %v2020, 1e-05
        %v2022 = vrsqrt.pop %v2021
        %v2023 = vmul.f32 %v2015, %v2022
        %v2025 = vlaneseq
        %v2026 = vshrl.u32 %v2025, 7
        %v2027 = vsub.s32 0, %v2026
        %v2028 = vrot.slane %v2008, %v2027
        %v2030 = vmul.f32 %v2023, %v2028
        %v2032 = vlaneseq
        %v2033 = vshrl.u32 %v2032, 7
        %v2034 = vsub.s32 0, %v2033
        %v2035 = vrot.slane %v2009, %v2034
        %v2037 = vadd.f32 %v2030, %v2035
        %v2038 = vpack.c.bf16 %v2037, %v2037
        %v2039 = vld [vmem:[%s9] sm:$0xf]
        %v2040 = vld [vmem:[%s9 + $0x4] sm:$0xf]
        %v2041 = vld [vmem:[%s9 + $0x8] sm:$0xf]
        %v2042 = vld [vmem:[%s9 + $0xc] sm:$0xf]
        %v2043 = vld [vmem:[#allocation6] sm:$0x1]
        %v2045 = vlaneseq
        %v2046 = vshrl.u32 %v2045, 7
        %v2047 = vsub.s32 0, %v2046
        %v2048 = vrot.slane %v2043, %v2047
        %v2054 = vunpack.c.l.b16 %v2039
        %v2055 = vunpack.c.l.b16 %v2040
        %v2056 = vunpack.c.l.b16 %v2041
        %v2057 = vunpack.c.l.b16 %v2042
        %v2058 = vpack.c.b16 %v2055, %v2054
        %v2059 = vpack.c.b16 %v2057, %v2056
        %v2063 = vsel %vm646, %v2038, 0
        %2065 = vmatprep.subr.bf16.mxu0 0
        %2066 = vmatpush1.bf16.msra.mxu0 %v2058
        %2067 = vmatprep.subr.bf16.mxu0 0
        %2068 = vmatpush1.bf16.msra.mxu0 %v2059
        %2069 = vmatprep.subr.bf16.mxu0 0
        %2070 = vmatpush1.bf16.msra.mxu0 0
        %2071 = vmatprep.subr.bf16.mxu0 0
        %2072 = vmatpush1.bf16.msra.mxu0 0
        %2073 = vmatprep.subr.bf16.mxu0 0
        %2074 = vmatpush1.bf16.msra.mxu0 0
        %2075 = vmatprep.subr.bf16.mxu0 0
        %2076 = vmatpush1.bf16.msra.mxu0 0
        %2077 = vmatprep.subr.bf16.mxu0 0
        %2078 = vmatpush1.bf16.msra.mxu0 0
        %2079 = vmatprep.subr.bf16.mxu0 0
        %2080 = vmatpush1.bf16.msra.mxu0 0
        %2081 = vmatprep.subr.bf16.mxu0 0
        %2082 = vmatpush1.bf16.msra.mxu0 0
        %2083 = vmatprep.subr.bf16.mxu0 0
        %2084 = vmatpush1.bf16.msra.mxu0 0
        %2085 = vmatprep.subr.bf16.mxu0 0
        %2086 = vmatpush1.bf16.msra.mxu0 0
        %2087 = vmatprep.subr.bf16.mxu0 0
        %2088 = vmatpush1.bf16.msra.mxu0 0
        %2089 = vmatprep.subr.bf16.mxu0 0
        %2090 = vmatpush1.bf16.msra.mxu0 0
        %2091 = vmatprep.subr.bf16.mxu0 0
        %2092 = vmatpush1.bf16.msra.mxu0 0
        %2093 = vmatprep.subr.bf16.mxu0 0
        %2094 = vmatpush1.bf16.msra.mxu0 0
        %2095 = vmatprep.subr.bf16.mxu0 0
        %2096 = vmatpush1.bf16.msra.mxu0 0
        %2097 = vmatprep.mubr.bf16.mxu0 0
        %2098 = vmatmul.mubr.bf16.gmra.mrb[0].mxu0 %v2063
        %v2099 = vpop.f32.mrb[0].mxu0
        %v2100 = vadd.f32 %v2048, %v2099
        %v2101 = vpop.f32.mrb[0].mxu0
        %v2102 = vpop.f32.mrb[0].mxu0
        %v2103 = vpop.f32.mrb[0].mxu0
        %2104 = vdwg.mxu0
        %v2105 = vmax.f32 %v2100, 0.0
        %v2106 = vpack.c.bf16 %v2105, %v2105
        %v2107 = vld [vmem:[%s11] sm:$0xf]
        %v2108 = vld [vmem:[%s11 + $0x4] sm:$0xf]
        %v2109 = vld [vmem:[%s11 + $0x8] sm:$0xf]
        %v2110 = vld [vmem:[%s11 + $0xc] sm:$0xf]
        %v2111 = vld [vmem:[%s11 + $0x10] sm:$0xf]
        %v2112 = vld [vmem:[%s11 + $0x14] sm:$0xf]
        %v2113 = vld [vmem:[%s11 + $0x18] sm:$0xf]
        %v2114 = vld [vmem:[%s11 + $0x1c] sm:$0xf]
        %v2115 = vld [vmem:[#allocation7] sm:$0x1]
        %v2117 = vlaneseq
        %v2118 = vshrl.u32 %v2117, 7
        %v2119 = vsub.s32 0, %v2118
        %v2120 = vrot.slane %v2115, %v2119
        %v2130 = vunpack.c.l.b16 %v2107
        %v2131 = vunpack.c.l.b16 %v2108
        %v2132 = vunpack.c.l.b16 %v2109
        %v2133 = vunpack.c.l.b16 %v2110
        %v2134 = vunpack.c.l.b16 %v2111
        %v2135 = vunpack.c.l.b16 %v2112
        %v2136 = vunpack.c.l.b16 %v2113
        %v2137 = vunpack.c.l.b16 %v2114
        %v2138 = vpack.c.b16 %v2131, %v2130
        %v2139 = vpack.c.b16 %v2133, %v2132
        %v2140 = vpack.c.b16 %v2135, %v2134
        %v2141 = vpack.c.b16 %v2137, %v2136
        %vm2146 = vcmask 523264
        %v2148 = vsel %vm2146, %v2106, 0
        %2150 = vmatprep.subr.bf16.mxu0 0
        %2151 = vmatpush1.bf16.msra.mxu0 %v2138
        %2152 = vmatprep.subr.bf16.mxu0 0
        %2153 = vmatpush1.bf16.msra.mxu0 %v2139
        %2154 = vmatprep.subr.bf16.mxu0 0
        %2155 = vmatpush1.bf16.msra.mxu0 %v2140
        %2156 = vmatprep.subr.bf16.mxu0 0
        %2157 = vmatpush1.bf16.msra.mxu0 %v2141
        %2158 = vmatprep.subr.bf16.mxu0 0
        %2159 = vmatpush1.bf16.msra.mxu0 0
        %2160 = vmatprep.subr.bf16.mxu0 0
        %2161 = vmatpush1.bf16.msra.mxu0 0
        %2162 = vmatprep.subr.bf16.mxu0 0
        %2163 = vmatpush1.bf16.msra.mxu0 0
        %2164 = vmatprep.subr.bf16.mxu0 0
        %2165 = vmatpush1.bf16.msra.mxu0 0
        %2166 = vmatprep.subr.bf16.mxu0 0
        %2167 = vmatpush1.bf16.msra.mxu0 0
        %2168 = vmatprep.subr.bf16.mxu0 0
        %2169 = vmatpush1.bf16.msra.mxu0 0
        %2170 = vmatprep.subr.bf16.mxu0 0
        %2171 = vmatpush1.bf16.msra.mxu0 0
        %2172 = vmatprep.subr.bf16.mxu0 0
        %2173 = vmatpush1.bf16.msra.mxu0 0
        %2174 = vmatprep.subr.bf16.mxu0 0
        %2175 = vmatpush1.bf16.msra.mxu0 0
        %2176 = vmatprep.subr.bf16.mxu0 0
        %2177 = vmatpush1.bf16.msra.mxu0 0
        %2178 = vmatprep.subr.bf16.mxu0 0
        %2179 = vmatpush1.bf16.msra.mxu0 0
        %2180 = vmatprep.subr.bf16.mxu0 0
        %2181 = vmatpush1.bf16.msra.mxu0 0
        %2182 = vmatprep.mubr.bf16.mxu0 0
        %2183 = vmatmul.mubr.bf16.gmra.mrb[0].mxu0 %v2148
        %v2184 = vpop.f32.mrb[0].mxu0
        %v2185 = vadd.f32 %v2120, %v2184
        %v2186 = vpop.f32.mrb[0].mxu0
        %v2187 = vpop.f32.mrb[0].mxu0
        %v2188 = vpop.f32.mrb[0].mxu0
        %2189 = vdwg.mxu0
        %v2190 = vadd.f32 %v2037, %v2185
        %v2191 = vld [vmem:[%s13] sm:$0x1]
        %v2192 = vld [vmem:[%s14] sm:$0x1]
        %v2193 = vsel %vm646, %v2190, 0.0
        %2194 = vadd.xlane.f32.xlu0 %v2193
        %v2195 = vpop.xlane.xlu0 %2194
        %v2196 = vmul.f32 %v2195, %v2013
        %v2197 = vsub.f32 %v2190, %v2196
        %v2198 = vmul.f32 %v2197, %v2197
        %v2199 = vsel %vm646, %v2198, 0.0
        %2200 = vadd.xlane.f32.xlu0 %v2199
        %v2201 = vpop.xlane.xlu0 %2200
        %v2202 = vmul.f32 %v2201, %v2013
        %v2203 = vadd.f32 %v2202, 1e-05
        %v2204 = vrsqrt.pop %v2203
        %v2205 = vmul.f32 %v2197, %v2204
        %v2207 = vlaneseq
        %v2208 = vshrl.u32 %v2207, 7
        %v2209 = vsub.s32 0, %v2208
        %v2210 = vrot.slane %v2191, %v2209
        %v2212 = vmul.f32 %v2205, %v2210
        %v2214 = vlaneseq
        %v2215 = vshrl.u32 %v2214, 7
        %v2216 = vsub.s32 0, %v2215
        %v2217 = vrot.slane %v2192, %v2216
        %v2219 = vadd.f32 %v2212, %v2217
        %v2220 = vpack.c.bf16 %v2219, %v2219
        %s2221 = scalar_lea.vmem %s3, 16
        %v2222 = vld [vmem:[%s2221] sm:$0xf]
        %v2223 = vld [vmem:[%s2221 + $0x4] sm:$0xf]
        %v2224 = vld [vmem:[%s2221 + $0x8] sm:$0xf]
        %v2225 = vld [vmem:[%s2221 + $0xc] sm:$0xf]
        %s2226 = scalar_lea.vmem %s4, 1
        %v2227 = vld [vmem:[%s2226] sm:$0x1]
        %v2229 = vlaneseq
        %v2230 = vshrl.u32 %v2229, 7
        %v2231 = vsub.s32 0, %v2230
        %v2232 = vrot.slane %v2227, %v2231
        %v2238 = vunpack.c.l.b16 %v2222
        %v2239 = vunpack.c.l.b16 %v2223
        %v2240 = vunpack.c.l.b16 %v2224
        %v2241 = vunpack.c.l.b16 %v2225
        %v2242 = vpack.c.b16 %v2239, %v2238
        %v2243 = vpack.c.b16 %v2241, %v2240
        %v2247 = vsel %vm646, %v2220, 0
        %2249 = vmatprep.subr.bf16.mxu0 0
        %2250 = vmatpush1.bf16.msra.mxu0 %v2242
        %2251 = vmatprep.subr.bf16.mxu0 0
        %2252 = vmatpush1.bf16.msra.mxu0 %v2243
        %2253 = vmatprep.subr.bf16.mxu0 0
        %2254 = vmatpush1.bf16.msra.mxu0 0
        %2255 = vmatprep.subr.bf16.mxu0 0
        %2256 = vmatpush1.bf16.msra.mxu0 0
        %2257 = vmatprep.subr.bf16.mxu0 0
        %2258 = vmatpush1.bf16.msra.mxu0 0
        %2259 = vmatprep.subr.bf16.mxu0 0
        %2260 = vmatpush1.bf16.msra.mxu0 0
        %2261 = vmatprep.subr.bf16.mxu0 0
        %2262 = vmatpush1.bf16.msra.mxu0 0
        %2263 = vmatprep.subr.bf16.mxu0 0
        %2264 = vmatpush1.bf16.msra.mxu0 0
        %2265 = vmatprep.subr.bf16.mxu0 0
        %2266 = vmatpush1.bf16.msra.mxu0 0
        %2267 = vmatprep.subr.bf16.mxu0 0
        %2268 = vmatpush1.bf16.msra.mxu0 0
        %2269 = vmatprep.subr.bf16.mxu0 0
        %2270 = vmatpush1.bf16.msra.mxu0 0
        %2271 = vmatprep.subr.bf16.mxu0 0
        %2272 = vmatpush1.bf16.msra.mxu0 0
        %2273 = vmatprep.subr.bf16.mxu0 0
        %2274 = vmatpush1.bf16.msra.mxu0 0
        %2275 = vmatprep.subr.bf16.mxu0 0
        %2276 = vmatpush1.bf16.msra.mxu0 0
        %2277 = vmatprep.subr.bf16.mxu0 0
        %2278 = vmatpush1.bf16.msra.mxu0 0
        %2279 = vmatprep.subr.bf16.mxu0 0
        %2280 = vmatpush1.bf16.msra.mxu0 0
        %2281 = vmatprep.mubr.bf16.mxu0 0
        %2282 = vmatmul.mubr.bf16.gmra.mrb[0].mxu0 %v2247
        %v2283 = vpop.f32.mrb[0].mxu0
        %v2284 = vadd.f32 %v2232, %v2283
        %v2285 = vpop.f32.mrb[0].mxu0
        %v2286 = vpop.f32.mrb[0].mxu0
        %v2287 = vpop.f32.mrb[0].mxu0
        %2288 = vdwg.mxu0
        %2290 = vrot.lane.b32.xlu0 %v2284, 120
        %v2291 = vpop.permute.xlu0 %2290
        %2293 = vrot.lane.b32.xlu0 %v2284, 112
        %v2294 = vpop.permute.xlu0 %2293
        %2296 = vrot.lane.b32.xlu0 %v2284, 104
        %v2297 = vpop.permute.xlu0 %2296
        %v2299 = vcombine.low %v2284, %v2294
        %v2300 = vcombine.high %v2284, %v2294
        %v2302 = vunpack.c.l.s4 1983009808
        %v2303 = vunpack.c.0.s8 %v2302
        %v2304 = vlaneseq
        %v2305 = vshrl.u32 %v2304, 7
        %v2306 = vsub.s32 %v2303, %v2305
        %v2307 = vrot.slane %v2299, %v2306
        %v2309 = vunpack.c.l.s4 1983009808
        %v2310 = vunpack.c.0.s8 %v2309
        %v2311 = vlaneseq
        %v2312 = vshrl.u32 %v2311, 7
        %v2313 = vsub.s32 %v2310, %v2312
        %v2314 = vrot.slane %v2300, %v2313
        %v2315 = vcombine.low %v2291, %v2297
        %v2316 = vcombine.high %v2291, %v2297
        %v2318 = vunpack.c.l.s4 1983009808
        %v2319 = vunpack.c.0.s8 %v2318
        %v2320 = vlaneseq
        %v2321 = vshrl.u32 %v2320, 7
        %v2322 = vsub.s32 %v2319, %v2321
        %v2323 = vrot.slane %v2315, %v2322
        %v2325 = vunpack.c.l.s4 1983009808
        %v2326 = vunpack.c.0.s8 %v2325
        %v2327 = vlaneseq
        %v2328 = vshrl.u32 %v2327, 7
        %v2329 = vsub.s32 %v2326, %v2328
        %v2330 = vrot.slane %v2316, %v2329
        %v2331 = vcombine.low %v2307, %v2323
        %v2332 = vcombine.high %v2307, %v2323
        %v2334 = vunpack.c.l.s4 1934713408
        %v2335 = vunpack.c.0.s8 %v2334
        %v2336 = vlaneseq
        %v2337 = vshrl.u32 %v2336, 7
        %v2338 = vsub.s32 %v2335, %v2337
        %v2339 = vrot.slane %v2331, %v2338
        %v2341 = vunpack.c.l.s4 1934713408
        %v2342 = vunpack.c.0.s8 %v2341
        %v2343 = vlaneseq
        %v2344 = vshrl.u32 %v2343, 7
        %v2345 = vsub.s32 %v2342, %v2344
        %v2346 = vrot.slane %v2332, %v2345
        %v2347 = vcombine.low %v2314, %v2330
        %v2348 = vcombine.high %v2314, %v2330
        %v2350 = vunpack.c.l.s4 1934713408
        %v2351 = vunpack.c.0.s8 %v2350
        %v2352 = vlaneseq
        %v2353 = vshrl.u32 %v2352, 7
        %v2354 = vsub.s32 %v2351, %v2353
        %v2355 = vrot.slane %v2347, %v2354
        %v2357 = vunpack.c.l.s4 1934713408
        %v2358 = vunpack.c.0.s8 %v2357
        %v2359 = vlaneseq
        %v2360 = vshrl.u32 %v2359, 7
        %v2361 = vsub.s32 %v2358, %v2360
        %v2362 = vrot.slane %v2348, %v2361
        %v2363 = vcombine.high %v2339, 0.0
        %v2364 = vcombine.high %v2346, 0.0
        %v2365 = vcombine.high %v2355, 0.0
        %v2366 = vcombine.high %v2362, 0.0
        %v2367 = vcombine.low %v2339, %v2346
        %v2369 = vunpack.c.l.s4 1983009808
        %v2370 = vunpack.c.0.s8 %v2369
        %v2371 = vlaneseq
        %v2372 = vshrl.u32 %v2371, 7
        %v2373 = vsub.s32 %v2370, %v2372
        %v2374 = vrot.slane %v2367, %v2373
        %v2375 = vcombine.low %v2363, %v2364
        %v2377 = vunpack.c.l.s4 1983009808
        %v2378 = vunpack.c.0.s8 %v2377
        %v2379 = vlaneseq
        %v2380 = vshrl.u32 %v2379, 7
        %v2381 = vsub.s32 %v2378, %v2380
        %v2382 = vrot.slane %v2375, %v2381
        %v2383 = vcombine.low %v2355, %v2362
        %v2385 = vunpack.c.l.s4 1983009808
        %v2386 = vunpack.c.0.s8 %v2385
        %v2387 = vlaneseq
        %v2388 = vshrl.u32 %v2387, 7
        %v2389 = vsub.s32 %v2386, %v2388
        %v2390 = vrot.slane %v2383, %v2389
        %v2391 = vcombine.low %v2365, %v2366
        %v2393 = vunpack.c.l.s4 1983009808
        %v2394 = vunpack.c.0.s8 %v2393
        %v2395 = vlaneseq
        %v2396 = vshrl.u32 %v2395, 7
        %v2397 = vsub.s32 %v2394, %v2396
        %v2398 = vrot.slane %v2391, %v2397
        %v2399 = vcombine.low %v2374, %v2382
        %v2400 = vcombine.high %v2374, %v2382
        %v2402 = vunpack.c.l.s4 1934713408
        %v2403 = vunpack.c.0.s8 %v2402
        %v2404 = vlaneseq
        %v2405 = vshrl.u32 %v2404, 7
        %v2406 = vsub.s32 %v2403, %v2405
        %v2407 = vrot.slane %v2399, %v2406
        %v2409 = vunpack.c.l.s4 1934713408
        %v2410 = vunpack.c.0.s8 %v2409
        %v2411 = vlaneseq
        %v2412 = vshrl.u32 %v2411, 7
        %v2413 = vsub.s32 %v2410, %v2412
        %v2414 = vrot.slane %v2400, %v2413
        %v2415 = vcombine.low %v2390, %v2398
        %v2416 = vcombine.high %v2390, %v2398
        %v2418 = vunpack.c.l.s4 1934713408
        %v2419 = vunpack.c.0.s8 %v2418
        %v2420 = vlaneseq
        %v2421 = vshrl.u32 %v2420, 7
        %v2422 = vsub.s32 %v2419, %v2421
        %v2423 = vrot.slane %v2415, %v2422
        %v2425 = vunpack.c.l.s4 1934713408
        %v2426 = vunpack.c.0.s8 %v2425
        %v2427 = vlaneseq
        %v2428 = vshrl.u32 %v2427, 7
        %v2429 = vsub.s32 %v2426, %v2428
        %v2430 = vrot.slane %v2416, %v2429
        %v2431 = vcombine.low %v2407, %v2423
        %v2432 = vcombine.high %v2407, %v2423
        %v2433 = vcombine.low %v2414, %v2430
        %v2434 = vcombine.high %v2414, %v2430
        %2435 = vrot.lane.b32.xlu0 %v2284, 96
        %v2436 = vpop.permute.xlu0 %2435
        %2437 = vrot.lane.b32.xlu0 %v2291, 96
        %v2438 = vpop.permute.xlu0 %2437
        %2439 = vrot.lane.b32.xlu0 %v2294, 96
        %v2440 = vpop.permute.xlu0 %2439
        %2441 = vrot.lane.b32.xlu0 %v2297, 96
        %v2442 = vpop.permute.xlu0 %2441
        %v2447 = vcombine.low %v2436, %v2440
        %v2448 = vcombine.high %v2436, %v2440
        %v2450 = vunpack.c.l.s4 1983009808
        %v2451 = vunpack.c.0.s8 %v2450
        %v2452 = vlaneseq
        %v2453 = vshrl.u32 %v2452, 7
        %v2454 = vsub.s32 %v2451, %v2453
        %v2455 = vrot.slane %v2447, %v2454
        %v2457 = vunpack.c.l.s4 1983009808
        %v2458 = vunpack.c.0.s8 %v2457
        %v2459 = vlaneseq
        %v2460 = vshrl.u32 %v2459, 7
        %v2461 = vsub.s32 %v2458, %v2460
        %v2462 = vrot.slane %v2448, %v2461
        %v2463 = vcombine.low %v2438, %v2442
        %v2464 = vcombine.high %v2438, %v2442
        %v2466 = vunpack.c.l.s4 1983009808
        %v2467 = vunpack.c.0.s8 %v2466
        %v2468 = vlaneseq
        %v2469 = vshrl.u32 %v2468, 7
        %v2470 = vsub.s32 %v2467, %v2469
        %v2471 = vrot.slane %v2463, %v2470
        %v2473 = vunpack.c.l.s4 1983009808
        %v2474 = vunpack.c.0.s8 %v2473
        %v2475 = vlaneseq
        %v2476 = vshrl.u32 %v2475, 7
        %v2477 = vsub.s32 %v2474, %v2476
        %v2478 = vrot.slane %v2464, %v2477
        %v2479 = vcombine.low %v2455, %v2471
        %v2480 = vcombine.high %v2455, %v2471
        %v2482 = vunpack.c.l.s4 1934713408
        %v2483 = vunpack.c.0.s8 %v2482
        %v2484 = vlaneseq
        %v2485 = vshrl.u32 %v2484, 7
        %v2486 = vsub.s32 %v2483, %v2485
        %v2487 = vrot.slane %v2479, %v2486
        %v2489 = vunpack.c.l.s4 1934713408
        %v2490 = vunpack.c.0.s8 %v2489
        %v2491 = vlaneseq
        %v2492 = vshrl.u32 %v2491, 7
        %v2493 = vsub.s32 %v2490, %v2492
        %v2494 = vrot.slane %v2480, %v2493
        %v2495 = vcombine.low %v2462, %v2478
        %v2496 = vcombine.high %v2462, %v2478
        %v2498 = vunpack.c.l.s4 1934713408
        %v2499 = vunpack.c.0.s8 %v2498
        %v2500 = vlaneseq
        %v2501 = vshrl.u32 %v2500, 7
        %v2502 = vsub.s32 %v2499, %v2501
        %v2503 = vrot.slane %v2495, %v2502
        %v2505 = vunpack.c.l.s4 1934713408
        %v2506 = vunpack.c.0.s8 %v2505
        %v2507 = vlaneseq
        %v2508 = vshrl.u32 %v2507, 7
        %v2509 = vsub.s32 %v2506, %v2508
        %v2510 = vrot.slane %v2496, %v2509
        %v2511 = vcombine.high %v2487, 0.0
        %v2512 = vcombine.high %v2494, 0.0
        %v2513 = vcombine.high %v2503, 0.0
        %v2514 = vcombine.high %v2510, 0.0
        %v2515 = vcombine.low %v2487, %v2494
        %v2517 = vunpack.c.l.s4 1983009808
        %v2518 = vunpack.c.0.s8 %v2517
        %v2519 = vlaneseq
        %v2520 = vshrl.u32 %v2519, 7
        %v2521 = vsub.s32 %v2518, %v2520
        %v2522 = vrot.slane %v2515, %v2521
        %v2523 = vcombine.low %v2511, %v2512
        %v2525 = vunpack.c.l.s4 1983009808
        %v2526 = vunpack.c.0.s8 %v2525
        %v2527 = vlaneseq
        %v2528 = vshrl.u32 %v2527, 7
        %v2529 = vsub.s32 %v2526, %v2528
        %v2530 = vrot.slane %v2523, %v2529
        %v2531 = vcombine.low %v2503, %v2510
        %v2533 = vunpack.c.l.s4 1983009808
        %v2534 = vunpack.c.0.s8 %v2533
        %v2535 = vlaneseq
        %v2536 = vshrl.u32 %v2535, 7
        %v2537 = vsub.s32 %v2534, %v2536
        %v2538 = vrot.slane %v2531, %v2537
        %v2539 = vcombine.low %v2513, %v2514
        %v2541 = vunpack.c.l.s4 1983009808
        %v2542 = vunpack.c.0.s8 %v2541
        %v2543 = vlaneseq
        %v2544 = vshrl.u32 %v2543, 7
        %v2545 = vsub.s32 %v2542, %v2544
        %v2546 = vrot.slane %v2539, %v2545
        %v2547 = vcombine.low %v2522, %v2530
        %v2548 = vcombine.high %v2522, %v2530
        %v2550 = vunpack.c.l.s4 1934713408
        %v2551 = vunpack.c.0.s8 %v2550
        %v2552 = vlaneseq
        %v2553 = vshrl.u32 %v2552, 7
        %v2554 = vsub.s32 %v2551, %v2553
        %v2555 = vrot.slane %v2547, %v2554
        %v2557 = vunpack.c.l.s4 1934713408
        %v2558 = vunpack.c.0.s8 %v2557
        %v2559 = vlaneseq
        %v2560 = vshrl.u32 %v2559, 7
        %v2561 = vsub.s32 %v2558, %v2560
        %v2562 = vrot.slane %v2548, %v2561
        %v2563 = vcombine.low %v2538, %v2546
        %v2564 = vcombine.high %v2538, %v2546
        %v2566 = vunpack.c.l.s4 1934713408
        %v2567 = vunpack.c.0.s8 %v2566
        %v2568 = vlaneseq
        %v2569 = vshrl.u32 %v2568, 7
        %v2570 = vsub.s32 %v2567, %v2569
        %v2571 = vrot.slane %v2563, %v2570
        %v2573 = vunpack.c.l.s4 1934713408
        %v2574 = vunpack.c.0.s8 %v2573
        %v2575 = vlaneseq
        %v2576 = vshrl.u32 %v2575, 7
        %v2577 = vsub.s32 %v2574, %v2576
        %v2578 = vrot.slane %v2564, %v2577
        %v2579 = vcombine.low %v2555, %v2571
        %v2580 = vcombine.high %v2555, %v2571
        %v2581 = vcombine.low %v2562, %v2578
        %v2582 = vcombine.high %v2562, %v2578
        %2583 = vrot.lane.b32.xlu0 %v2284, 64
        %v2584 = vpop.permute.xlu0 %2583
        %2585 = vrot.lane.b32.xlu0 %v2291, 64
        %v2586 = vpop.permute.xlu0 %2585
        %2587 = vrot.lane.b32.xlu0 %v2294, 64
        %v2588 = vpop.permute.xlu0 %2587
        %2589 = vrot.lane.b32.xlu0 %v2297, 64
        %v2590 = vpop.permute.xlu0 %2589
        %v2595 = vcombine.low %v2584, %v2588
        %v2596 = vcombine.high %v2584, %v2588
        %v2598 = vunpack.c.l.s4 1983009808
        %v2599 = vunpack.c.0.s8 %v2598
        %v2600 = vlaneseq
        %v2601 = vshrl.u32 %v2600, 7
        %v2602 = vsub.s32 %v2599, %v2601
        %v2603 = vrot.slane %v2595, %v2602
        %v2605 = vunpack.c.l.s4 1983009808
        %v2606 = vunpack.c.0.s8 %v2605
        %v2607 = vlaneseq
        %v2608 = vshrl.u32 %v2607, 7
        %v2609 = vsub.s32 %v2606, %v2608
        %v2610 = vrot.slane %v2596, %v2609
        %v2611 = vcombine.low %v2586, %v2590
        %v2612 = vcombine.high %v2586, %v2590
        %v2614 = vunpack.c.l.s4 1983009808
        %v2615 = vunpack.c.0.s8 %v2614
        %v2616 = vlaneseq
        %v2617 = vshrl.u32 %v2616, 7
        %v2618 = vsub.s32 %v2615, %v2617
        %v2619 = vrot.slane %v2611, %v2618
        %v2621 = vunpack.c.l.s4 1983009808
        %v2622 = vunpack.c.0.s8 %v2621
        %v2623 = vlaneseq
        %v2624 = vshrl.u32 %v2623, 7
        %v2625 = vsub.s32 %v2622, %v2624
        %v2626 = vrot.slane %v2612, %v2625
        %v2627 = vcombine.low %v2603, %v2619
        %v2628 = vcombine.high %v2603, %v2619
        %v2630 = vunpack.c.l.s4 1934713408
        %v2631 = vunpack.c.0.s8 %v2630
        %v2632 = vlaneseq
        %v2633 = vshrl.u32 %v2632, 7
        %v2634 = vsub.s32 %v2631, %v2633
        %v2635 = vrot.slane %v2627, %v2634
        %v2637 = vunpack.c.l.s4 1934713408
        %v2638 = vunpack.c.0.s8 %v2637
        %v2639 = vlaneseq
        %v2640 = vshrl.u32 %v2639, 7
        %v2641 = vsub.s32 %v2638, %v2640
        %v2642 = vrot.slane %v2628, %v2641
        %v2643 = vcombine.low %v2610, %v2626
        %v2644 = vcombine.high %v2610, %v2626
        %v2646 = vunpack.c.l.s4 1934713408
        %v2647 = vunpack.c.0.s8 %v2646
        %v2648 = vlaneseq
        %v2649 = vshrl.u32 %v2648, 7
        %v2650 = vsub.s32 %v2647, %v2649
        %v2651 = vrot.slane %v2643, %v2650
        %v2653 = vunpack.c.l.s4 1934713408
        %v2654 = vunpack.c.0.s8 %v2653
        %v2655 = vlaneseq
        %v2656 = vshrl.u32 %v2655, 7
        %v2657 = vsub.s32 %v2654, %v2656
        %v2658 = vrot.slane %v2644, %v2657
        %v2659 = vcombine.high %v2635, 0.0
        %v2660 = vcombine.high %v2642, 0.0
        %v2661 = vcombine.high %v2651, 0.0
        %v2662 = vcombine.high %v2658, 0.0
        %v2663 = vcombine.low %v2635, %v2642
        %v2665 = vunpack.c.l.s4 1983009808
        %v2666 = vunpack.c.0.s8 %v2665
        %v2667 = vlaneseq
        %v2668 = vshrl.u32 %v2667, 7
        %v2669 = vsub.s32 %v2666, %v2668
        %v2670 = vrot.slane %v2663, %v2669
        %v2671 = vcombine.low %v2659, %v2660
        %v2673 = vunpack.c.l.s4 1983009808
        %v2674 = vunpack.c.0.s8 %v2673
        %v2675 = vlaneseq
        %v2676 = vshrl.u32 %v2675, 7
        %v2677 = vsub.s32 %v2674, %v2676
        %v2678 = vrot.slane %v2671, %v2677
        %v2679 = vcombine.low %v2651, %v2658
        %v2681 = vunpack.c.l.s4 1983009808
        %v2682 = vunpack.c.0.s8 %v2681
        %v2683 = vlaneseq
        %v2684 = vshrl.u32 %v2683, 7
        %v2685 = vsub.s32 %v2682, %v2684
        %v2686 = vrot.slane %v2679, %v2685
        %v2687 = vcombine.low %v2661, %v2662
        %v2689 = vunpack.c.l.s4 1983009808
        %v2690 = vunpack.c.0.s8 %v2689
        %v2691 = vlaneseq
        %v2692 = vshrl.u32 %v2691, 7
        %v2693 = vsub.s32 %v2690, %v2692
        %v2694 = vrot.slane %v2687, %v2693
        %v2695 = vcombine.low %v2670, %v2678
        %v2696 = vcombine.high %v2670, %v2678
        %v2698 = vunpack.c.l.s4 1934713408
        %v2699 = vunpack.c.0.s8 %v2698
        %v2700 = vlaneseq
        %v2701 = vshrl.u32 %v2700, 7
        %v2702 = vsub.s32 %v2699, %v2701
        %v2703 = vrot.slane %v2695, %v2702
        %v2705 = vunpack.c.l.s4 1934713408
        %v2706 = vunpack.c.0.s8 %v2705
        %v2707 = vlaneseq
        %v2708 = vshrl.u32 %v2707, 7
        %v2709 = vsub.s32 %v2706, %v2708
        %v2710 = vrot.slane %v2696, %v2709
        %v2711 = vcombine.low %v2686, %v2694
        %v2712 = vcombine.high %v2686, %v2694
        %v2714 = vunpack.c.l.s4 1934713408
        %v2715 = vunpack.c.0.s8 %v2714
        %v2716 = vlaneseq
        %v2717 = vshrl.u32 %v2716, 7
        %v2718 = vsub.s32 %v2715, %v2717
        %v2719 = vrot.slane %v2711, %v2718
        %v2721 = vunpack.c.l.s4 1934713408
        %v2722 = vunpack.c.0.s8 %v2721
        %v2723 = vlaneseq
        %v2724 = vshrl.u32 %v2723, 7
        %v2725 = vsub.s32 %v2722, %v2724
        %v2726 = vrot.slane %v2712, %v2725
        %v2727 = vcombine.low %v2703, %v2719
        %v2728 = vcombine.high %v2703, %v2719
        %v2729 = vcombine.low %v2710, %v2726
        %v2730 = vcombine.high %v2710, %v2726
        %v2732 = vsel %vm1132, %v2431, 0
        %v2735 = vsel %vm1132, %v2579, 0
        %2737 = vmatprep.subr.mxu0 0.0
        %2738 = vmatpush1.xpose.msra.mxu0 %v2735
        %2739 = vmatprep.subr.mxu0 0.0
        %2740 = vmatpush1.xpose.msra.mxu0 0.0
        %2741 = vmatprep.subr.mxu0 0.0
        %2742 = vmatpush1.xpose.msra.mxu0 0.0
        %2743 = vmatprep.subr.mxu0 0.0
        %2744 = vmatpush1.xpose.msra.mxu0 0.0
        %2745 = vmatprep.subr.mxu0 0.0
        %2746 = vmatpush1.xpose.msra.mxu0 0.0
        %2747 = vmatprep.subr.mxu0 0.0
        %2748 = vmatpush1.xpose.msra.mxu0 0.0
        %2749 = vmatprep.subr.mxu0 0.0
        %2750 = vmatpush1.xpose.msra.mxu0 0.0
        %2751 = vmatprep.subr.mxu0 0.0
        %2752 = vmatpush1.xpose.msra.mxu0 0.0
        %2753 = vmatprep.subr.mxu0 0.0
        %2754 = vmatpush1.xpose.msra.mxu0 0.0
        %2755 = vmatprep.subr.mxu0 0.0
        %2756 = vmatpush1.xpose.msra.mxu0 0.0
        %2757 = vmatprep.subr.mxu0 0.0
        %2758 = vmatpush1.xpose.msra.mxu0 0.0
        %2759 = vmatprep.subr.mxu0 0.0
        %2760 = vmatpush1.xpose.msra.mxu0 0.0
        %2761 = vmatprep.subr.mxu0 0.0
        %2762 = vmatpush1.xpose.msra.mxu0 0.0
        %2763 = vmatprep.subr.mxu0 0.0
        %2764 = vmatpush1.xpose.msra.mxu0 0.0
        %2765 = vmatprep.subr.mxu0 0.0
        %2766 = vmatpush1.xpose.msra.mxu0 0.0
        %2767 = vmatprep.subr.mxu0 0.0
        %2768 = vmatpush1.xpose.msra.mxu0 0.0
        %2769 = vmatprep.subr.mxu0 0.0
        %2770 = vmatpush1.xpose.msra.mxu0 0.0
        %2771 = vmatprep.subr.mxu0 0.0
        %2772 = vmatpush1.xpose.msra.mxu0 0.0
        %2773 = vmatprep.subr.mxu0 0.0
        %2774 = vmatpush1.xpose.msra.mxu0 0.0
        %2775 = vmatprep.subr.mxu0 0.0
        %2776 = vmatpush1.xpose.msra.mxu0 0.0
        %2777 = vmatprep.subr.mxu0 0.0
        %2778 = vmatpush1.xpose.msra.mxu0 0.0
        %2779 = vmatprep.subr.mxu0 0.0
        %2780 = vmatpush1.xpose.msra.mxu0 0.0
        %2781 = vmatprep.subr.mxu0 0.0
        %2782 = vmatpush1.xpose.msra.mxu0 0.0
        %2783 = vmatprep.subr.mxu0 0.0
        %2784 = vmatpush1.xpose.msra.mxu0 0.0
        %2785 = vmatprep.subr.mxu0 0.0
        %2786 = vmatpush1.xpose.msra.mxu0 0.0
        %2787 = vmatprep.subr.mxu0 0.0
        %2788 = vmatpush1.xpose.msra.mxu0 0.0
        %2789 = vmatprep.subr.mxu0 0.0
        %2790 = vmatpush1.xpose.msra.mxu0 0.0
        %2791 = vmatprep.subr.mxu0 0.0
        %2792 = vmatpush1.xpose.msra.mxu0 0.0
        %2793 = vmatprep.subr.mxu0 0.0
        %2794 = vmatpush1.xpose.msra.mxu0 0.0
        %2795 = vmatprep.subr.mxu0 0.0
        %2796 = vmatpush1.xpose.msra.mxu0 0.0
        %2797 = vmatprep.subr.mxu0 0.0
        %2798 = vmatpush1.xpose.msra.mxu0 0.0
        %2799 = vmatprep.subr.mxu0 0.0
        %2800 = vmatpush1.xpose.msra.mxu0 0.0
        %2801 = vmatprep.mubr.f32.mxu0 0.0
        %2802 = vmatmul.mubr.f32.gmra.mrb[0].mxu0 %v2732
        %v2803 = vpop.f32.mrb[0].mxu0
        %v2804 = vadd.f32 0.0, %v2803
        %v2805 = vpop.f32.mrb[0].mxu0
        %2806 = vdwg.mxu0
        %v2808 = vsel %vm1132, %v2432, 0
        %v2811 = vsel %vm1132, %v2580, 0
        %2813 = vmatprep.subr.mxu0 0.0
        %2814 = vmatpush1.xpose.msra.mxu0 %v2811
        %2815 = vmatprep.subr.mxu0 0.0
        %2816 = vmatpush1.xpose.msra.mxu0 0.0
        %2817 = vmatprep.subr.mxu0 0.0
        %2818 = vmatpush1.xpose.msra.mxu0 0.0
        %2819 = vmatprep.subr.mxu0 0.0
        %2820 = vmatpush1.xpose.msra.mxu0 0.0
        %2821 = vmatprep.subr.mxu0 0.0
        %2822 = vmatpush1.xpose.msra.mxu0 0.0
        %2823 = vmatprep.subr.mxu0 0.0
        %2824 = vmatpush1.xpose.msra.mxu0 0.0
        %2825 = vmatprep.subr.mxu0 0.0
        %2826 = vmatpush1.xpose.msra.mxu0 0.0
        %2827 = vmatprep.subr.mxu0 0.0
        %2828 = vmatpush1.xpose.msra.mxu0 0.0
        %2829 = vmatprep.subr.mxu0 0.0
        %2830 = vmatpush1.xpose.msra.mxu0 0.0
        %2831 = vmatprep.subr.mxu0 0.0
        %2832 = vmatpush1.xpose.msra.mxu0 0.0
        %2833 = vmatprep.subr.mxu0 0.0
        %2834 = vmatpush1.xpose.msra.mxu0 0.0
        %2835 = vmatprep.subr.mxu0 0.0
        %2836 = vmatpush1.xpose.msra.mxu0 0.0
        %2837 = vmatprep.subr.mxu0 0.0
        %2838 = vmatpush1.xpose.msra.mxu0 0.0
        %2839 = vmatprep.subr.mxu0 0.0
        %2840 = vmatpush1.xpose.msra.mxu0 0.0
        %2841 = vmatprep.subr.mxu0 0.0
        %2842 = vmatpush1.xpose.msra.mxu0 0.0
        %2843 = vmatprep.subr.mxu0 0.0
        %2844 = vmatpush1.xpose.msra.mxu0 0.0
        %2845 = vmatprep.subr.mxu0 0.0
        %2846 = vmatpush1.xpose.msra.mxu0 0.0
        %2847 = vmatprep.subr.mxu0 0.0
        %2848 = vmatpush1.xpose.msra.mxu0 0.0
        %2849 = vmatprep.subr.mxu0 0.0
        %2850 = vmatpush1.xpose.msra.mxu0 0.0
        %2851 = vmatprep.subr.mxu0 0.0
        %2852 = vmatpush1.xpose.msra.mxu0 0.0
        %2853 = vmatprep.subr.mxu0 0.0
        %2854 = vmatpush1.xpose.msra.mxu0 0.0
        %2855 = vmatprep.subr.mxu0 0.0
        %2856 = vmatpush1.xpose.msra.mxu0 0.0
        %2857 = vmatprep.subr.mxu0 0.0
        %2858 = vmatpush1.xpose.msra.mxu0 0.0
        %2859 = vmatprep.subr.mxu0 0.0
        %2860 = vmatpush1.xpose.msra.mxu0 0.0
        %2861 = vmatprep.subr.mxu0 0.0
        %2862 = vmatpush1.xpose.msra.mxu0 0.0
        %2863 = vmatprep.subr.mxu0 0.0
        %2864 = vmatpush1.xpose.msra.mxu0 0.0
        %2865 = vmatprep.subr.mxu0 0.0
        %2866 = vmatpush1.xpose.msra.mxu0 0.0
        %2867 = vmatprep.subr.mxu0 0.0
        %2868 = vmatpush1.xpose.msra.mxu0 0.0
        %2869 = vmatprep.subr.mxu0 0.0
        %2870 = vmatpush1.xpose.msra.mxu0 0.0
        %2871 = vmatprep.subr.mxu0 0.0
        %2872 = vmatpush1.xpose.msra.mxu0 0.0
        %2873 = vmatprep.subr.mxu0 0.0
        %2874 = vmatpush1.xpose.msra.mxu0 0.0
        %2875 = vmatprep.subr.mxu0 0.0
        %2876 = vmatpush1.xpose.msra.mxu0 0.0
        %2877 = vmatprep.mubr.f32.mxu0 0.0
        %2878 = vmatmul.mubr.f32.gmra.mrb[0].mxu0 %v2808
        %v2879 = vpop.f32.mrb[0].mxu0
        %v2880 = vadd.f32 0.0, %v2879
        %v2881 = vpop.f32.mrb[0].mxu0
        %2882 = vdwg.mxu0
        %v2884 = vsel %vm1132, %v2433, 0
        %v2887 = vsel %vm1132, %v2581, 0
        %2889 = vmatprep.subr.mxu0 0.0
        %2890 = vmatpush1.xpose.msra.mxu0 %v2887
        %2891 = vmatprep.subr.mxu0 0.0
        %2892 = vmatpush1.xpose.msra.mxu0 0.0
        %2893 = vmatprep.subr.mxu0 0.0
        %2894 = vmatpush1.xpose.msra.mxu0 0.0
        %2895 = vmatprep.subr.mxu0 0.0
        %2896 = vmatpush1.xpose.msra.mxu0 0.0
        %2897 = vmatprep.subr.mxu0 0.0
        %2898 = vmatpush1.xpose.msra.mxu0 0.0
        %2899 = vmatprep.subr.mxu0 0.0
        %2900 = vmatpush1.xpose.msra.mxu0 0.0
        %2901 = vmatprep.subr.mxu0 0.0
        %2902 = vmatpush1.xpose.msra.mxu0 0.0
        %2903 = vmatprep.subr.mxu0 0.0
        %2904 = vmatpush1.xpose.msra.mxu0 0.0
        %2905 = vmatprep.subr.mxu0 0.0
        %2906 = vmatpush1.xpose.msra.mxu0 0.0
        %2907 = vmatprep.subr.mxu0 0.0
        %2908 = vmatpush1.xpose.msra.mxu0 0.0
        %2909 = vmatprep.subr.mxu0 0.0
        %2910 = vmatpush1.xpose.msra.mxu0 0.0
        %2911 = vmatprep.subr.mxu0 0.0
        %2912 = vmatpush1.xpose.msra.mxu0 0.0
        %2913 = vmatprep.subr.mxu0 0.0
        %2914 = vmatpush1.xpose.msra.mxu0 0.0
        %2915 = vmatprep.subr.mxu0 0.0
        %2916 = vmatpush1.xpose.msra.mxu0 0.0
        %2917 = vmatprep.subr.mxu0 0.0
        %2918 = vmatpush1.xpose.msra.mxu0 0.0
        %2919 = vmatprep.subr.mxu0 0.0
        %2920 = vmatpush1.xpose.msra.mxu0 0.0
        %2921 = vmatprep.subr.mxu0 0.0
        %2922 = vmatpush1.xpose.msra.mxu0 0.0
        %2923 = vmatprep.subr.mxu0 0.0
        %2924 = vmatpush1.xpose.msra.mxu0 0.0
        %2925 = vmatprep.subr.mxu0 0.0
        %2926 = vmatpush1.xpose.msra.mxu0 0.0
        %2927 = vmatprep.subr.mxu0 0.0
        %2928 = vmatpush1.xpose.msra.mxu0 0.0
        %2929 = vmatprep.subr.mxu0 0.0
        %2930 = vmatpush1.xpose.msra.mxu0 0.0
        %2931 = vmatprep.subr.mxu0 0.0
        %2932 = vmatpush1.xpose.msra.mxu0 0.0
        %2933 = vmatprep.subr.mxu0 0.0
        %2934 = vmatpush1.xpose.msra.mxu0 0.0
        %2935 = vmatprep.subr.mxu0 0.0
        %2936 = vmatpush1.xpose.msra.mxu0 0.0
        %2937 = vmatprep.subr.mxu0 0.0
        %2938 = vmatpush1.xpose.msra.mxu0 0.0
        %2939 = vmatprep.subr.mxu0 0.0
        %2940 = vmatpush1.xpose.msra.mxu0 0.0
        %2941 = vmatprep.subr.mxu0 0.0
        %2942 = vmatpush1.xpose.msra.mxu0 0.0
        %2943 = vmatprep.subr.mxu0 0.0
        %2944 = vmatpush1.xpose.msra.mxu0 0.0
        %2945 = vmatprep.subr.mxu0 0.0
        %2946 = vmatpush1.xpose.msra.mxu0 0.0
        %2947 = vmatprep.subr.mxu0 0.0
        %2948 = vmatpush1.xpose.msra.mxu0 0.0
        %2949 = vmatprep.subr.mxu0 0.0
        %2950 = vmatpush1.xpose.msra.mxu0 0.0
        %2951 = vmatprep.subr.mxu0 0.0
        %2952 = vmatpush1.xpose.msra.mxu0 0.0
        %2953 = vmatprep.mubr.f32.mxu0 0.0
        %2954 = vmatmul.mubr.f32.gmra.mrb[0].mxu0 %v2884
        %v2955 = vpop.f32.mrb[0].mxu0
        %v2956 = vadd.f32 0.0, %v2955
        %v2957 = vpop.f32.mrb[0].mxu0
        %2958 = vdwg.mxu0
        %v2960 = vsel %vm1132, %v2434, 0
        %v2963 = vsel %vm1132, %v2582, 0
        %2965 = vmatprep.subr.mxu0 0.0
        %2966 = vmatpush1.xpose.msra.mxu0 %v2963
        %2967 = vmatprep.subr.mxu0 0.0
        %2968 = vmatpush1.xpose.msra.mxu0 0.0
        %2969 = vmatprep.subr.mxu0 0.0
        %2970 = vmatpush1.xpose.msra.mxu0 0.0
        %2971 = vmatprep.subr.mxu0 0.0
        %2972 = vmatpush1.xpose.msra.mxu0 0.0
        %2973 = vmatprep.subr.mxu0 0.0
        %2974 = vmatpush1.xpose.msra.mxu0 0.0
        %2975 = vmatprep.subr.mxu0 0.0
        %2976 = vmatpush1.xpose.msra.mxu0 0.0
        %2977 = vmatprep.subr.mxu0 0.0
        %2978 = vmatpush1.xpose.msra.mxu0 0.0
        %2979 = vmatprep.subr.mxu0 0.0
        %2980 = vmatpush1.xpose.msra.mxu0 0.0
        %2981 = vmatprep.subr.mxu0 0.0
        %2982 = vmatpush1.xpose.msra.mxu0 0.0
        %2983 = vmatprep.subr.mxu0 0.0
        %2984 = vmatpush1.xpose.msra.mxu0 0.0
        %2985 = vmatprep.subr.mxu0 0.0
        %2986 = vmatpush1.xpose.msra.mxu0 0.0
        %2987 = vmatprep.subr.mxu0 0.0
        %2988 = vmatpush1.xpose.msra.mxu0 0.0
        %2989 = vmatprep.subr.mxu0 0.0
        %2990 = vmatpush1.xpose.msra.mxu0 0.0
        %2991 = vmatprep.subr.mxu0 0.0
        %2992 = vmatpush1.xpose.msra.mxu0 0.0
        %2993 = vmatprep.subr.mxu0 0.0
        %2994 = vmatpush1.xpose.msra.mxu0 0.0
        %2995 = vmatprep.subr.mxu0 0.0
        %2996 = vmatpush1.xpose.msra.mxu0 0.0
        %2997 = vmatprep.subr.mxu0 0.0
        %2998 = vmatpush1.xpose.msra.mxu0 0.0
        %2999 = vmatprep.subr.mxu0 0.0
        %3000 = vmatpush1.xpose.msra.mxu0 0.0
        %3001 = vmatprep.subr.mxu0 0.0
        %3002 = vmatpush1.xpose.msra.mxu0 0.0
        %3003 = vmatprep.subr.mxu0 0.0
        %3004 = vmatpush1.xpose.msra.mxu0 0.0
        %3005 = vmatprep.subr.mxu0 0.0
        %3006 = vmatpush1.xpose.msra.mxu0 0.0
        %3007 = vmatprep.subr.mxu0 0.0
        %3008 = vmatpush1.xpose.msra.mxu0 0.0
        %3009 = vmatprep.subr.mxu0 0.0
        %3010 = vmatpush1.xpose.msra.mxu0 0.0
        %3011 = vmatprep.subr.mxu0 0.0
        %3012 = vmatpush1.xpose.msra.mxu0 0.0
        %3013 = vmatprep.subr.mxu0 0.0
        %3014 = vmatpush1.xpose.msra.mxu0 0.0
        %3015 = vmatprep.subr.mxu0 0.0
        %3016 = vmatpush1.xpose.msra.mxu0 0.0
        %3017 = vmatprep.subr.mxu0 0.0
        %3018 = vmatpush1.xpose.msra.mxu0 0.0
        %3019 = vmatprep.subr.mxu0 0.0
        %3020 = vmatpush1.xpose.msra.mxu0 0.0
        %3021 = vmatprep.subr.mxu0 0.0
        %3022 = vmatpush1.xpose.msra.mxu0 0.0
        %3023 = vmatprep.subr.mxu0 0.0
        %3024 = vmatpush1.xpose.msra.mxu0 0.0
        %3025 = vmatprep.subr.mxu0 0.0
        %3026 = vmatpush1.xpose.msra.mxu0 0.0
        %3027 = vmatprep.subr.mxu0 0.0
        %3028 = vmatpush1.xpose.msra.mxu0 0.0
        %3029 = vmatprep.mubr.f32.mxu0 0.0
        %3030 = vmatmul.mubr.f32.gmra.mrb[0].mxu0 %v2960
        %v3031 = vpop.f32.mrb[0].mxu0
        %v3032 = vadd.f32 0.0, %v3031
        %v3033 = vpop.f32.mrb[0].mxu0
        %3034 = vdwg.mxu0
        %v3035 = vmul.f32 %v2804, 0.35355338
        %v3036 = vmul.f32 %v2880, 0.35355338
        %v3037 = vmul.f32 %v2956, 0.35355338
        %v3038 = vmul.f32 %v3032, 0.35355338
        %v3039 = vadd.f32 %v3035, %v1445
        %v3040 = vadd.f32 %v3036, %v1445
        %v3041 = vadd.f32 %v3037, %v1445
        %v3042 = vadd.f32 %v3038, %v1445
        %v3043 = vsel %vm1132, %v3039, -inf
        %3044 = vmax.xlane.f32.xlu0 %v3043
        %v3045 = vpop.xlane.xlu0 %3044
        %v3046 = vsel %vm1132, %v3040, -inf
        %3047 = vmax.xlane.f32.xlu0 %v3046
        %v3048 = vpop.xlane.xlu0 %3047
        %v3049 = vsel %vm1132, %v3041, -inf
        %3050 = vmax.xlane.f32.xlu0 %v3049
        %v3051 = vpop.xlane.xlu0 %3050
        %v3052 = vsel %vm1132, %v3042, -inf
        %3053 = vmax.xlane.f32.xlu0 %v3052
        %v3054 = vpop.xlane.xlu0 %3053
        %v3055 = vsub.f32 %v3039, %v3045
        %v3056 = vsub.f32 %v3040, %v3048
        %v3057 = vsub.f32 %v3041, %v3051
        %v3058 = vsub.f32 %v3042, %v3054
        %v3059 = vmul.f32 %v3055, 1.442695
        %v3060 = vpow.pop %v3059
        %v3061 = vmul.f32 %v3056, 1.442695
        %v3062 = vpow.pop %v3061
        %v3063 = vmul.f32 %v3057, 1.442695
        %v3064 = vpow.pop %v3063
        %v3065 = vmul.f32 %v3058, 1.442695
        %v3066 = vpow.pop %v3065
        %v3067 = vsel %vm1132, %v3060, 0.0
        %3068 = vadd.xlane.f32.xlu0 %v3067
        %v3069 = vpop.xlane.xlu0 %3068
        %v3070 = vsel %vm1132, %v3062, 0.0
        %3071 = vadd.xlane.f32.xlu0 %v3070
        %v3072 = vpop.xlane.xlu0 %3071
        %v3073 = vsel %vm1132, %v3064, 0.0
        %3074 = vadd.xlane.f32.xlu0 %v3073
        %v3075 = vpop.xlane.xlu0 %3074
        %v3076 = vsel %vm1132, %v3066, 0.0
        %3077 = vadd.xlane.f32.xlu0 %v3076
        %v3078 = vpop.xlane.xlu0 %3077
        %v3079 = vrcp.pop %v3069
        %v3080 = vrcp.pop %v3072
        %v3081 = vrcp.pop %v3075
        %v3082 = vrcp.pop %v3078
        %v3083 = vmul.f32 %v3060, %v3079
        %v3084 = vmul.f32 %v3062, %v3080
        %v3085 = vmul.f32 %v3064, %v3081
        %v3086 = vmul.f32 %v3066, %v3082
        %v3088 = vsel %vm1132, %v3083, 0
        %3090 = vmatprep.subr.mxu0 0.0
        %3091 = vmatpush1.msra.mxu0 %v2727
        %3092 = vmatprep.subr.mxu0 0.0
        %3093 = vmatpush1.msra.mxu0 0.0
        %3094 = vmatprep.subr.mxu0 0.0
        %3095 = vmatpush1.msra.mxu0 0.0
        %3096 = vmatprep.subr.mxu0 0.0
        %3097 = vmatpush1.msra.mxu0 0.0
        %3098 = vmatprep.subr.mxu0 0.0
        %3099 = vmatpush1.msra.mxu0 0.0
        %3100 = vmatprep.subr.mxu0 0.0
        %3101 = vmatpush1.msra.mxu0 0.0
        %3102 = vmatprep.subr.mxu0 0.0
        %3103 = vmatpush1.msra.mxu0 0.0
        %3104 = vmatprep.subr.mxu0 0.0
        %3105 = vmatpush1.msra.mxu0 0.0
        %3106 = vmatprep.subr.mxu0 0.0
        %3107 = vmatpush1.msra.mxu0 0.0
        %3108 = vmatprep.subr.mxu0 0.0
        %3109 = vmatpush1.msra.mxu0 0.0
        %3110 = vmatprep.subr.mxu0 0.0
        %3111 = vmatpush1.msra.mxu0 0.0
        %3112 = vmatprep.subr.mxu0 0.0
        %3113 = vmatpush1.msra.mxu0 0.0
        %3114 = vmatprep.subr.mxu0 0.0
        %3115 = vmatpush1.msra.mxu0 0.0
        %3116 = vmatprep.subr.mxu0 0.0
        %3117 = vmatpush1.msra.mxu0 0.0
        %3118 = vmatprep.subr.mxu0 0.0
        %3119 = vmatpush1.msra.mxu0 0.0
        %3120 = vmatprep.subr.mxu0 0.0
        %3121 = vmatpush1.msra.mxu0 0.0
        %3122 = vmatprep.subr.mxu0 0.0
        %3123 = vmatpush1.msra.mxu0 0.0
        %3124 = vmatprep.subr.mxu0 0.0
        %3125 = vmatpush1.msra.mxu0 0.0
        %3126 = vmatprep.subr.mxu0 0.0
        %3127 = vmatpush1.msra.mxu0 0.0
        %3128 = vmatprep.subr.mxu0 0.0
        %3129 = vmatpush1.msra.mxu0 0.0
        %3130 = vmatprep.subr.mxu0 0.0
        %3131 = vmatpush1.msra.mxu0 0.0
        %3132 = vmatprep.subr.mxu0 0.0
        %3133 = vmatpush1.msra.mxu0 0.0
        %3134 = vmatprep.subr.mxu0 0.0
        %3135 = vmatpush1.msra.mxu0 0.0
        %3136 = vmatprep.subr.mxu0 0.0
        %3137 = vmatpush1.msra.mxu0 0.0
        %3138 = vmatprep.subr.mxu0 0.0
        %3139 = vmatpush1.msra.mxu0 0.0
        %3140 = vmatprep.subr.mxu0 0.0
        %3141 = vmatpush1.msra.mxu0 0.0
        %3142 = vmatprep.subr.mxu0 0.0
        %3143 = vmatpush1.msra.mxu0 0.0
        %3144 = vmatprep.subr.mxu0 0.0
        %3145 = vmatpush1.msra.mxu0 0.0
        %3146 = vmatprep.subr.mxu0 0.0
        %3147 = vmatpush1.msra.mxu0 0.0
        %3148 = vmatprep.subr.mxu0 0.0
        %3149 = vmatpush1.msra.mxu0 0.0
        %3150 = vmatprep.subr.mxu0 0.0
        %3151 = vmatpush1.msra.mxu0 0.0
        %3152 = vmatprep.subr.mxu0 0.0
        %3153 = vmatpush1.msra.mxu0 0.0
        %3154 = vmatprep.mubr.f32.mxu0 0.0
        %3155 = vmatmul.mubr.f32.gmra.mrb[0].mxu0 %v3088
        %v3156 = vpop.f32.mrb[0].mxu0
        %v3157 = vadd.f32 0.0, %v3156
        %v3158 = vpop.f32.mrb[0].mxu0
        %3159 = vdwg.mxu0
        %v3161 = vsel %vm1132, %v3084, 0
        %3163 = vmatprep.subr.mxu0 0.0
        %3164 = vmatpush1.msra.mxu0 %v2728
        %3165 = vmatprep.subr.mxu0 0.0
        %3166 = vmatpush1.msra.mxu0 0.0
        %3167 = vmatprep.subr.mxu0 0.0
        %3168 = vmatpush1.msra.mxu0 0.0
        %3169 = vmatprep.subr.mxu0 0.0
        %3170 = vmatpush1.msra.mxu0 0.0
        %3171 = vmatprep.subr.mxu0 0.0
        %3172 = vmatpush1.msra.mxu0 0.0
        %3173 = vmatprep.subr.mxu0 0.0
        %3174 = vmatpush1.msra.mxu0 0.0
        %3175 = vmatprep.subr.mxu0 0.0
        %3176 = vmatpush1.msra.mxu0 0.0
        %3177 = vmatprep.subr.mxu0 0.0
        %3178 = vmatpush1.msra.mxu0 0.0
        %3179 = vmatprep.subr.mxu0 0.0
        %3180 = vmatpush1.msra.mxu0 0.0
        %3181 = vmatprep.subr.mxu0 0.0
        %3182 = vmatpush1.msra.mxu0 0.0
        %3183 = vmatprep.subr.mxu0 0.0
        %3184 = vmatpush1.msra.mxu0 0.0
        %3185 = vmatprep.subr.mxu0 0.0
        %3186 = vmatpush1.msra.mxu0 0.0
        %3187 = vmatprep.subr.mxu0 0.0
        %3188 = vmatpush1.msra.mxu0 0.0
        %3189 = vmatprep.subr.mxu0 0.0
        %3190 = vmatpush1.msra.mxu0 0.0
        %3191 = vmatprep.subr.mxu0 0.0
        %3192 = vmatpush1.msra.mxu0 0.0
        %3193 = vmatprep.subr.mxu0 0.0
        %3194 = vmatpush1.msra.mxu0 0.0
        %3195 = vmatprep.subr.mxu0 0.0
        %3196 = vmatpush1.msra.mxu0 0.0
        %3197 = vmatprep.subr.mxu0 0.0
        %3198 = vmatpush1.msra.mxu0 0.0
        %3199 = vmatprep.subr.mxu0 0.0
        %3200 = vmatpush1.msra.mxu0 0.0
        %3201 = vmatprep.subr.mxu0 0.0
        %3202 = vmatpush1.msra.mxu0 0.0
        %3203 = vmatprep.subr.mxu0 0.0
        %3204 = vmatpush1.msra.mxu0 0.0
        %3205 = vmatprep.subr.mxu0 0.0
        %3206 = vmatpush1.msra.mxu0 0.0
        %3207 = vmatprep.subr.mxu0 0.0
        %3208 = vmatpush1.msra.mxu0 0.0
        %3209 = vmatprep.subr.mxu0 0.0
        %3210 = vmatpush1.msra.mxu0 0.0
        %3211 = vmatprep.subr.mxu0 0.0
        %3212 = vmatpush1.msra.mxu0 0.0
        %3213 = vmatprep.subr.mxu0 0.0
        %3214 = vmatpush1.msra.mxu0 0.0
        %3215 = vmatprep.subr.mxu0 0.0
        %3216 = vmatpush1.msra.mxu0 0.0
        %3217 = vmatprep.subr.mxu0 0.0
        %3218 = vmatpush1.msra.mxu0 0.0
        %3219 = vmatprep.subr.mxu0 0.0
        %3220 = vmatpush1.msra.mxu0 0.0
        %3221 = vmatprep.subr.mxu0 0.0
        %3222 = vmatpush1.msra.mxu0 0.0
        %3223 = vmatprep.subr.mxu0 0.0
        %3224 = vmatpush1.msra.mxu0 0.0
        %3225 = vmatprep.subr.mxu0 0.0
        %3226 = vmatpush1.msra.mxu0 0.0
        %3227 = vmatprep.mubr.f32.mxu0 0.0
        %3228 = vmatmul.mubr.f32.gmra.mrb[0].mxu0 %v3161
        %v3229 = vpop.f32.mrb[0].mxu0
        %v3230 = vadd.f32 0.0, %v3229
        %v3231 = vpop.f32.mrb[0].mxu0
        %3232 = vdwg.mxu0
        %v3234 = vsel %vm1132, %v3085, 0
        %3236 = vmatprep.subr.mxu0 0.0
        %3237 = vmatpush1.msra.mxu0 %v2729
        %3238 = vmatprep.subr.mxu0 0.0
        %3239 = vmatpush1.msra.mxu0 0.0
        %3240 = vmatprep.subr.mxu0 0.0
        %3241 = vmatpush1.msra.mxu0 0.0
        %3242 = vmatprep.subr.mxu0 0.0
        %3243 = vmatpush1.msra.mxu0 0.0
        %3244 = vmatprep.subr.mxu0 0.0
        %3245 = vmatpush1.msra.mxu0 0.0
        %3246 = vmatprep.subr.mxu0 0.0
        %3247 = vmatpush1.msra.mxu0 0.0
        %3248 = vmatprep.subr.mxu0 0.0
        %3249 = vmatpush1.msra.mxu0 0.0
        %3250 = vmatprep.subr.mxu0 0.0
        %3251 = vmatpush1.msra.mxu0 0.0
        %3252 = vmatprep.subr.mxu0 0.0
        %3253 = vmatpush1.msra.mxu0 0.0
        %3254 = vmatprep.subr.mxu0 0.0
        %3255 = vmatpush1.msra.mxu0 0.0
        %3256 = vmatprep.subr.mxu0 0.0
        %3257 = vmatpush1.msra.mxu0 0.0
        %3258 = vmatprep.subr.mxu0 0.0
        %3259 = vmatpush1.msra.mxu0 0.0
        %3260 = vmatprep.subr.mxu0 0.0
        %3261 = vmatpush1.msra.mxu0 0.0
        %3262 = vmatprep.subr.mxu0 0.0
        %3263 = vmatpush1.msra.mxu0 0.0
        %3264 = vmatprep.subr.mxu0 0.0
        %3265 = vmatpush1.msra.mxu0 0.0
        %3266 = vmatprep.subr.mxu0 0.0
        %3267 = vmatpush1.msra.mxu0 0.0
        %3268 = vmatprep.subr.mxu0 0.0
        %3269 = vmatpush1.msra.mxu0 0.0
        %3270 = vmatprep.subr.mxu0 0.0
        %3271 = vmatpush1.msra.mxu0 0.0
        %3272 = vmatprep.subr.mxu0 0.0
        %3273 = vmatpush1.msra.mxu0 0.0
        %3274 = vmatprep.subr.mxu0 0.0
        %3275 = vmatpush1.msra.mxu0 0.0
        %3276 = vmatprep.subr.mxu0 0.0
        %3277 = vmatpush1.msra.mxu0 0.0
        %3278 = vmatprep.subr.mxu0 0.0
        %3279 = vmatpush1.msra.mxu0 0.0
        %3280 = vmatprep.subr.mxu0 0.0
        %3281 = vmatpush1.msra.mxu0 0.0
        %3282 = vmatprep.subr.mxu0 0.0
        %3283 = vmatpush1.msra.mxu0 0.0
        %3284 = vmatprep.subr.mxu0 0.0
        %3285 = vmatpush1.msra.mxu0 0.0
        %3286 = vmatprep.subr.mxu0 0.0
        %3287 = vmatpush1.msra.mxu0 0.0
        %3288 = vmatprep.subr.mxu0 0.0
        %3289 = vmatpush1.msra.mxu0 0.0
        %3290 = vmatprep.subr.mxu0 0.0
        %3291 = vmatpush1.msra.mxu0 0.0
        %3292 = vmatprep.subr.mxu0 0.0
        %3293 = vmatpush1.msra.mxu0 0.0
        %3294 = vmatprep.subr.mxu0 0.0
        %3295 = vmatpush1.msra.mxu0 0.0
        %3296 = vmatprep.subr.mxu0 0.0
        %3297 = vmatpush1.msra.mxu0 0.0
        %3298 = vmatprep.subr.mxu0 0.0
        %3299 = vmatpush1.msra.mxu0 0.0
        %3300 = vmatprep.mubr.f32.mxu0 0.0
        %3301 = vmatmul.mubr.f32.gmra.mrb[0].mxu0 %v3234
        %v3302 = vpop.f32.mrb[0].mxu0
        %v3303 = vadd.f32 0.0, %v3302
        %v3304 = vpop.f32.mrb[0].mxu0
        %3305 = vdwg.mxu0
        %v3307 = vsel %vm1132, %v3086, 0
        %3309 = vmatprep.subr.mxu0 0.0
        %3310 = vmatpush1.msra.mxu0 %v2730
        %3311 = vmatprep.subr.mxu0 0.0
        %3312 = vmatpush1.msra.mxu0 0.0
        %3313 = vmatprep.subr.mxu0 0.0
        %3314 = vmatpush1.msra.mxu0 0.0
        %3315 = vmatprep.subr.mxu0 0.0
        %3316 = vmatpush1.msra.mxu0 0.0
        %3317 = vmatprep.subr.mxu0 0.0
        %3318 = vmatpush1.msra.mxu0 0.0
        %3319 = vmatprep.subr.mxu0 0.0
        %3320 = vmatpush1.msra.mxu0 0.0
        %3321 = vmatprep.subr.mxu0 0.0
        %3322 = vmatpush1.msra.mxu0 0.0
        %3323 = vmatprep.subr.mxu0 0.0
        %3324 = vmatpush1.msra.mxu0 0.0
        %3325 = vmatprep.subr.mxu0 0.0
        %3326 = vmatpush1.msra.mxu0 0.0
        %3327 = vmatprep.subr.mxu0 0.0
        %3328 = vmatpush1.msra.mxu0 0.0
        %3329 = vmatprep.subr.mxu0 0.0
        %3330 = vmatpush1.msra.mxu0 0.0
        %3331 = vmatprep.subr.mxu0 0.0
        %3332 = vmatpush1.msra.mxu0 0.0
        %3333 = vmatprep.subr.mxu0 0.0
        %3334 = vmatpush1.msra.mxu0 0.0
        %3335 = vmatprep.subr.mxu0 0.0
        %3336 = vmatpush1.msra.mxu0 0.0
        %3337 = vmatprep.subr.mxu0 0.0
        %3338 = vmatpush1.msra.mxu0 0.0
        %3339 = vmatprep.subr.mxu0 0.0
        %3340 = vmatpush1.msra.mxu0 0.0
        %3341 = vmatprep.subr.mxu0 0.0
        %3342 = vmatpush1.msra.mxu0 0.0
        %3343 = vmatprep.subr.mxu0 0.0
        %3344 = vmatpush1.msra.mxu0 0.0
        %3345 = vmatprep.subr.mxu0 0.0
        %3346 = vmatpush1.msra.mxu0 0.0
        %3347 = vmatprep.subr.mxu0 0.0
        %3348 = vmatpush1.msra.mxu0 0.0
        %3349 = vmatprep.subr.mxu0 0.0
        %3350 = vmatpush1.msra.mxu0 0.0
        %3351 = vmatprep.subr.mxu0 0.0
        %3352 = vmatpush1.msra.mxu0 0.0
        %3353 = vmatprep.subr.mxu0 0.0
        %3354 = vmatpush1.msra.mxu0 0.0
        %3355 = vmatprep.subr.mxu0 0.0
        %3356 = vmatpush1.msra.mxu0 0.0
        %3357 = vmatprep.subr.mxu0 0.0
        %3358 = vmatpush1.msra.mxu0 0.0
        %3359 = vmatprep.subr.mxu0 0.0
        %3360 = vmatpush1.msra.mxu0 0.0
        %3361 = vmatprep.subr.mxu0 0.0
        %3362 = vmatpush1.msra.mxu0 0.0
        %3363 = vmatprep.subr.mxu0 0.0
        %3364 = vmatpush1.msra.mxu0 0.0
        %3365 = vmatprep.subr.mxu0 0.0
        %3366 = vmatpush1.msra.mxu0 0.0
        %3367 = vmatprep.subr.mxu0 0.0
        %3368 = vmatpush1.msra.mxu0 0.0
        %3369 = vmatprep.subr.mxu0 0.0
        %3370 = vmatpush1.msra.mxu0 0.0
        %3371 = vmatprep.subr.mxu0 0.0
        %3372 = vmatpush1.msra.mxu0 0.0
        %3373 = vmatprep.mubr.f32.mxu0 0.0
        %3374 = vmatmul.mubr.f32.gmra.mrb[0].mxu0 %v3307
        %v3375 = vpop.f32.mrb[0].mxu0
        %v3376 = vadd.f32 0.0, %v3375
        %v3377 = vpop.f32.mrb[0].mxu0
        %3378 = vdwg.mxu0
        %v3379 = vcombine.low %v3157, %v3303
        %v3380 = vcombine.high %v3157, %v3303
        %v3382 = vunpack.c.l.s4 1983009808
        %v3383 = vunpack.c.0.s8 %v3382
        %v3384 = vlaneseq
        %v3385 = vshrl.u32 %v3384, 7
        %v3386 = vsub.s32 %v3383, %v3385
        %v3387 = vrot.slane %v3379, %v3386
        %v3389 = vunpack.c.l.s4 1983009808
        %v3390 = vunpack.c.0.s8 %v3389
        %v3391 = vlaneseq
        %v3392 = vshrl.u32 %v3391, 7
        %v3393 = vsub.s32 %v3390, %v3392
        %v3394 = vrot.slane %v3380, %v3393
        %v3395 = vcombine.low %v3230, %v3376
        %v3396 = vcombine.high %v3230, %v3376
        %v3398 = vunpack.c.l.s4 1983009808
        %v3399 = vunpack.c.0.s8 %v3398
        %v3400 = vlaneseq
        %v3401 = vshrl.u32 %v3400, 7
        %v3402 = vsub.s32 %v3399, %v3401
        %v3403 = vrot.slane %v3395, %v3402
        %v3405 = vunpack.c.l.s4 1983009808
        %v3406 = vunpack.c.0.s8 %v3405
        %v3407 = vlaneseq
        %v3408 = vshrl.u32 %v3407, 7
        %v3409 = vsub.s32 %v3406, %v3408
        %v3410 = vrot.slane %v3396, %v3409
        %v3411 = vcombine.low %v3387, %v3403
        %v3412 = vcombine.high %v3387, %v3403
        %v3414 = vunpack.c.l.s4 1934713408
        %v3415 = vunpack.c.0.s8 %v3414
        %v3416 = vlaneseq
        %v3417 = vshrl.u32 %v3416, 7
        %v3418 = vsub.s32 %v3415, %v3417
        %v3419 = vrot.slane %v3411, %v3418
        %v3421 = vunpack.c.l.s4 1934713408
        %v3422 = vunpack.c.0.s8 %v3421
        %v3423 = vlaneseq
        %v3424 = vshrl.u32 %v3423, 7
        %v3425 = vsub.s32 %v3422, %v3424
        %v3426 = vrot.slane %v3412, %v3425
        %v3427 = vcombine.low %v3394, %v3410
        %v3428 = vcombine.high %v3394, %v3410
        %v3430 = vunpack.c.l.s4 1934713408
        %v3431 = vunpack.c.0.s8 %v3430
        %v3432 = vlaneseq
        %v3433 = vshrl.u32 %v3432, 7
        %v3434 = vsub.s32 %v3431, %v3433
        %v3435 = vrot.slane %v3427, %v3434
        %v3437 = vunpack.c.l.s4 1934713408
        %v3438 = vunpack.c.0.s8 %v3437
        %v3439 = vlaneseq
        %v3440 = vshrl.u32 %v3439, 7
        %v3441 = vsub.s32 %v3438, %v3440
        %v3442 = vrot.slane %v3428, %v3441
        %v3443 = vcombine.high %v3419, 0.0
        %v3444 = vcombine.high %v3426, 0.0
        %v3445 = vcombine.high %v3435, 0.0
        %v3446 = vcombine.high %v3442, 0.0
        %v3447 = vcombine.low %v3419, %v3426
        %v3449 = vunpack.c.l.s4 1983009808
        %v3450 = vunpack.c.0.s8 %v3449
        %v3451 = vlaneseq
        %v3452 = vshrl.u32 %v3451, 7
        %v3453 = vsub.s32 %v3450, %v3452
        %v3454 = vrot.slane %v3447, %v3453
        %v3455 = vcombine.low %v3443, %v3444
        %v3457 = vunpack.c.l.s4 1983009808
        %v3458 = vunpack.c.0.s8 %v3457
        %v3459 = vlaneseq
        %v3460 = vshrl.u32 %v3459, 7
        %v3461 = vsub.s32 %v3458, %v3460
        %v3462 = vrot.slane %v3455, %v3461
        %v3463 = vcombine.low %v3435, %v3442
        %v3465 = vunpack.c.l.s4 1983009808
        %v3466 = vunpack.c.0.s8 %v3465
        %v3467 = vlaneseq
        %v3468 = vshrl.u32 %v3467, 7
        %v3469 = vsub.s32 %v3466, %v3468
        %v3470 = vrot.slane %v3463, %v3469
        %v3471 = vcombine.low %v3445, %v3446
        %v3473 = vunpack.c.l.s4 1983009808
        %v3474 = vunpack.c.0.s8 %v3473
        %v3475 = vlaneseq
        %v3476 = vshrl.u32 %v3475, 7
        %v3477 = vsub.s32 %v3474, %v3476
        %v3478 = vrot.slane %v3471, %v3477
        %v3479 = vcombine.low %v3454, %v3462
        %v3480 = vcombine.high %v3454, %v3462
        %v3482 = vunpack.c.l.s4 1934713408
        %v3483 = vunpack.c.0.s8 %v3482
        %v3484 = vlaneseq
        %v3485 = vshrl.u32 %v3484, 7
        %v3486 = vsub.s32 %v3483, %v3485
        %v3487 = vrot.slane %v3479, %v3486
        %v3489 = vunpack.c.l.s4 1934713408
        %v3490 = vunpack.c.0.s8 %v3489
        %v3491 = vlaneseq
        %v3492 = vshrl.u32 %v3491, 7
        %v3493 = vsub.s32 %v3490, %v3492
        %v3494 = vrot.slane %v3480, %v3493
        %v3495 = vcombine.low %v3470, %v3478
        %v3496 = vcombine.high %v3470, %v3478
        %v3498 = vunpack.c.l.s4 1934713408
        %v3499 = vunpack.c.0.s8 %v3498
        %v3500 = vlaneseq
        %v3501 = vshrl.u32 %v3500, 7
        %v3502 = vsub.s32 %v3499, %v3501
        %v3503 = vrot.slane %v3495, %v3502
        %v3505 = vunpack.c.l.s4 1934713408
        %v3506 = vunpack.c.0.s8 %v3505
        %v3507 = vlaneseq
        %v3508 = vshrl.u32 %v3507, 7
        %v3509 = vsub.s32 %v3506, %v3508
        %v3510 = vrot.slane %v3496, %v3509
        %v3511 = vcombine.low %v3487, %v3503
        %v3512 = vcombine.high %v3487, %v3503
        %v3513 = vcombine.low %v3494, %v3510
        %v3514 = vcombine.high %v3494, %v3510
        %3516 = vrot.lane.b32.xlu0 %v3512, 8
        %v3517 = vpop.permute.xlu0 %3516
        %3520 = vrot.lane.b32.xlu0 %v3513, 16
        %v3521 = vpop.permute.xlu0 %3520
        %3524 = vrot.lane.b32.xlu0 %v3514, 24
        %v3525 = vpop.permute.xlu0 %3524
        %v3527 = vsel %vm1132, %v3511, %v3517
        %v3528 = vsel %vm1936, %v3527, %v3521
        %v3529 = vsel %vm1938, %v3528, %v3525
        %v3530 = vpack.c.bf16 %v3529, %v3529
        %s3531 = scalar_lea.vmem %s5, 16
        %v3532 = vld [vmem:[%s3531] sm:$0xf]
        %v3533 = vld [vmem:[%s3531 + $0x4] sm:$0xf]
        %v3534 = vld [vmem:[%s3531 + $0x8] sm:$0xf]
        %v3535 = vld [vmem:[%s3531 + $0xc] sm:$0xf]
        %s3536 = scalar_lea.vmem %s6, 1
        %v3537 = vld [vmem:[%s3536] sm:$0x1]
        %v3539 = vlaneseq
        %v3540 = vshrl.u32 %v3539, 7
        %v3541 = vsub.s32 0, %v3540
        %v3542 = vrot.slane %v3537, %v3541
        %v3548 = vunpack.c.l.b16 %v3532
        %v3549 = vunpack.c.l.b16 %v3533
        %v3550 = vunpack.c.l.b16 %v3534
        %v3551 = vunpack.c.l.b16 %v3535
        %v3552 = vpack.c.b16 %v3549, %v3548
        %v3553 = vpack.c.b16 %v3551, %v3550
        %v3557 = vsel %vm646, %v3530, 0
        %3559 = vmatprep.subr.bf16.mxu0 0
        %3560 = vmatpush1.bf16.msra.mxu0 %v3552
        %3561 = vmatprep.subr.bf16.mxu0 0
        %3562 = vmatpush1.bf16.msra.mxu0 %v3553
        %3563 = vmatprep.subr.bf16.mxu0 0
        %3564 = vmatpush1.bf16.msra.mxu0 0
        %3565 = vmatprep.subr.bf16.mxu0 0
        %3566 = vmatpush1.bf16.msra.mxu0 0
        %3567 = vmatprep.subr.bf16.mxu0 0
        %3568 = vmatpush1.bf16.msra.mxu0 0
        %3569 = vmatprep.subr.bf16.mxu0 0
        %3570 = vmatpush1.bf16.msra.mxu0 0
        %3571 = vmatprep.subr.bf16.mxu0 0
        %3572 = vmatpush1.bf16.msra.mxu0 0
        %3573 = vmatprep.subr.bf16.mxu0 0
        %3574 = vmatpush1.bf16.msra.mxu0 0
        %3575 = vmatprep.subr.bf16.mxu0 0
        %3576 = vmatpush1.bf16.msra.mxu0 0
        %3577 = vmatprep.subr.bf16.mxu0 0
        %3578 = vmatpush1.bf16.msra.mxu0 0
        %3579 = vmatprep.subr.bf16.mxu0 0
        %3580 = vmatpush1.bf16.msra.mxu0 0
        %3581 = vmatprep.subr.bf16.mxu0 0
        %3582 = vmatpush1.bf16.msra.mxu0 0
        %3583 = vmatprep.subr.bf16.mxu0 0
        %3584 = vmatpush1.bf16.msra.mxu0 0
        %3585 = vmatprep.subr.bf16.mxu0 0
        %3586 = vmatpush1.bf16.msra.mxu0 0
        %3587 = vmatprep.subr.bf16.mxu0 0
        %3588 = vmatpush1.bf16.msra.mxu0 0
        %3589 = vmatprep.subr.bf16.mxu0 0
        %3590 = vmatpush1.bf16.msra.mxu0 0
        %3591 = vmatprep.mubr.bf16.mxu0 0
        %3592 = vmatmul.mubr.bf16.gmra.mrb[0].mxu0 %v3557
        %v3593 = vpop.f32.mrb[0].mxu0
        %v3594 = vadd.f32 %v3542, %v3593
        %v3595 = vpop.f32.mrb[0].mxu0
        %v3596 = vpop.f32.mrb[0].mxu0
        %v3597 = vpop.f32.mrb[0].mxu0
        %3598 = vdwg.mxu0
        %v3599 = vadd.f32 %v2219, %v3594
        %s3600 = scalar_lea.vmem %s7, 1
        %v3601 = vld [vmem:[%s3600] sm:$0x1]
        %s3602 = scalar_lea.vmem %s8, 1
        %v3603 = vld [vmem:[%s3602] sm:$0x1]
        %v3604 = vsel %vm646, %v3599, 0.0
        %3605 = vadd.xlane.f32.xlu0 %v3604
        %v3606 = vpop.xlane.xlu0 %3605
        %v3607 = vmul.f32 %v3606, %v2013
        %v3608 = vsub.f32 %v3599, %v3607
        %v3609 = vmul.f32 %v3608, %v3608
        %v3610 = vsel %vm646, %v3609, 0.0
        %3611 = vadd.xlane.f32.xlu0 %v3610
        %v3612 = vpop.xlane.xlu0 %3611
        %v3613 = vmul.f32 %v3612, %v2013
        %v3614 = vadd.f32 %v3613, 1e-05
        %v3615 = vrsqrt.pop %v3614
        %v3616 = vmul.f32 %v3608, %v3615
        %v3618 = vlaneseq
        %v3619 = vshrl.u32 %v3618, 7
        %v3620 = vsub.s32 0, %v3619
        %v3621 = vrot.slane %v3601, %v3620
        %v3623 = vmul.f32 %v3616, %v3621
        %v3625 = vlaneseq
        %v3626 = vshrl.u32 %v3625, 7
        %v3627 = vsub.s32 0, %v3626
        %v3628 = vrot.slane %v3603, %v3627
        %v3630 = vadd.f32 %v3623, %v3628
        %v3631 = vpack.c.bf16 %v3630, %v3630
        %s3632 = scalar_lea.vmem %s9, 16
        %v3633 = vld [vmem:[%s3632] sm:$0xf]
        %v3634 = vld [vmem:[%s3632 + $0x4] sm:$0xf]
        %v3635 = vld [vmem:[%s3632 + $0x8] sm:$0xf]
        %v3636 = vld [vmem:[%s3632 + $0xc] sm:$0xf]
        %s3637 = scalar_lea.vmem [#allocation6], 1
        %v3638 = vld [vmem:[%s3637] sm:$0x1]
        %v3640 = vlaneseq
        %v3641 = vshrl.u32 %v3640, 7
        %v3642 = vsub.s32 0, %v3641
        %v3643 = vrot.slane %v3638, %v3642
        %v3649 = vunpack.c.l.b16 %v3633
        %v3650 = vunpack.c.l.b16 %v3634
        %v3651 = vunpack.c.l.b16 %v3635
        %v3652 = vunpack.c.l.b16 %v3636
        %v3653 = vpack.c.b16 %v3650, %v3649
        %v3654 = vpack.c.b16 %v3652, %v3651
        %v3658 = vsel %vm646, %v3631, 0
        %3660 = vmatprep.subr.bf16.mxu0 0
        %3661 = vmatpush1.bf16.msra.mxu0 %v3653
        %3662 = vmatprep.subr.bf16.mxu0 0
        %3663 = vmatpush1.bf16.msra.mxu0 %v3654
        %3664 = vmatprep.subr.bf16.mxu0 0
        %3665 = vmatpush1.bf16.msra.mxu0 0
        %3666 = vmatprep.subr.bf16.mxu0 0
        %3667 = vmatpush1.bf16.msra.mxu0 0
        %3668 = vmatprep.subr.bf16.mxu0 0
        %3669 = vmatpush1.bf16.msra.mxu0 0
        %3670 = vmatprep.subr.bf16.mxu0 0
        %3671 = vmatpush1.bf16.msra.mxu0 0
        %3672 = vmatprep.subr.bf16.mxu0 0
        %3673 = vmatpush1.bf16.msra.mxu0 0
        %3674 = vmatprep.subr.bf16.mxu0 0
        %3675 = vmatpush1.bf16.msra.mxu0 0
        %3676 = vmatprep.subr.bf16.mxu0 0
        %3677 = vmatpush1.bf16.msra.mxu0 0
        %3678 = vmatprep.subr.bf16.mxu0 0
        %3679 = vmatpush1.bf16.msra.mxu0 0
        %3680 = vmatprep.subr.bf16.mxu0 0
        %3681 = vmatpush1.bf16.msra.mxu0 0
        %3682 = vmatprep.subr.bf16.mxu0 0
        %3683 = vmatpush1.bf16.msra.mxu0 0
        %3684 = vmatprep.subr.bf16.mxu0 0
        %3685 = vmatpush1.bf16.msra.mxu0 0
        %3686 = vmatprep.subr.bf16.mxu0 0
        %3687 = vmatpush1.bf16.msra.mxu0 0
        %3688 = vmatprep.subr.bf16.mxu0 0
        %3689 = vmatpush1.bf16.msra.mxu0 0
        %3690 = vmatprep.subr.bf16.mxu0 0
        %3691 = vmatpush1.bf16.msra.mxu0 0
        %3692 = vmatprep.mubr.bf16.mxu0 0
        %3693 = vmatmul.mubr.bf16.gmra.mrb[0].mxu0 %v3658
        %v3694 = vpop.f32.mrb[0].mxu0
        %v3695 = vadd.f32 %v3643, %v3694
        %v3696 = vpop.f32.mrb[0].mxu0
        %v3697 = vpop.f32.mrb[0].mxu0
        %v3698 = vpop.f32.mrb[0].mxu0
        %3699 = vdwg.mxu0
        %v3700 = vmax.f32 %v3695, 0.0
        %v3701 = vpack.c.bf16 %v3700, %v3700
        %s3702 = scalar_lea.vmem %s11, 32
        %v3703 = vld [vmem:[%s3702] sm:$0xf]
        %v3704 = vld [vmem:[%s3702 + $0x4] sm:$0xf]
        %v3705 = vld [vmem:[%s3702 + $0x8] sm:$0xf]
        %v3706 = vld [vmem:[%s3702 + $0xc] sm:$0xf]
        %v3707 = vld [vmem:[%s3702 + $0x10] sm:$0xf]
        %v3708 = vld [vmem:[%s3702 + $0x14] sm:$0xf]
        %v3709 = vld [vmem:[%s3702 + $0x18] sm:$0xf]
        %v3710 = vld [vmem:[%s3702 + $0x1c] sm:$0xf]
        %s3711 = scalar_lea.vmem [#allocation7], 1
        %v3712 = vld [vmem:[%s3711] sm:$0x1]
        %v3714 = vlaneseq
        %v3715 = vshrl.u32 %v3714, 7
        %v3716 = vsub.s32 0, %v3715
        %v3717 = vrot.slane %v3712, %v3716
        %v3727 = vunpack.c.l.b16 %v3703
        %v3728 = vunpack.c.l.b16 %v3704
        %v3729 = vunpack.c.l.b16 %v3705
        %v3730 = vunpack.c.l.b16 %v3706
        %v3731 = vunpack.c.l.b16 %v3707
        %v3732 = vunpack.c.l.b16 %v3708
        %v3733 = vunpack.c.l.b16 %v3709
        %v3734 = vunpack.c.l.b16 %v3710
        %v3735 = vpack.c.b16 %v3728, %v3727
        %v3736 = vpack.c.b16 %v3730, %v3729
        %v3737 = vpack.c.b16 %v3732, %v3731
        %v3738 = vpack.c.b16 %v3734, %v3733
        %v3744 = vsel %vm2146, %v3701, 0
        %3746 = vmatprep.subr.bf16.mxu0 0
        %3747 = vmatpush1.bf16.msra.mxu0 %v3735
        %3748 = vmatprep.subr.bf16.mxu0 0
        %3749 = vmatpush1.bf16.msra.mxu0 %v3736
        %3750 = vmatprep.subr.bf16.mxu0 0
        %3751 = vmatpush1.bf16.msra.mxu0 %v3737
        %3752 = vmatprep.subr.bf16.mxu0 0
        %3753 = vmatpush1.bf16.msra.mxu0 %v3738
        %3754 = vmatprep.subr.bf16.mxu0 0
        %3755 = vmatpush1.bf16.msra.mxu0 0
        %3756 = vmatprep.subr.bf16.mxu0 0
        %3757 = vmatpush1.bf16.msra.mxu0 0
        %3758 = vmatprep.subr.bf16.mxu0 0
        %3759 = vmatpush1.bf16.msra.mxu0 0
        %3760 = vmatprep.subr.bf16.mxu0 0
        %3761 = vmatpush1.bf16.msra.mxu0 0
        %3762 = vmatprep.subr.bf16.mxu0 0
        %3763 = vmatpush1.bf16.msra.mxu0 0
        %3764 = vmatprep.subr.bf16.mxu0 0
        %3765 = vmatpush1.bf16.msra.mxu0 0
        %3766 = vmatprep.subr.bf16.mxu0 0
        %3767 = vmatpush1.bf16.msra.mxu0 0
        %3768 = vmatprep.subr.bf16.mxu0 0
        %3769 = vmatpush1.bf16.msra.mxu0 0
        %3770 = vmatprep.subr.bf16.mxu0 0
        %3771 = vmatpush1.bf16.msra.mxu0 0
        %3772 = vmatprep.subr.bf16.mxu0 0
        %3773 = vmatpush1.bf16.msra.mxu0 0
        %3774 = vmatprep.subr.bf16.mxu0 0
        %3775 = vmatpush1.bf16.msra.mxu0 0
        %3776 = vmatprep.subr.bf16.mxu0 0
        %3777 = vmatpush1.bf16.msra.mxu0 0
        %3778 = vmatprep.mubr.bf16.mxu0 0
        %3779 = vmatmul.mubr.bf16.gmra.mrb[0].mxu0 %v3744
        %v3780 = vpop.f32.mrb[0].mxu0
        %v3781 = vadd.f32 %v3717, %v3780
        %v3782 = vpop.f32.mrb[0].mxu0
        %v3783 = vpop.f32.mrb[0].mxu0
        %v3784 = vpop.f32.mrb[0].mxu0
        %3785 = vdwg.mxu0
        %v3786 = vadd.f32 %v3630, %v3781
        %s3787 = scalar_lea.vmem %s13, 1
        %v3788 = vld [vmem:[%s3787] sm:$0x1]
        %s3789 = scalar_lea.vmem %s14, 1
        %v3790 = vld [vmem:[%s3789] sm:$0x1]
        %v3791 = vsel %vm646, %v3786, 0.0
        %3792 = vadd.xlane.f32.xlu0 %v3791
        %v3793 = vpop.xlane.xlu0 %3792
        %v3794 = vmul.f32 %v3793, %v2013
        %v3795 = vsub.f32 %v3786, %v3794
        %v3796 = vmul.f32 %v3795, %v3795
        %v3797 = vsel %vm646, %v3796, 0.0
        %3798 = vadd.xlane.f32.xlu0 %v3797
        %v3799 = vpop.xlane.xlu0 %3798
        %v3800 = vmul.f32 %v3799, %v2013
        %v3801 = vadd.f32 %v3800, 1e-05
        %v3802 = vrsqrt.pop %v3801
        %v3803 = vmul.f32 %v3795, %v3802
        %v3805 = vlaneseq
        %v3806 = vshrl.u32 %v3805, 7
        %v3807 = vsub.s32 0, %v3806
        %v3808 = vrot.slane %v3788, %v3807
        %v3810 = vmul.f32 %v3803, %v3808
        %v3812 = vlaneseq
        %v3813 = vshrl.u32 %v3812, 7
        %v3814 = vsub.s32 0, %v3813
        %v3815 = vrot.slane %v3790, %v3814
        %v3817 = vadd.f32 %v3810, %v3815
        %v3818 = vsel %vm646, %v3817, 0.0
        %v3819 = vrot.slane %v3818, 4
        %v3820 = vadd.f32 %v3818, %v3819
        %v3821 = vrot.slane %v3820, 2
        %v3822 = vadd.f32 %v3820, %v3821
        %v3823 = vrot.slane %v3822, 1
        %v3824 = vadd.f32 %v3822, %v3823
        %v3825 = vpack.c.bf16 %v3824, %v3824
        %v3826 = vld [vmem:[%s15] sm:$0xf]
        %v3827 = vld [vmem:[%s15 + $0x4] sm:$0xf]
        %v3828 = vld [vmem:[%s15 + $0x8] sm:$0xf]
        %v3829 = vld [vmem:[%s15 + $0xc] sm:$0xf]
        %v3834 = vunpack.c.l.b16 %v3826
        %v3835 = vunpack.c.l.b16 %v3827
        %v3836 = vunpack.c.l.b16 %v3828
        %v3837 = vunpack.c.l.b16 %v3829
        %v3838 = vpack.c.b16 %v3835, %v3834
        %v3839 = vpack.c.b16 %v3837, %v3836
        %v3843 = vsel %vm646, %v3825, 0
        %3845 = vmatprep.subr.bf16.mxu0 0
        %3846 = vmatpush1.bf16.msra.mxu0 %v3838
        %3847 = vmatprep.subr.bf16.mxu0 0
        %3848 = vmatpush1.bf16.msra.mxu0 %v3839
        %3849 = vmatprep.subr.bf16.mxu0 0
        %3850 = vmatpush1.bf16.msra.mxu0 0
        %3851 = vmatprep.subr.bf16.mxu0 0
        %3852 = vmatpush1.bf16.msra.mxu0 0
        %3853 = vmatprep.subr.bf16.mxu0 0
        %3854 = vmatpush1.bf16.msra.mxu0 0
        %3855 = vmatprep.subr.bf16.mxu0 0
        %3856 = vmatpush1.bf16.msra.mxu0 0
        %3857 = vmatprep.subr.bf16.mxu0 0
        %3858 = vmatpush1.bf16.msra.mxu0 0
        %3859 = vmatprep.subr.bf16.mxu0 0
        %3860 = vmatpush1.bf16.msra.mxu0 0
        %3861 = vmatprep.subr.bf16.mxu0 0
        %3862 = vmatpush1.bf16.msra.mxu0 0
        %3863 = vmatprep.subr.bf16.mxu0 0
        %3864 = vmatpush1.bf16.msra.mxu0 0
        %3865 = vmatprep.subr.bf16.mxu0 0
        %3866 = vmatpush1.bf16.msra.mxu0 0
        %3867 = vmatprep.subr.bf16.mxu0 0
        %3868 = vmatpush1.bf16.msra.mxu0 0
        %3869 = vmatprep.subr.bf16.mxu0 0
        %3870 = vmatpush1.bf16.msra.mxu0 0
        %3871 = vmatprep.subr.bf16.mxu0 0
        %3872 = vmatpush1.bf16.msra.mxu0 0
        %3873 = vmatprep.subr.bf16.mxu0 0
        %3874 = vmatpush1.bf16.msra.mxu0 0
        %3875 = vmatprep.subr.bf16.mxu0 0
        %3876 = vmatpush1.bf16.msra.mxu0 0
        %3877 = vmatprep.mubr.bf16.mxu0 0
        %3878 = vmatmul.mubr.bf16.gmra.mrb[0].mxu0 %v3843
        %v3879 = vpop.f32.mrb[0].mxu0
        %v3880 = vadd.f32 0.0, %v3879
        %v3881 = vpop.f32.mrb[0].mxu0
        %v3882 = vpop.f32.mrb[0].mxu0
        %v3883 = vpop.f32.mrb[0].mxu0
        %3884 = vdwg.mxu0
        %vm3885 = vcmask 253952
        %3886 = vst.msk [vmem:[%s614] sm:$0x1] %vm3885, %v3880
        %p3887 = scmp.lt.s32.totalorder %s34, 1
        %s3888 = scalar_select %p3887, %s34, 1
        %s3889 = scalar_lea.vmem %s16, %s3888
        // Predicated region
        $region101: #{set_transformer_forward.1} parent=83 // pred_check
          %p3890 = pneg %p403
        $region102: #{set_transformer_forward.1} parent=83 // pred_check_branch
          %3892 = sbr.rel (%p3890) target = $region104
        $region103: #{set_transformer_forward.1} parent=83 // pred_region
          _
        $region104: #{set_transformer_forward.1} parent=83 // pred_fallthru
          _
      $region84: #{set_transformer_forward.1} parent=5 // pred_fallthru
        _
      %p3893 = scmp.le.s32.totalorder 2, %s29
      // Predicated region
      $region105: #{set_transformer_forward.1} parent=5 // pred_check
        %p3894 = pneg %p3893
      $region106: #{set_transformer_forward.1} parent=5 // pred_check_branch
        %3896 = sbr.rel (%p3894) target = $region108
      $region107: #{set_transformer_forward.1} parent=5 // pred_region
        %s3897 = ssub.s32 %s29, 2
        // Predicated region
        $region109: #{set_transformer_forward.1} parent=107 // pred_check
          %p3898 = pneg %p409
        $region110: #{set_transformer_forward.1} parent=107 // pred_check_branch
          %3900 = sbr.rel (%p3898) target = $region112
        $region111: #{set_transformer_forward.1} parent=107 // pred_region
          %p3901 = scmp.lt.s32.totalorder %s35, 1
          %s3902 = scalar_select %p3901, %s35, 1
          %s3903 = scalar_lea.vmem %s16, %s3902
        $region112: #{set_transformer_forward.1} parent=107 // pred_fallthru
          _
      $region108: #{set_transformer_forward.1} parent=5 // pred_fallthru
        _
    $region6: #{set_transformer_forward.1} parent=1 // loop_footer
      %s33 = sadd.s32 1, %s29
    $region7: #{set_transformer_forward.1} parent=1 // loop_footer_branch
      %28 = sbr.rel target = $region3
    $region8: #{set_transformer_forward.1} parent=1 // loop_exit
      _
    %3904 = vsyncpa [#allocation3], 1
    %s3905 = scalar_lea.sflag [#allocation3], 1
    %3906 = vsyncpa %s3905, 1
    %3907 = vsyncpa [#allocation5], 1
    %s3908 = scalar_lea.sflag [#allocation5], 1
    %3909 = vsyncpa %s3908, 1
    %3910 = vsyncpa [#allocation8], 1

</llo_original>
